<compile_context>
chip_gen: v7x
topology: tpu7x:2x2x1
jax: 0.10.0
libtpu: 0.0.40
codegen_flags: <defaults>
</compile_context>

<pallas_src>
import math
from functools import partial

import numpy as np
import jax
import jax.numpy as jnp
from jax.experimental import pallas as pl
from jax.experimental.pallas import tpu as pltpu


VMEM_LIMIT = 32 * 1024 * 1024   # safe on v5e/v6e (128 MiB phys) and v7x (64 MiB)


# --------------------------------------------------------------------------
# Haar matrix (orthonormal, N power of two) and tile helpers
# --------------------------------------------------------------------------
def haar_matrix_np(n):
    assert n & (n - 1) == 0 and n > 0
    h = np.array([[1.0]])
    while h.shape[0] < n:
        top = np.kron(h, np.array([1.0, 1.0]))
        bot = np.kron(np.eye(h.shape[0]), np.array([1.0, -1.0]))
        h = np.concatenate([top, bot], axis=0) / math.sqrt(2.0)
    return h.astype(np.float32)


def _pick_tile(n, per_unit_bytes, max_bytes=4 << 20):
    """Largest divisor t of n with t*per_unit_bytes <= max_bytes, while keeping
    at least 2 blocks on the parallel grid axis when n >= 2 (v7x megacore)."""
    limit = max(n // 2, 1) if n >= 2 else 1
    best = 1
    for t in range(1, limit + 1):
        if n % t == 0 and t * per_unit_bytes <= max_bytes:
            best = t
    return best


# --------------------------------------------------------------------------
# Kernel 1 ("front"): multi-step LIF (x_neuron) + Haar forward (Kron matmul)
#   + NegIF + conv1 (1x1) + conv2 (3x3, zero pad) + fused BN statistics.
#   Grid = (B/tb, T); T trailing "arbitrary" axis carries the neuron state and
#   the per-channel stat accumulation (outputs resident across T).
# --------------------------------------------------------------------------
def _front_kernel(x_ref, kf_ref, w1_ref, w2_ref, m_ref,
                  hf_ref, c1_ref, c2_ref, shf_ref, sc1_ref, sc2_ref,
                  vlif_ref, vneg_ref, patch_ref,
                  *, tau, v_th, img_w):
    t = pl.program_id(1)

    @pl.when(t == 0)
    def _():
        vlif_ref[...] = jnp.zeros_like(vlif_ref)
        vneg_ref[...] = jnp.zeros_like(vneg_ref)
        shf_ref[...] = jnp.zeros_like(shf_ref)
        sc1_ref[...] = jnp.zeros_like(sc1_ref)
        sc2_ref[...] = jnp.zeros_like(sc2_ref)

    x = x_ref[0]                                   # [tb, C, HW] f32
    tb, c, hw = x.shape

    # ---- x_neuron: multi-step LIF (state in VMEM across T) ----
    v = vlif_ref[...] + (x - vlif_ref[...]) * (1.0 / tau)
    fired = v >= v_th
    vlif_ref[...] = jnp.where(fired, 0.0, v)       # hard reset to 0
    s = jnp.where(fired, 1.0, 0.0)                 # spikes {0,1}, f32

    # ---- Haar 2D forward: one [tb*C, HW] @ [HW, HW] kron matmul + NegIF ----
    h = jnp.dot(s.reshape(tb * c, hw), kf_ref[...],
                preferred_element_type=jnp.float32)
    vn = vneg_ref[...] + h
    pos = vn >= v_th
    neg = vn <= -v_th
    vneg_ref[...] = jnp.where(jnp.logical_or(pos, neg), 0.0, vn)
    hf = jnp.where(pos, 1.0, jnp.where(neg, -1.0, 0.0)).reshape(tb, c, hw)
    hf_ref[0] = hf.astype(hf_ref.dtype)
    shf_ref[:, 0, :] = shf_ref[:, 0, :] + jnp.sum(hf, axis=-1)
    shf_ref[:, 1, :] = shf_ref[:, 1, :] + jnp.sum(hf * hf, axis=-1)

    # ---- conv1 (1x1) + conv2 (3x3, zero pad) on the LIF spikes ----
    # Biases dropped: a per-channel constant before training-mode BN cancels.
    for i in range(tb):
        si = s[i]                                  # [C, HW]
        c1_ref[0, i] = jnp.dot(w1_ref[...], si,
                               preferred_element_type=jnp.float32)
        # im2col stack [9C, HW] built in VMEM via lane rolls + edge masks
        kk = 0
        for dh in (-1, 0, 1):
            for dw in (-1, 0, 1):
                off = dh * img_w + dw
                sh = (-off) % hw
                tap = si if sh == 0 else pltpu.roll(si, sh, 1)
                patch_ref[kk * c:(kk + 1) * c, :] = tap * m_ref[kk:kk + 1, :]
                kk += 1
        c2_ref[0, i] = jnp.dot(w2_ref[...], patch_ref[...],
                               preferred_element_type=jnp.float32)

    c1 = c1_ref[0]                                 # read back from VMEM (cheap)
    c2 = c2_ref[0]
    sc1_ref[:, 0, :] = sc1_ref[:, 0, :] + jnp.sum(c1, axis=-1)
    sc1_ref[:, 1, :] = sc1_ref[:, 1, :] + jnp.sum(c1 * c1, axis=-1)
    sc2_ref[:, 0, :] = sc2_ref[:, 0, :] + jnp.sum(c2, axis=-1)
    sc2_ref[:, 1, :] = sc2_ref[:, 1, :] + jnp.sum(c2 * c2, axis=-1)


def front_pass(x4, kron_fwd, w1_bd, w2_bd, masks, img_w, tau=2.0, v_th=1.0):
    t_steps, b, c, hw = x4.shape
    tb = _pick_tile(b, c * hw * 4 * 7)
    big = pl.BlockSpec((1, tb, c, hw), lambda i, t: (t, i, 0, 0))
    stat = pl.BlockSpec((tb, 2, c), lambda i, t: (i, 0, 0))
    return pl.pallas_call(
        partial(_front_kernel, tau=tau, v_th=v_th, img_w=img_w),
        out_shape=[jax.ShapeDtypeStruct((t_steps, b, c, hw), jnp.bfloat16),
                   jax.ShapeDtypeStruct((t_steps, b, c, hw), jnp.float32),
                   jax.ShapeDtypeStruct((t_steps, b, c, hw), jnp.float32),
                   jax.ShapeDtypeStruct((b, 2, c), jnp.float32),
                   jax.ShapeDtypeStruct((b, 2, c), jnp.float32),
                   jax.ShapeDtypeStruct((b, 2, c), jnp.float32)],
        grid=(b // tb, t_steps),
        in_specs=[big,
                  pl.BlockSpec((hw, hw), lambda i, t: (0, 0)),
                  pl.BlockSpec((c, c), lambda i, t: (0, 0)),
                  pl.BlockSpec((c, 9 * c), lambda i, t: (0, 0)),
                  pl.BlockSpec((9, hw), lambda i, t: (0, 0))],
        out_specs=[big, big, big, stat, stat, stat],
        scratch_shapes=[pltpu.VMEM((tb, c, hw), jnp.float32),
                        pltpu.VMEM((tb * c, hw), jnp.float32),
                        pltpu.VMEM((9 * c, hw), jnp.float32)],
        compiler_params=pltpu.CompilerParams(
            dimension_semantics=("parallel", "arbitrary"),
            vmem_limit_bytes=VMEM_LIMIT),
    )(x4, kron_fwd, w1_bd, w2_bd, masks)


# --------------------------------------------------------------------------
# Kernel 2 ("mix"): BN-apply + multi-step LIF (haar_neuron) + block-diagonal
#   channel mix (W[C,C] @ spikes[C,HW]) + fused BN statistics of the result.
# --------------------------------------------------------------------------
def _mix_kernel(hf_ref, bn_ref, w_ref, hm_ref, st_ref, v_ref, *, tau, v_th):
    t = pl.program_id(1)

    @pl.when(t == 0)
    def _():
        v_ref[...] = jnp.zeros_like(v_ref)
        st_ref[...] = jnp.zeros_like(st_ref)

    x = hf_ref[0].astype(jnp.float32)              # [tb, C, HW]
    y = x * bn_ref[0] + bn_ref[1]                  # per-channel BN apply
    v = v_ref[...] + (y - v_ref[...]) * (1.0 / tau)
    fired = v >= v_th
    v_ref[...] = jnp.where(fired, 0.0, v)
    s = jnp.where(fired, 1.0, 0.0)
    # TODO(synk): for production-size C, tile per block (K>=128/256) instead of
    #             a dense block-diagonal [C,C] matmul with K=C.
    for i in range(s.shape[0]):
        hm_ref[0, i] = jnp.dot(w_ref[...], s[i],
                               preferred_element_type=jnp.float32)
    hm = hm_ref[0]
    st_ref[:, 0, :] = st_ref[:, 0, :] + jnp.sum(hm, axis=-1)
    st_ref[:, 1, :] = st_ref[:, 1, :] + jnp.sum(hm * hm, axis=-1)


def mix_pass(hf, bn_pair, w_mix, tau=2.0, v_th=1.0):
    t_steps, b, c, hw = hf.shape
    tb = _pick_tile(b, c * hw * 4 * 3)
    big = pl.BlockSpec((1, tb, c, hw), lambda i, t: (t, i, 0, 0))
    stat = pl.BlockSpec((tb, 2, c), lambda i, t: (i, 0, 0))
    return pl.pallas_call(
        partial(_mix_kernel, tau=tau, v_th=v_th),
        out_shape=[jax.ShapeDtypeStruct((t_steps, b, c, hw), jnp.float32),
                   jax.ShapeDtypeStruct((b, 2, c), jnp.float32)],
        grid=(b // tb, t_steps),
        in_specs=[big,
                  pl.BlockSpec((2, c, 1), lambda i, t: (0, 0, 0)),
                  pl.BlockSpec((c, c), lambda i, t: (0, 0))],
        out_specs=[big, stat],
        scratch_shapes=[pltpu.VMEM((tb, c, hw), jnp.float32)],
        compiler_params=pltpu.CompilerParams(
            dimension_semantics=("parallel", "arbitrary"),
            vmem_limit_bytes=VMEM_LIMIT),
    )(hf, bn_pair, w_mix)


# --------------------------------------------------------------------------
# Kernel 3 ("inv"): BN-apply + Haar inverse ([tb*C, HW] @ [HW, HW]) + NegIF
#   + fused BN statistics of the spike output.
# --------------------------------------------------------------------------
def _inv_kernel(hm_ref, bn_ref, ki_ref, hi_ref, st_ref, v_ref, *, v_th):
    t = pl.program_id(1)

    @pl.when(t == 0)
    def _():
        v_ref[...] = jnp.zeros_like(v_ref)
        st_ref[...] = jnp.zeros_like(st_ref)

    x = hm_ref[0]                                  # [tb, C, HW] f32
    y = x * bn_ref[0] + bn_ref[1]
    tb, c, hw = y.shape
    h = jnp.dot(y.reshape(tb * c, hw), ki_ref[...],
                preferred_element_type=jnp.float32)
    v = v_ref[...] + h
    pos = v >= v_th
    neg = v <= -v_th
    v_ref[...] = jnp.where(jnp.logical_or(pos, neg), 0.0, v)
    hi = jnp.where(pos, 1.0, jnp.where(neg, -1.0, 0.0)).reshape(tb, c, hw)
    hi_ref[0] = hi.astype(hi_ref.dtype)
    st_ref[:, 0, :] = st_ref[:, 0, :] + jnp.sum(hi, axis=-1)
    st_ref[:, 1, :] = st_ref[:, 1, :] + jnp.sum(hi * hi, axis=-1)


def inv_pass(hm, bn_pair, kron_inv, v_th=1.0):
    t_steps, b, c, hw = hm.shape
    tb = _pick_tile(b, c * hw * 4 * 3)
    big = pl.BlockSpec((1, tb, c, hw), lambda i, t: (t, i, 0, 0))
    stat = pl.BlockSpec((tb, 2, c), lambda i, t: (i, 0, 0))
    return pl.pallas_call(
        partial(_inv_kernel, v_th=v_th),
        out_shape=[jax.ShapeDtypeStruct((t_steps, b, c, hw), jnp.bfloat16),
                   jax.ShapeDtypeStruct((b, 2, c), jnp.float32)],
        grid=(b // tb, t_steps),
        in_specs=[big,
                  pl.BlockSpec((2, c, 1), lambda i, t: (0, 0, 0)),
                  pl.BlockSpec((hw, hw), lambda i, t: (0, 0))],
        out_specs=[big, stat],
        scratch_shapes=[pltpu.VMEM((tb * c, hw), jnp.float32)],
        compiler_params=pltpu.CompilerParams(
            dimension_semantics=("parallel", "arbitrary"),
            vmem_limit_bytes=VMEM_LIMIT),
    )(hm, bn_pair, kron_inv)


# --------------------------------------------------------------------------
# Kernel 4: final combine — three fused BN applies + sum in a single pass
# --------------------------------------------------------------------------
def _combine_kernel(hi_ref, c1_ref, c2_ref, bn_ref, o_ref):
    o_ref[...] = (hi_ref[...].astype(jnp.float32) * bn_ref[0] + bn_ref[1]
                  + c1_ref[...] * bn_ref[2] + bn_ref[3]
                  + c2_ref[...] * bn_ref[4] + bn_ref[5])


def combine(hi3, c13, c23, bn_all):
    n, c, hw = c13.shape
    tn = _pick_tile(n, c * hw * (2 + 4 + 4 + 4))
    blk = pl.BlockSpec((tn, c, hw), lambda i: (i, 0, 0))
    return pl.pallas_call(
        _combine_kernel,
        out_shape=jax.ShapeDtypeStruct((n, c, hw), jnp.float32),
        grid=(n // tn,),
        in_specs=[blk, blk, blk,
                  pl.BlockSpec((6, c, 1), lambda i: (0, 0, 0))],
        out_specs=blk,
        compiler_params=pltpu.CompilerParams(
            dimension_semantics=("parallel",),
            vmem_limit_bytes=VMEM_LIMIT),
    )(hi3, c13, c23, bn_all)


# --------------------------------------------------------------------------
# BN scale/shift from the in-kernel (sum, sumsq) accumulators (training mode,
# biased variance, per-channel).  Tiny (C,)-sized XLA op.
# --------------------------------------------------------------------------
def _bn_from_stats(stats, gamma, beta, count, eps=1e-5):
    s = jnp.sum(stats.astype(jnp.float32), axis=0)        # [2, C]
    mean = s[0] / count
    var = s[1] / count - mean * mean                       # biased variance
    scale = gamma * jax.lax.rsqrt(var + eps)
    shift = beta - mean * scale
    return jnp.stack([scale, shift])[:, :, None]           # (2, C, 1)


# --------------------------------------------------------------------------
# Parameter init (deterministic, shapes per FATM.__init__), weights pre-folded
# into the layouts the kernels consume.  All weights kept in float32.
# --------------------------------------------------------------------------
def init_params(key, dim, num_blocks, spatial):
    bs = dim // num_blocks
    nb = num_blocks
    hw = spatial * spatial
    ks = jax.random.split(key, 3)

    hm = haar_matrix_np(spatial)
    kron = np.kron(hm, hm).astype(np.float32)   # row-vec: y = x @ kron.T (fwd)

    haar_w = 0.02 * jax.random.normal(ks[0], (nb, bs, bs), jnp.float32)
    w_bd = jax.scipy.linalg.block_diag(*[haar_w[i] for i in range(nb)])  # [C,C]

    w1 = 0.3 * jax.random.normal(ks[1], (bs, bs), jnp.float32)   # conv1 [co,ci]
    w2 = 0.1 * jax.random.normal(ks[2], (bs, bs, 3, 3), jnp.float32)
    # conv biases intentionally omitted: exactly cancelled by training-mode BN.

    eye = jnp.eye(nb, dtype=jnp.float32)
    w1_bd = jnp.kron(eye, w1)                                     # [C, C]
    w2_bd = jnp.concatenate(
        [jnp.kron(eye, w2[:, :, kk // 3, kk % 3]) for kk in range(9)],
        axis=1)                                                   # [C, 9C]

    # zero-padding edge masks for the 9 conv taps, flattened (h, w) order
    idx = np.arange(hw)
    hh, ww = idx // spatial, idx % spatial
    masks = np.zeros((9, hw), np.float32)
    kk = 0
    for dh in (-1, 0, 1):
        for dw in (-1, 0, 1):
            ok = ((hh + dh >= 0) & (hh + dh < spatial) &
                  (ww + dw >= 0) & (ww + dw < spatial))
            masks[kk] = ok.astype(np.float32)
            kk += 1

    ones = jnp.ones((dim,), jnp.float32)
    zeros = jnp.zeros((dim,), jnp.float32)
    return dict(
        kron_fwd=jnp.asarray(kron.T),       # f32: Haar coeffs not exact in bf16
        kron_inv=jnp.asarray(kron),
        w_mix=jnp.asarray(w_bd.T),          # out = block_diag(W_b^T) @ x
        w1_bd=w1_bd,
        w2_bd=w2_bd,
        conv_masks=jnp.asarray(masks),
        bn_hf_g=ones, bn_hf_b=zeros,
        bn_hm_g=ones, bn_hm_b=zeros,
        bn_hi_g=ones, bn_hi_b=zeros,
        bn_c1_g=ones, bn_c1_b=zeros,
        bn_c2_g=ones, bn_c2_b=zeros,
    )


# --------------------------------------------------------------------------
# FATM forward
# --------------------------------------------------------------------------
def fatm_forward(x, params):
    t_steps, b, c, h, w = x.shape
    hw = h * w
    assert hw % 128 == 0 and c % 8 == 0
    x4 = x.reshape(t_steps, b, c, hw)
    count = float(t_steps * b * hw)

    # 1) LIF + Haar forward + NegIF + conv1/conv2 (+ fused BN statistics);
    #    the LIF spike tensor never leaves VMEM.
    hf, c1, c2, s_hf, s_c1, s_c2 = front_pass(
        x4, params['kron_fwd'], params['w1_bd'], params['w2_bd'],
        params['conv_masks'], w)
    bn_hf = _bn_from_stats(s_hf, params['bn_hf_g'], params['bn_hf_b'], count)

    # 2) haar_forward_bn apply + haar_neuron LIF + block-diag channel mix
    hm, s_hm = mix_pass(hf, bn_hf, params['w_mix'])
    bn_hm = _bn_from_stats(s_hm, params['bn_hm_g'], params['bn_hm_b'], count)

    # 3) haar_multiply_bn apply + Haar inverse + NegIF
    hi, s_hi = inv_pass(hm, bn_hm, params['kron_inv'])
    bn_hi = _bn_from_stats(s_hi, params['bn_hi_g'], params['bn_hi_b'], count)
    bn_c1 = _bn_from_stats(s_c1, params['bn_c1_g'], params['bn_c1_b'], count)
    bn_c2 = _bn_from_stats(s_c2, params['bn_c2_g'], params['bn_c2_b'], count)

    # 4) final: three BN applies + sum, one fused pass
    n = t_steps * b
    bn_all = jnp.concatenate([bn_hi, bn_c1, bn_c2], axis=0)      # (6, C, 1)
    out = combine(hi.reshape(n, c, hw), c1.reshape(n, c, hw),
                  c2.reshape(n, c, hw), bn_all)
    return out.reshape(t_steps, b, c, h, w)


# --------------------------------------------------------------------------
if __name__ == "__main__":
    T, B, C, H, W = 2, 2, 32, 16, 16
    NUM_BLOCKS = 4  # FL_blocks; dim % FL_blocks == 0 -> block_size = 8

    key = jax.random.PRNGKey(0)
    kx, kp = jax.random.split(key)
    x = 2.5 * jax.random.normal(kx, (T, B, C, H, W), jnp.float32)
    params = init_params(kp, C, NUM_BLOCKS, H)

    fwd = jax.jit(fatm_forward)
    out = jax.block_until_ready(fwd(x, params))

    assert out.shape == (T, B, C, H, W)
    assert bool(jnp.all(jnp.isfinite(out)))
    print("KERNEL_OK")
</pallas_src>

<mosaic_0001>
module attributes {stable_mosaic.version = 11 : i64} {
  func.func @_front_kernel(%arg0: i32, %arg1: i32, %arg2: memref<1x1x32x256xf32, #tpu.memory_space<vmem>>, %arg3: memref<256x256xf32, #tpu.memory_space<vmem>>, %arg4: memref<32x32xf32, #tpu.memory_space<vmem>>, %arg5: memref<32x288xf32, #tpu.memory_space<vmem>>, %arg6: memref<9x256xf32, #tpu.memory_space<vmem>>, %arg7: memref<1x1x32x256xbf16, #tpu.memory_space<vmem>>, %arg8: memref<1x1x32x256xf32, #tpu.memory_space<vmem>>, %arg9: memref<1x1x32x256xf32, #tpu.memory_space<vmem>>, %arg10: memref<1x2x32xf32, #tpu.memory_space<vmem>>, %arg11: memref<1x2x32xf32, #tpu.memory_space<vmem>>, %arg12: memref<1x2x32xf32, #tpu.memory_space<vmem>>, %arg13: memref<1x32x256xf32, #tpu.memory_space<vmem>>, %arg14: memref<32x256xf32, #tpu.memory_space<vmem>>, %arg15: memref<288x256xf32, #tpu.memory_space<vmem>>) attributes {dimension_semantics = [#tpu.dimension_semantics<parallel>, #tpu.dimension_semantics<arbitrary>], iteration_bounds = array<i64: 2, 2>, scalar_prefetch = 0 : i64, scratch_operands = 3 : i64, tpu.core_type = #tpu.core_type<tc>, window_params = [{transform_indices = @transform_0, window_bounds = array<i64: 1, 1, 32, 256>}, {pipeline_mode = #tpu.pipeline_mode<synchronous>, transform_indices = @transform_1, window_bounds = array<i64: 256, 256>}, {pipeline_mode = #tpu.pipeline_mode<synchronous>, transform_indices = @transform_2, window_bounds = array<i64: 32, 32>}, {pipeline_mode = #tpu.pipeline_mode<synchronous>, transform_indices = @transform_3, window_bounds = array<i64: 32, 288>}, {pipeline_mode = #tpu.pipeline_mode<synchronous>, transform_indices = @transform_4, window_bounds = array<i64: 9, 256>}, {transform_indices = @transform_5, window_bounds = array<i64: 1, 1, 32, 256>}, {transform_indices = @transform_6, window_bounds = array<i64: 1, 1, 32, 256>}, {transform_indices = @transform_7, window_bounds = array<i64: 1, 1, 32, 256>}, {transform_indices = @transform_8, window_bounds = array<i64: 1, 2, 32>}, {transform_indices = @transform_9, window_bounds = array<i64: 1, 2, 32>}, {transform_indices = @transform_10, window_bounds = array<i64: 1, 2, 32>}]} {
    %c0_i32 = arith.constant 0 : i32
    %0 = arith.cmpi eq, %arg1, %c0_i32 : i32
    %1 = arith.extui %0 : i1 to i32
    %c0_i32_0 = arith.constant 0 : i32
    %2 = arith.cmpi ne, %1, %c0_i32_0 : i32
    scf.if %2 {
      %cst_120 = arith.constant 0.000000e+00 : f32
      %147 = vector.broadcast %cst_120 : f32 to vector<1x32x256xf32>
      %c0_121 = arith.constant 0 : index
      %c0_122 = arith.constant 0 : index
      %c0_123 = arith.constant 0 : index
      %148 = vector.load %arg13[%c0_121, %c0_122, %c0_123] : memref<1x32x256xf32, #tpu.memory_space<vmem>>, vector<1x32x256xf32>
      tpu.vector_store %arg13[%c0_121, %c0_122, %c0_123], %147 {strides = array<i32>} : memref<1x32x256xf32, #tpu.memory_space<vmem>>, vector<1x32x256xf32>,
      %cst_124 = arith.constant 0.000000e+00 : f32
      %149 = vector.broadcast %cst_124 : f32 to vector<32x256xf32>
      %c0_125 = arith.constant 0 : index
      %c0_126 = arith.constant 0 : index
      %150 = vector.load %arg14[%c0_125, %c0_126] : memref<32x256xf32, #tpu.memory_space<vmem>>, vector<32x256xf32>
      tpu.vector_store %arg14[%c0_125, %c0_126], %149 {strides = array<i32>} : memref<32x256xf32, #tpu.memory_space<vmem>>, vector<32x256xf32>,
      %cst_127 = arith.constant 0.000000e+00 : f32
      %151 = vector.broadcast %cst_127 : f32 to vector<1x2x32xf32>
      %c0_128 = arith.constant 0 : index
      %c0_129 = arith.constant 0 : index
      %c0_130 = arith.constant 0 : index
      %152 = vector.load %arg10[%c0_128, %c0_129, %c0_130] : memref<1x2x32xf32, #tpu.memory_space<vmem>>, vector<1x2x32xf32>
      tpu.vector_store %arg10[%c0_128, %c0_129, %c0_130], %151 {strides = array<i32>} : memref<1x2x32xf32, #tpu.memory_space<vmem>>, vector<1x2x32xf32>,
      %cst_131 = arith.constant 0.000000e+00 : f32
      %153 = vector.broadcast %cst_131 : f32 to vector<1x2x32xf32>
      %c0_132 = arith.constant 0 : index
      %c0_133 = arith.constant 0 : index
      %c0_134 = arith.constant 0 : index
      %154 = vector.load %arg11[%c0_132, %c0_133, %c0_134] : memref<1x2x32xf32, #tpu.memory_space<vmem>>, vector<1x2x32xf32>
      tpu.vector_store %arg11[%c0_132, %c0_133, %c0_134], %153 {strides = array<i32>} : memref<1x2x32xf32, #tpu.memory_space<vmem>>, vector<1x2x32xf32>,
      %cst_135 = arith.constant 0.000000e+00 : f32
      %155 = vector.broadcast %cst_135 : f32 to vector<1x2x32xf32>
      %c0_136 = arith.constant 0 : index
      %c0_137 = arith.constant 0 : index
      %c0_138 = arith.constant 0 : index
      %156 = vector.load %arg12[%c0_136, %c0_137, %c0_138] : memref<1x2x32xf32, #tpu.memory_space<vmem>>, vector<1x2x32xf32>
      tpu.vector_store %arg12[%c0_136, %c0_137, %c0_138], %155 {strides = array<i32>} : memref<1x2x32xf32, #tpu.memory_space<vmem>>, vector<1x2x32xf32>,
    } else {
    }
    %c0 = arith.constant 0 : index
    %c0_1 = arith.constant 0 : index
    %c0_2 = arith.constant 0 : index
    %c0_3 = arith.constant 0 : index
    %3 = vector.load %arg2[%c0, %c0_1, %c0_2, %c0_3] : memref<1x1x32x256xf32, #tpu.memory_space<vmem>>, vector<1x1x32x256xf32>
    %4 = vector.shape_cast %3 : vector<1x1x32x256xf32> to vector<1x32x256xf32>
    %c0_4 = arith.constant 0 : index
    %c0_5 = arith.constant 0 : index
    %c0_6 = arith.constant 0 : index
    %5 = vector.load %arg13[%c0_4, %c0_5, %c0_6] : memref<1x32x256xf32, #tpu.memory_space<vmem>>, vector<1x32x256xf32>
    %c0_7 = arith.constant 0 : index
    %c0_8 = arith.constant 0 : index
    %c0_9 = arith.constant 0 : index
    %6 = vector.load %arg13[%c0_7, %c0_8, %c0_9] : memref<1x32x256xf32, #tpu.memory_space<vmem>>, vector<1x32x256xf32>
    %7 = arith.subf %4, %6 : vector<1x32x256xf32>
    %cst = arith.constant 5.000000e-01 : f32
    %8 = vector.broadcast %cst : f32 to vector<1x32x256xf32>
    %9 = arith.mulf %7, %8 : vector<1x32x256xf32>
    %10 = arith.addf %5, %9 : vector<1x32x256xf32>
    %cst_10 = arith.constant 1.000000e+00 : f32
    %11 = vector.broadcast %cst_10 : f32 to vector<1x32x256xf32>
    %12 = arith.cmpf oge, %10, %11 : vector<1x32x256xf32>
    %cst_11 = arith.constant 0.000000e+00 : f32
    %13 = vector.broadcast %cst_11 : f32 to vector<1x32x256xf32>
    %14 = arith.select %12, %13, %10 : vector<1x32x256xi1>, vector<1x32x256xf32>
    %c0_12 = arith.constant 0 : index
    %c0_13 = arith.constant 0 : index
    %c0_14 = arith.constant 0 : index
    %15 = vector.load %arg13[%c0_12, %c0_13, %c0_14] : memref<1x32x256xf32, #tpu.memory_space<vmem>>, vector<1x32x256xf32>
    tpu.vector_store %arg13[%c0_12, %c0_13, %c0_14], %14 {strides = array<i32>} : memref<1x32x256xf32, #tpu.memory_space<vmem>>, vector<1x32x256xf32>,
    %cst_15 = arith.constant 1.000000e+00 : f32
    %cst_16 = arith.constant 0.000000e+00 : f32
    %16 = vector.broadcast %cst_15 : f32 to vector<1x32x256xf32>
    %17 = vector.broadcast %cst_16 : f32 to vector<1x32x256xf32>
    %18 = arith.select %12, %16, %17 : vector<1x32x256xi1>, vector<1x32x256xf32>
    %19 = vector.shape_cast %18 : vector<1x32x256xf32> to vector<32x256xf32>
    %c0_17 = arith.constant 0 : index
    %c0_18 = arith.constant 0 : index
    %20 = vector.load %arg3[%c0_17, %c0_18] : memref<256x256xf32, #tpu.memory_space<vmem>>, vector<256x256xf32>
    %cst_19 = arith.constant dense<0.000000e+00> : vector<32x256xf32>
    %21 = tpu.matmul %19, %20, %cst_19 {dimension_numbers = #tpu.dot_dimension_numbers<[1], [0], [0], [1], [0, 0, 1, 1], [], []>} : vector<32x256xf32>, vector<256x256xf32>, vector<32x256xf32> -> vector<32x256xf32>
    %c0_20 = arith.constant 0 : index
    %c0_21 = arith.constant 0 : index
    %22 = vector.load %arg14[%c0_20, %c0_21] : memref<32x256xf32, #tpu.memory_space<vmem>>, vector<32x256xf32>
    %23 = arith.addf %22, %21 : vector<32x256xf32>
    %cst_22 = arith.constant 1.000000e+00 : f32
    %24 = vector.broadcast %cst_22 : f32 to vector<32x256xf32>
    %25 = arith.cmpf oge, %23, %24 : vector<32x256xf32>
    %cst_23 = arith.constant -1.000000e+00 : f32
    %26 = vector.broadcast %cst_23 : f32 to vector<32x256xf32>
    %27 = arith.cmpf ole, %23, %26 : vector<32x256xf32>
    %28 = arith.ori %25, %27 : vector<32x256xi1>
    %cst_24 = arith.constant 0.000000e+00 : f32
    %29 = vector.broadcast %cst_24 : f32 to vector<32x256xf32>
    %30 = arith.select %28, %29, %23 : vector<32x256xi1>, vector<32x256xf32>
    %c0_25 = arith.constant 0 : index
    %c0_26 = arith.constant 0 : index
    %31 = vector.load %arg14[%c0_25, %c0_26] : memref<32x256xf32, #tpu.memory_space<vmem>>, vector<32x256xf32>
    tpu.vector_store %arg14[%c0_25, %c0_26], %30 {strides = array<i32>} : memref<32x256xf32, #tpu.memory_space<vmem>>, vector<32x256xf32>,
    %cst_27 = arith.constant -1.000000e+00 : f32
    %cst_28 = arith.constant 0.000000e+00 : f32
    %32 = vector.broadcast %cst_27 : f32 to vector<32x256xf32>
    %33 = vector.broadcast %cst_28 : f32 to vector<32x256xf32>
    %34 = arith.select %27, %32, %33 : vector<32x256xi1>, vector<32x256xf32>
    %cst_29 = arith.constant 1.000000e+00 : f32
    %35 = vector.broadcast %cst_29 : f32 to vector<32x256xf32>
    %36 = arith.select %25, %35, %34 : vector<32x256xi1>, vector<32x256xf32>
    %37 = vector.shape_cast %36 : vector<32x256xf32> to vector<1x32x256xf32>
    %38 = arith.truncf %37 : vector<1x32x256xf32> to vector<1x32x256xbf16>
    %c0_30 = arith.constant 0 : index
    %c0_31 = arith.constant 0 : index
    %c0_32 = arith.constant 0 : index
    %c0_33 = arith.constant 0 : index
    %39 = vector.load %arg7[%c0_30, %c0_31, %c0_32, %c0_33] : memref<1x1x32x256xbf16, #tpu.memory_space<vmem>>, vector<1x1x32x256xbf16>
    %40 = vector.shape_cast %39 : vector<1x1x32x256xbf16> to vector<1x32x256xbf16>
    %41 = vector.shape_cast %38 : vector<1x32x256xbf16> to vector<1x1x32x256xbf16>
    tpu.vector_store %arg7[%c0_30, %c0_31, %c0_32, %c0_33], %41 {strides = array<i32>} : memref<1x1x32x256xbf16, #tpu.memory_space<vmem>>, vector<1x1x32x256xbf16>,
    %c0_34 = arith.constant 0 : index
    %c0_35 = arith.constant 0 : index
    %c0_36 = arith.constant 0 : index
    %42 = vector.load %arg10[%c0_34, %c0_35, %c0_36] : memref<1x2x32xf32, #tpu.memory_space<vmem>>, vector<1x1x32xf32>
    %43 = vector.shape_cast %42 : vector<1x1x32xf32> to vector<1x32xf32>
    %cst_37 = arith.constant dense<0.000000e+00> : vector<1x32xf32>
    %44 = vector.multi_reduction <add>, %37, %cst_37 [2] : vector<1x32x256xf32> to vector<1x32xf32>
    %45 = arith.addf %43, %44 : vector<1x32xf32>
    %c0_38 = arith.constant 0 : index
    %c0_39 = arith.constant 0 : index
    %c0_40 = arith.constant 0 : index
    %46 = vector.load %arg10[%c0_38, %c0_39, %c0_40] : memref<1x2x32xf32, #tpu.memory_space<vmem>>, vector<1x1x32xf32>
    %47 = vector.shape_cast %46 : vector<1x1x32xf32> to vector<1x32xf32>
    %48 = vector.shape_cast %45 : vector<1x32xf32> to vector<1x1x32xf32>
    tpu.vector_store %arg10[%c0_38, %c0_39, %c0_40], %48 {strides = array<i32>} : memref<1x2x32xf32, #tpu.memory_space<vmem>>, vector<1x1x32xf32>,
    %c0_41 = arith.constant 0 : index
    %c1 = arith.constant 1 : index
    %c0_42 = arith.constant 0 : index
    %49 = vector.load %arg10[%c0_41, %c1, %c0_42] : memref<1x2x32xf32, #tpu.memory_space<vmem>>, vector<1x1x32xf32>
    %50 = vector.shape_cast %49 : vector<1x1x32xf32> to vector<1x32xf32>
    %51 = arith.mulf %37, %37 : vector<1x32x256xf32>
    %cst_43 = arith.constant dense<0.000000e+00> : vector<1x32xf32>
    %52 = vector.multi_reduction <add>, %51, %cst_43 [2] : vector<1x32x256xf32> to vector<1x32xf32>
    %53 = arith.addf %50, %52 : vector<1x32xf32>
    %c0_44 = arith.constant 0 : index
    %c1_45 = arith.constant 1 : index
    %c0_46 = arith.constant 0 : index
    %54 = vector.load %arg10[%c0_44, %c1_45, %c0_46] : memref<1x2x32xf32, #tpu.memory_space<vmem>>, vector<1x1x32xf32>
    %55 = vector.shape_cast %54 : vector<1x1x32xf32> to vector<1x32xf32>
    %56 = vector.shape_cast %53 : vector<1x32xf32> to vector<1x1x32xf32>
    tpu.vector_store %arg10[%c0_44, %c1_45, %c0_46], %56 {strides = array<i32>} : memref<1x2x32xf32, #tpu.memory_space<vmem>>, vector<1x1x32xf32>,
    %57 = vector.shape_cast %18 : vector<1x32x256xf32> to vector<32x256xf32>
    %c0_47 = arith.constant 0 : index
    %c0_48 = arith.constant 0 : index
    %58 = vector.load %arg4[%c0_47, %c0_48] : memref<32x32xf32, #tpu.memory_space<vmem>>, vector<32x32xf32>
    %cst_49 = arith.constant dense<0.000000e+00> : vector<32x256xf32>
    %59 = tpu.matmul %58, %57, %cst_49 {dimension_numbers = #tpu.dot_dimension_numbers<[1], [0], [0], [1], [0, 0, 1, 1], [], []>} : vector<32x32xf32>, vector<32x256xf32>, vector<32x256xf32> -> vector<32x256xf32>
    %c0_50 = arith.constant 0 : index
    %c0_51 = arith.constant 0 : index
    %c0_52 = arith.constant 0 : index
    %c0_53 = arith.constant 0 : index
    %60 = vector.load %arg8[%c0_50, %c0_51, %c0_52, %c0_53] : memref<1x1x32x256xf32, #tpu.memory_space<vmem>>, vector<1x1x32x256xf32>
    %61 = vector.shape_cast %60 : vector<1x1x32x256xf32> to vector<32x256xf32>
    %62 = vector.shape_cast %59 : vector<32x256xf32> to vector<1x1x32x256xf32>
    tpu.vector_store %arg8[%c0_50, %c0_51, %c0_52, %c0_53], %62 {strides = array<i32>} : memref<1x1x32x256xf32, #tpu.memory_space<vmem>>, vector<1x1x32x256xf32>,
    %c17_i32 = arith.constant 17 : i32
    %63 = tpu.dynamic_rotate %57 by %c17_i32 dim 1 : vector<32x256xf32>, i32 -> vector<32x256xf32>
    %c0_54 = arith.constant 0 : index
    %c0_55 = arith.constant 0 : index
    %64 = vector.load %arg6[%c0_54, %c0_55] : memref<9x256xf32, #tpu.memory_space<vmem>>, vector<1x256xf32>
    %65 = vector.broadcast %64 : vector<1x256xf32> to vector<32x256xf32>
    %66 = arith.mulf %63, %65 : vector<32x256xf32>
    %c0_56 = arith.constant 0 : index
    %c0_57 = arith.constant 0 : index
    %67 = vector.load %arg15[%c0_56, %c0_57] : memref<288x256xf32, #tpu.memory_space<vmem>>, vector<32x256xf32>
    tpu.vector_store %arg15[%c0_56, %c0_57], %66 {strides = array<i32>} : memref<288x256xf32, #tpu.memory_space<vmem>>, vector<32x256xf32>,
    %c16_i32 = arith.constant 16 : i32
    %68 = tpu.dynamic_rotate %57 by %c16_i32 dim 1 : vector<32x256xf32>, i32 -> vector<32x256xf32>
    %c1_58 = arith.constant 1 : index
    %c0_59 = arith.constant 0 : index
    %69 = vector.load %arg6[%c1_58, %c0_59] : memref<9x256xf32, #tpu.memory_space<vmem>>, vector<1x256xf32>
    %70 = vector.broadcast %69 : vector<1x256xf32> to vector<32x256xf32>
    %71 = arith.mulf %68, %70 : vector<32x256xf32>
    %c32 = arith.constant 32 : index
    %c0_60 = arith.constant 0 : index
    %72 = vector.load %arg15[%c32, %c0_60] : memref<288x256xf32, #tpu.memory_space<vmem>>, vector<32x256xf32>
    tpu.vector_store %arg15[%c32, %c0_60], %71 {strides = array<i32>} : memref<288x256xf32, #tpu.memory_space<vmem>>, vector<32x256xf32>,
    %c15_i32 = arith.constant 15 : i32
    %73 = tpu.dynamic_rotate %57 by %c15_i32 dim 1 : vector<32x256xf32>, i32 -> vector<32x256xf32>
    %c2 = arith.constant 2 : index
    %c0_61 = arith.constant 0 : index
    %74 = vector.load %arg6[%c2, %c0_61] : memref<9x256xf32, #tpu.memory_space<vmem>>, vector<1x256xf32>
    %75 = vector.broadcast %74 : vector<1x256xf32> to vector<32x256xf32>
    %76 = arith.mulf %73, %75 : vector<32x256xf32>
    %c64 = arith.constant 64 : index
    %c0_62 = arith.constant 0 : index
    %77 = vector.load %arg15[%c64, %c0_62] : memref<288x256xf32, #tpu.memory_space<vmem>>, vector<32x256xf32>
    tpu.vector_store %arg15[%c64, %c0_62], %76 {strides = array<i32>} : memref<288x256xf32, #tpu.memory_space<vmem>>, vector<32x256xf32>,
    %c1_i32 = arith.constant 1 : i32
    %78 = tpu.dynamic_rotate %57 by %c1_i32 dim 1 : vector<32x256xf32>, i32 -> vector<32x256xf32>
    %c3 = arith.constant 3 : index
    %c0_63 = arith.constant 0 : index
    %79 = vector.load %arg6[%c3, %c0_63] : memref<9x256xf32, #tpu.memory_space<vmem>>, vector<1x256xf32>
    %80 = vector.broadcast %79 : vector<1x256xf32> to vector<32x256xf32>
    %81 = arith.mulf %78, %80 : vector<32x256xf32>
    %c96 = arith.constant 96 : index
    %c0_64 = arith.constant 0 : index
    %82 = vector.load %arg15[%c96, %c0_64] : memref<288x256xf32, #tpu.memory_space<vmem>>, vector<32x256xf32>
    tpu.vector_store %arg15[%c96, %c0_64], %81 {strides = array<i32>} : memref<288x256xf32, #tpu.memory_space<vmem>>, vector<32x256xf32>,
    %c4 = arith.constant 4 : index
    %c0_65 = arith.constant 0 : index
    %83 = vector.load %arg6[%c4, %c0_65] : memref<9x256xf32, #tpu.memory_space<vmem>>, vector<1x256xf32>
    %84 = vector.broadcast %83 : vector<1x256xf32> to vector<32x256xf32>
    %85 = arith.mulf %57, %84 : vector<32x256xf32>
    %c128 = arith.constant 128 : index
    %c0_66 = arith.constant 0 : index
    %86 = vector.load %arg15[%c128, %c0_66] : memref<288x256xf32, #tpu.memory_space<vmem>>, vector<32x256xf32>
    tpu.vector_store %arg15[%c128, %c0_66], %85 {strides = array<i32>} : memref<288x256xf32, #tpu.memory_space<vmem>>, vector<32x256xf32>,
    %c255_i32 = arith.constant 255 : i32
    %87 = tpu.dynamic_rotate %57 by %c255_i32 dim 1 : vector<32x256xf32>, i32 -> vector<32x256xf32>
    %c5 = arith.constant 5 : index
    %c0_67 = arith.constant 0 : index
    %88 = vector.load %arg6[%c5, %c0_67] : memref<9x256xf32, #tpu.memory_space<vmem>>, vector<1x256xf32>
    %89 = vector.broadcast %88 : vector<1x256xf32> to vector<32x256xf32>
    %90 = arith.mulf %87, %89 : vector<32x256xf32>
    %c160 = arith.constant 160 : index
    %c0_68 = arith.constant 0 : index
    %91 = vector.load %arg15[%c160, %c0_68] : memref<288x256xf32, #tpu.memory_space<vmem>>, vector<32x256xf32>
    tpu.vector_store %arg15[%c160, %c0_68], %90 {strides = array<i32>} : memref<288x256xf32, #tpu.memory_space<vmem>>, vector<32x256xf32>,
    %c241_i32 = arith.constant 241 : i32
    %92 = tpu.dynamic_rotate %57 by %c241_i32 dim 1 : vector<32x256xf32>, i32 -> vector<32x256xf32>
    %c6 = arith.constant 6 : index
    %c0_69 = arith.constant 0 : index
    %93 = vector.load %arg6[%c6, %c0_69] : memref<9x256xf32, #tpu.memory_space<vmem>>, vector<1x256xf32>
    %94 = vector.broadcast %93 : vector<1x256xf32> to vector<32x256xf32>
    %95 = arith.mulf %92, %94 : vector<32x256xf32>
    %c192 = arith.constant 192 : index
    %c0_70 = arith.constant 0 : index
    %96 = vector.load %arg15[%c192, %c0_70] : memref<288x256xf32, #tpu.memory_space<vmem>>, vector<32x256xf32>
    tpu.vector_store %arg15[%c192, %c0_70], %95 {strides = array<i32>} : memref<288x256xf32, #tpu.memory_space<vmem>>, vector<32x256xf32>,
    %c240_i32 = arith.constant 240 : i32
    %97 = tpu.dynamic_rotate %57 by %c240_i32 dim 1 : vector<32x256xf32>, i32 -> vector<32x256xf32>
    %c7 = arith.constant 7 : index
    %c0_71 = arith.constant 0 : index
    %98 = vector.load %arg6[%c7, %c0_71] : memref<9x256xf32, #tpu.memory_space<vmem>>, vector<1x256xf32>
    %99 = vector.broadcast %98 : vector<1x256xf32> to vector<32x256xf32>
    %100 = arith.mulf %97, %99 : vector<32x256xf32>
    %c224 = arith.constant 224 : index
    %c0_72 = arith.constant 0 : index
    %101 = vector.load %arg15[%c224, %c0_72] : memref<288x256xf32, #tpu.memory_space<vmem>>, vector<32x256xf32>
    tpu.vector_store %arg15[%c224, %c0_72], %100 {strides = array<i32>} : memref<288x256xf32, #tpu.memory_space<vmem>>, vector<32x256xf32>,
    %c239_i32 = arith.constant 239 : i32
    %102 = tpu.dynamic_rotate %57 by %c239_i32 dim 1 : vector<32x256xf32>, i32 -> vector<32x256xf32>
    %c8 = arith.constant 8 : index
    %c0_73 = arith.constant 0 : index
    %103 = vector.load %arg6[%c8, %c0_73] : memref<9x256xf32, #tpu.memory_space<vmem>>, vector<1x256xf32>
    %104 = vector.broadcast %103 : vector<1x256xf32> to vector<32x256xf32>
    %105 = arith.mulf %102, %104 : vector<32x256xf32>
    %c256 = arith.constant 256 : index
    %c0_74 = arith.constant 0 : index
    %106 = vector.load %arg15[%c256, %c0_74] : memref<288x256xf32, #tpu.memory_space<vmem>>, vector<32x256xf32>
    tpu.vector_store %arg15[%c256, %c0_74], %105 {strides = array<i32>} : memref<288x256xf32, #tpu.memory_space<vmem>>, vector<32x256xf32>,
    %c0_75 = arith.constant 0 : index
    %c0_76 = arith.constant 0 : index
    %107 = vector.load %arg5[%c0_75, %c0_76] : memref<32x288xf32, #tpu.memory_space<vmem>>, vector<32x288xf32>
    %c0_77 = arith.constant 0 : index
    %c0_78 = arith.constant 0 : index
    %108 = vector.load %arg15[%c0_77, %c0_78] : memref<288x256xf32, #tpu.memory_space<vmem>>, vector<288x256xf32>
    %cst_79 = arith.constant dense<0.000000e+00> : vector<32x256xf32>
    %109 = tpu.matmul %107, %108, %cst_79 {dimension_numbers = #tpu.dot_dimension_numbers<[1], [0], [0], [1], [0, 0, 1, 1], [], []>} : vector<32x288xf32>, vector<288x256xf32>, vector<32x256xf32> -> vector<32x256xf32>
    %c0_80 = arith.constant 0 : index
    %c0_81 = arith.constant 0 : index
    %c0_82 = arith.constant 0 : index
    %c0_83 = arith.constant 0 : index
    %110 = vector.load %arg9[%c0_80, %c0_81, %c0_82, %c0_83] : memref<1x1x32x256xf32, #tpu.memory_space<vmem>>, vector<1x1x32x256xf32>
    %111 = vector.shape_cast %110 : vector<1x1x32x256xf32> to vector<32x256xf32>
    %112 = vector.shape_cast %109 : vector<32x256xf32> to vector<1x1x32x256xf32>
    tpu.vector_store %arg9[%c0_80, %c0_81, %c0_82, %c0_83], %112 {strides = array<i32>} : memref<1x1x32x256xf32, #tpu.memory_space<vmem>>, vector<1x1x32x256xf32>,
    %c0_84 = arith.constant 0 : index
    %c0_85 = arith.constant 0 : index
    %c0_86 = arith.constant 0 : index
    %c0_87 = arith.constant 0 : index
    %113 = vector.load %arg8[%c0_84, %c0_85, %c0_86, %c0_87] : memref<1x1x32x256xf32, #tpu.memory_space<vmem>>, vector<1x1x32x256xf32>
    %114 = vector.shape_cast %113 : vector<1x1x32x256xf32> to vector<1x32x256xf32>
    %c0_88 = arith.constant 0 : index
    %c0_89 = arith.constant 0 : index
    %c0_90 = arith.constant 0 : index
    %c0_91 = arith.constant 0 : index
    %115 = vector.load %arg9[%c0_88, %c0_89, %c0_90, %c0_91] : memref<1x1x32x256xf32, #tpu.memory_space<vmem>>, vector<1x1x32x256xf32>
    %116 = vector.shape_cast %115 : vector<1x1x32x256xf32> to vector<1x32x256xf32>
    %c0_92 = arith.constant 0 : index
    %c0_93 = arith.constant 0 : index
    %c0_94 = arith.constant 0 : index
    %117 = vector.load %arg11[%c0_92, %c0_93, %c0_94] : memref<1x2x32xf32, #tpu.memory_space<vmem>>, vector<1x1x32xf32>
    %118 = vector.shape_cast %117 : vector<1x1x32xf32> to vector<1x32xf32>
    %cst_95 = arith.constant dense<0.000000e+00> : vector<1x32xf32>
    %119 = vector.multi_reduction <add>, %114, %cst_95 [2] : vector<1x32x256xf32> to vector<1x32xf32>
    %120 = arith.addf %118, %119 : vector<1x32xf32>
    %c0_96 = arith.constant 0 : index
    %c0_97 = arith.constant 0 : index
    %c0_98 = arith.constant 0 : index
    %121 = vector.load %arg11[%c0_96, %c0_97, %c0_98] : memref<1x2x32xf32, #tpu.memory_space<vmem>>, vector<1x1x32xf32>
    %122 = vector.shape_cast %121 : vector<1x1x32xf32> to vector<1x32xf32>
    %123 = vector.shape_cast %120 : vector<1x32xf32> to vector<1x1x32xf32>
    tpu.vector_store %arg11[%c0_96, %c0_97, %c0_98], %123 {strides = array<i32>} : memref<1x2x32xf32, #tpu.memory_space<vmem>>, vector<1x1x32xf32>,
    %c0_99 = arith.constant 0 : index
    %c1_100 = arith.constant 1 : index
    %c0_101 = arith.constant 0 : index
    %124 = vector.load %arg11[%c0_99, %c1_100, %c0_101] : memref<1x2x32xf32, #tpu.memory_space<vmem>>, vector<1x1x32xf32>
    %125 = vector.shape_cast %124 : vector<1x1x32xf32> to vector<1x32xf32>
    %126 = arith.mulf %114, %114 : vector<1x32x256xf32>
    %cst_102 = arith.constant dense<0.000000e+00> : vector<1x32xf32>
    %127 = vector.multi_reduction <add>, %126, %cst_102 [2] : vector<1x32x256xf32> to vector<1x32xf32>
    %128 = arith.addf %125, %127 : vector<1x32xf32>
    %c0_103 = arith.constant 0 : index
    %c1_104 = arith.constant 1 : index
    %c0_105 = arith.constant 0 : index
    %129 = vector.load %arg11[%c0_103, %c1_104, %c0_105] : memref<1x2x32xf32, #tpu.memory_space<vmem>>, vector<1x1x32xf32>
    %130 = vector.shape_cast %129 : vector<1x1x32xf32> to vector<1x32xf32>
    %131 = vector.shape_cast %128 : vector<1x32xf32> to vector<1x1x32xf32>
    tpu.vector_store %arg11[%c0_103, %c1_104, %c0_105], %131 {strides = array<i32>} : memref<1x2x32xf32, #tpu.memory_space<vmem>>, vector<1x1x32xf32>,
    %c0_106 = arith.constant 0 : index
    %c0_107 = arith.constant 0 : index
    %c0_108 = arith.constant 0 : index
    %132 = vector.load %arg12[%c0_106, %c0_107, %c0_108] : memref<1x2x32xf32, #tpu.memory_space<vmem>>, vector<1x1x32xf32>
    %133 = vector.shape_cast %132 : vector<1x1x32xf32> to vector<1x32xf32>
    %cst_109 = arith.constant dense<0.000000e+00> : vector<1x32xf32>
    %134 = vector.multi_reduction <add>, %116, %cst_109 [2] : vector<1x32x256xf32> to vector<1x32xf32>
    %135 = arith.addf %133, %134 : vector<1x32xf32>
    %c0_110 = arith.constant 0 : index
    %c0_111 = arith.constant 0 : index
    %c0_112 = arith.constant 0 : index
    %136 = vector.load %arg12[%c0_110, %c0_111, %c0_112] : memref<1x2x32xf32, #tpu.memory_space<vmem>>, vector<1x1x32xf32>
    %137 = vector.shape_cast %136 : vector<1x1x32xf32> to vector<1x32xf32>
    %138 = vector.shape_cast %135 : vector<1x32xf32> to vector<1x1x32xf32>
    tpu.vector_store %arg12[%c0_110, %c0_111, %c0_112], %138 {strides = array<i32>} : memref<1x2x32xf32, #tpu.memory_space<vmem>>, vector<1x1x32xf32>,
    %c0_113 = arith.constant 0 : index
    %c1_114 = arith.constant 1 : index
    %c0_115 = arith.constant 0 : index
    %139 = vector.load %arg12[%c0_113, %c1_114, %c0_115] : memref<1x2x32xf32, #tpu.memory_space<vmem>>, vector<1x1x32xf32>
    %140 = vector.shape_cast %139 : vector<1x1x32xf32> to vector<1x32xf32>
    %141 = arith.mulf %116, %116 : vector<1x32x256xf32>
    %cst_116 = arith.constant dense<0.000000e+00> : vector<1x32xf32>
    %142 = vector.multi_reduction <add>, %141, %cst_116 [2] : vector<1x32x256xf32> to vector<1x32xf32>
    %143 = arith.addf %140, %142 : vector<1x32xf32>
    %c0_117 = arith.constant 0 : index
    %c1_118 = arith.constant 1 : index
    %c0_119 = arith.constant 0 : index
    %144 = vector.load %arg12[%c0_117, %c1_118, %c0_119] : memref<1x2x32xf32, #tpu.memory_space<vmem>>, vector<1x1x32xf32>
    %145 = vector.shape_cast %144 : vector<1x1x32xf32> to vector<1x32xf32>
    %146 = vector.shape_cast %143 : vector<1x32xf32> to vector<1x1x32xf32>
    tpu.vector_store %arg12[%c0_117, %c1_118, %c0_119], %146 {strides = array<i32>} : memref<1x2x32xf32, #tpu.memory_space<vmem>>, vector<1x1x32xf32>,
    return
  }
  func.func @transform_0(%arg0: i32, %arg1: i32) -> (i32, i32, i32, i32) {
    %c0_i32 = arith.constant 0 : i32
    %c0_i32_0 = arith.constant 0 : i32
    %c0_i32_1 = arith.constant 0 : i32
    return %arg1, %arg0, %c0_i32, %c0_i32_0 : i32, i32, i32, i32
  }
  func.func @transform_1(%arg0: i32, %arg1: i32) -> (i32, i32) {
    %c0_i32 = arith.constant 0 : i32
    %c0_i32_0 = arith.constant 0 : i32
    %c0_i32_1 = arith.constant 0 : i32
    return %c0_i32, %c0_i32_0 : i32, i32
  }
  func.func @transform_2(%arg0: i32, %arg1: i32) -> (i32, i32) {
    %c0_i32 = arith.constant 0 : i32
    %c0_i32_0 = arith.constant 0 : i32
    %c0_i32_1 = arith.constant 0 : i32
    return %c0_i32, %c0_i32_0 : i32, i32
  }
  func.func @transform_3(%arg0: i32, %arg1: i32) -> (i32, i32) {
    %c0_i32 = arith.constant 0 : i32
    %c0_i32_0 = arith.constant 0 : i32
    %c0_i32_1 = arith.constant 0 : i32
    return %c0_i32, %c0_i32_0 : i32, i32
  }
  func.func @transform_4(%arg0: i32, %arg1: i32) -> (i32, i32) {
    %c0_i32 = arith.constant 0 : i32
    %c0_i32_0 = arith.constant 0 : i32
    %c0_i32_1 = arith.constant 0 : i32
    return %c0_i32, %c0_i32_0 : i32, i32
  }
  func.func @transform_5(%arg0: i32, %arg1: i32) -> (i32, i32, i32, i32) {
    %c0_i32 = arith.constant 0 : i32
    %c0_i32_0 = arith.constant 0 : i32
    %c0_i32_1 = arith.constant 0 : i32
    return %arg1, %arg0, %c0_i32, %c0_i32_0 : i32, i32, i32, i32
  }
  func.func @transform_6(%arg0: i32, %arg1: i32) -> (i32, i32, i32, i32) {
    %c0_i32 = arith.constant 0 : i32
    %c0_i32_0 = arith.constant 0 : i32
    %c0_i32_1 = arith.constant 0 : i32
    return %arg1, %arg0, %c0_i32, %c0_i32_0 : i32, i32, i32, i32
  }
  func.func @transform_7(%arg0: i32, %arg1: i32) -> (i32, i32, i32, i32) {
    %c0_i32 = arith.constant 0 : i32
    %c0_i32_0 = arith.constant 0 : i32
    %c0_i32_1 = arith.constant 0 : i32
    return %arg1, %arg0, %c0_i32, %c0_i32_0 : i32, i32, i32, i32
  }
  func.func @transform_8(%arg0: i32, %arg1: i32) -> (i32, i32, i32) {
    %c0_i32 = arith.constant 0 : i32
    %c0_i32_0 = arith.constant 0 : i32
    %c0_i32_1 = arith.constant 0 : i32
    return %arg0, %c0_i32, %c0_i32_0 : i32, i32, i32
  }
  func.func @transform_9(%arg0: i32, %arg1: i32) -> (i32, i32, i32) {
    %c0_i32 = arith.constant 0 : i32
    %c0_i32_0 = arith.constant 0 : i32
    %c0_i32_1 = arith.constant 0 : i32
    return %arg0, %c0_i32, %c0_i32_0 : i32, i32, i32
  }
  func.func @transform_10(%arg0: i32, %arg1: i32) -> (i32, i32, i32) {
    %c0_i32 = arith.constant 0 : i32
    %c0_i32_0 = arith.constant 0 : i32
    %c0_i32_1 = arith.constant 0 : i32
    return %arg0, %c0_i32, %c0_i32_0 : i32, i32, i32
  }
}

module attributes {stable_mosaic.version = 11 : i64} {
  func.func @_mix_kernel(%arg0: i32, %arg1: i32, %arg2: memref<1x1x32x256xbf16, #tpu.memory_space<vmem>>, %arg3: memref<2x32x1xf32, #tpu.memory_space<vmem>>, %arg4: memref<32x32xf32, #tpu.memory_space<vmem>>, %arg5: memref<1x1x32x256xf32, #tpu.memory_space<vmem>>, %arg6: memref<1x2x32xf32, #tpu.memory_space<vmem>>, %arg7: memref<1x32x256xf32, #tpu.memory_space<vmem>>) attributes {dimension_semantics = [#tpu.dimension_semantics<parallel>, #tpu.dimension_semantics<arbitrary>], iteration_bounds = array<i64: 2, 2>, scalar_prefetch = 0 : i64, scratch_operands = 1 : i64, tpu.core_type = #tpu.core_type<tc>, window_params = [{transform_indices = @transform_0, window_bounds = array<i64: 1, 1, 32, 256>}, {pipeline_mode = #tpu.pipeline_mode<synchronous>, transform_indices = @transform_1, window_bounds = array<i64: 2, 32, 1>}, {pipeline_mode = #tpu.pipeline_mode<synchronous>, transform_indices = @transform_2, window_bounds = array<i64: 32, 32>}, {transform_indices = @transform_3, window_bounds = array<i64: 1, 1, 32, 256>}, {transform_indices = @transform_4, window_bounds = array<i64: 1, 2, 32>}]} {
    %c0_i32 = arith.constant 0 : i32
    %0 = arith.cmpi eq, %arg1, %c0_i32 : i32
    %1 = arith.extui %0 : i1 to i32
    %c0_i32_0 = arith.constant 0 : i32
    %2 = arith.cmpi ne, %1, %c0_i32_0 : i32
    scf.if %2 {
      %cst_47 = arith.constant 0.000000e+00 : f32
      %53 = vector.broadcast %cst_47 : f32 to vector<1x32x256xf32>
      %c0_48 = arith.constant 0 : index
      %c0_49 = arith.constant 0 : index
      %c0_50 = arith.constant 0 : index
      %54 = vector.load %arg7[%c0_48, %c0_49, %c0_50] : memref<1x32x256xf32, #tpu.memory_space<vmem>>, vector<1x32x256xf32>
      tpu.vector_store %arg7[%c0_48, %c0_49, %c0_50], %53 {strides = array<i32>} : memref<1x32x256xf32, #tpu.memory_space<vmem>>, vector<1x32x256xf32>,
      %cst_51 = arith.constant 0.000000e+00 : f32
      %55 = vector.broadcast %cst_51 : f32 to vector<1x2x32xf32>
      %c0_52 = arith.constant 0 : index
      %c0_53 = arith.constant 0 : index
      %c0_54 = arith.constant 0 : index
      %56 = vector.load %arg6[%c0_52, %c0_53, %c0_54] : memref<1x2x32xf32, #tpu.memory_space<vmem>>, vector<1x2x32xf32>
      tpu.vector_store %arg6[%c0_52, %c0_53, %c0_54], %55 {strides = array<i32>} : memref<1x2x32xf32, #tpu.memory_space<vmem>>, vector<1x2x32xf32>,
    } else {
    }
    %c0 = arith.constant 0 : index
    %c0_1 = arith.constant 0 : index
    %c0_2 = arith.constant 0 : index
    %c0_3 = arith.constant 0 : index
    %3 = vector.load %arg2[%c0, %c0_1, %c0_2, %c0_3] : memref<1x1x32x256xbf16, #tpu.memory_space<vmem>>, vector<1x1x32x256xbf16>
    %4 = vector.shape_cast %3 : vector<1x1x32x256xbf16> to vector<1x32x256xbf16>
    %5 = arith.extf %4 : vector<1x32x256xbf16> to vector<1x32x256xf32>
    %c0_4 = arith.constant 0 : index
    %c0_5 = arith.constant 0 : index
    %c0_6 = arith.constant 0 : index
    %6 = vector.load %arg3[%c0_4, %c0_5, %c0_6] : memref<2x32x1xf32, #tpu.memory_space<vmem>>, vector<1x32x1xf32>
    %7 = vector.shape_cast %6 : vector<1x32x1xf32> to vector<32x1xf32>
    %8 = vector.shape_cast %7 : vector<32x1xf32> to vector<1x32x1xf32>
    %9 = vector.broadcast %8 : vector<1x32x1xf32> to vector<1x32x256xf32>
    %10 = arith.mulf %5, %9 : vector<1x32x256xf32>
    %c1 = arith.constant 1 : index
    %c0_7 = arith.constant 0 : index
    %c0_8 = arith.constant 0 : index
    %11 = vector.load %arg3[%c1, %c0_7, %c0_8] : memref<2x32x1xf32, #tpu.memory_space<vmem>>, vector<1x32x1xf32>
    %12 = vector.shape_cast %11 : vector<1x32x1xf32> to vector<32x1xf32>
    %13 = vector.shape_cast %12 : vector<32x1xf32> to vector<1x32x1xf32>
    %14 = vector.broadcast %13 : vector<1x32x1xf32> to vector<1x32x256xf32>
    %15 = arith.addf %10, %14 : vector<1x32x256xf32>
    %c0_9 = arith.constant 0 : index
    %c0_10 = arith.constant 0 : index
    %c0_11 = arith.constant 0 : index
    %16 = vector.load %arg7[%c0_9, %c0_10, %c0_11] : memref<1x32x256xf32, #tpu.memory_space<vmem>>, vector<1x32x256xf32>
    %c0_12 = arith.constant 0 : index
    %c0_13 = arith.constant 0 : index
    %c0_14 = arith.constant 0 : index
    %17 = vector.load %arg7[%c0_12, %c0_13, %c0_14] : memref<1x32x256xf32, #tpu.memory_space<vmem>>, vector<1x32x256xf32>
    %18 = arith.subf %15, %17 : vector<1x32x256xf32>
    %cst = arith.constant 5.000000e-01 : f32
    %19 = vector.broadcast %cst : f32 to vector<1x32x256xf32>
    %20 = arith.mulf %18, %19 : vector<1x32x256xf32>
    %21 = arith.addf %16, %20 : vector<1x32x256xf32>
    %cst_15 = arith.constant 1.000000e+00 : f32
    %22 = vector.broadcast %cst_15 : f32 to vector<1x32x256xf32>
    %23 = arith.cmpf oge, %21, %22 : vector<1x32x256xf32>
    %cst_16 = arith.constant 0.000000e+00 : f32
    %24 = vector.broadcast %cst_16 : f32 to vector<1x32x256xf32>
    %25 = arith.select %23, %24, %21 : vector<1x32x256xi1>, vector<1x32x256xf32>
    %c0_17 = arith.constant 0 : index
    %c0_18 = arith.constant 0 : index
    %c0_19 = arith.constant 0 : index
    %26 = vector.load %arg7[%c0_17, %c0_18, %c0_19] : memref<1x32x256xf32, #tpu.memory_space<vmem>>, vector<1x32x256xf32>
    tpu.vector_store %arg7[%c0_17, %c0_18, %c0_19], %25 {strides = array<i32>} : memref<1x32x256xf32, #tpu.memory_space<vmem>>, vector<1x32x256xf32>,
    %cst_20 = arith.constant 1.000000e+00 : f32
    %cst_21 = arith.constant 0.000000e+00 : f32
    %27 = vector.broadcast %cst_20 : f32 to vector<1x32x256xf32>
    %28 = vector.broadcast %cst_21 : f32 to vector<1x32x256xf32>
    %29 = arith.select %23, %27, %28 : vector<1x32x256xi1>, vector<1x32x256xf32>
    %c0_22 = arith.constant 0 : index
    %c0_23 = arith.constant 0 : index
    %30 = vector.load %arg4[%c0_22, %c0_23] : memref<32x32xf32, #tpu.memory_space<vmem>>, vector<32x32xf32>
    %31 = vector.shape_cast %29 : vector<1x32x256xf32> to vector<32x256xf32>
    %cst_24 = arith.constant dense<0.000000e+00> : vector<32x256xf32>
    %32 = tpu.matmul %30, %31, %cst_24 {dimension_numbers = #tpu.dot_dimension_numbers<[1], [0], [0], [1], [0, 0, 1, 1], [], []>} : vector<32x32xf32>, vector<32x256xf32>, vector<32x256xf32> -> vector<32x256xf32>
    %c0_25 = arith.constant 0 : index
    %c0_26 = arith.constant 0 : index
    %c0_27 = arith.constant 0 : index
    %c0_28 = arith.constant 0 : index
    %33 = vector.load %arg5[%c0_25, %c0_26, %c0_27, %c0_28] : memref<1x1x32x256xf32, #tpu.memory_space<vmem>>, vector<1x1x32x256xf32>
    %34 = vector.shape_cast %33 : vector<1x1x32x256xf32> to vector<32x256xf32>
    %35 = vector.shape_cast %32 : vector<32x256xf32> to vector<1x1x32x256xf32>
    tpu.vector_store %arg5[%c0_25, %c0_26, %c0_27, %c0_28], %35 {strides = array<i32>} : memref<1x1x32x256xf32, #tpu.memory_space<vmem>>, vector<1x1x32x256xf32>,
    %c0_29 = arith.constant 0 : index
    %c0_30 = arith.constant 0 : index
    %c0_31 = arith.constant 0 : index
    %c0_32 = arith.constant 0 : index
    %36 = vector.load %arg5[%c0_29, %c0_30, %c0_31, %c0_32] : memref<1x1x32x256xf32, #tpu.memory_space<vmem>>, vector<1x1x32x256xf32>
    %37 = vector.shape_cast %36 : vector<1x1x32x256xf32> to vector<1x32x256xf32>
    %c0_33 = arith.constant 0 : index
    %c0_34 = arith.constant 0 : index
    %c0_35 = arith.constant 0 : index
    %38 = vector.load %arg6[%c0_33, %c0_34, %c0_35] : memref<1x2x32xf32, #tpu.memory_space<vmem>>, vector<1x1x32xf32>
    %39 = vector.shape_cast %38 : vector<1x1x32xf32> to vector<1x32xf32>
    %cst_36 = arith.constant dense<0.000000e+00> : vector<1x32xf32>
    %40 = vector.multi_reduction <add>, %37, %cst_36 [2] : vector<1x32x256xf32> to vector<1x32xf32>
    %41 = arith.addf %39, %40 : vector<1x32xf32>
    %c0_37 = arith.constant 0 : index
    %c0_38 = arith.constant 0 : index
    %c0_39 = arith.constant 0 : index
    %42 = vector.load %arg6[%c0_37, %c0_38, %c0_39] : memref<1x2x32xf32, #tpu.memory_space<vmem>>, vector<1x1x32xf32>
    %43 = vector.shape_cast %42 : vector<1x1x32xf32> to vector<1x32xf32>
    %44 = vector.shape_cast %41 : vector<1x32xf32> to vector<1x1x32xf32>
    tpu.vector_store %arg6[%c0_37, %c0_38, %c0_39], %44 {strides = array<i32>} : memref<1x2x32xf32, #tpu.memory_space<vmem>>, vector<1x1x32xf32>,
    %c0_40 = arith.constant 0 : index
    %c1_41 = arith.constant 1 : index
    %c0_42 = arith.constant 0 : index
    %45 = vector.load %arg6[%c0_40, %c1_41, %c0_42] : memref<1x2x32xf32, #tpu.memory_space<vmem>>, vector<1x1x32xf32>
    %46 = vector.shape_cast %45 : vector<1x1x32xf32> to vector<1x32xf32>
    %47 = arith.mulf %37, %37 : vector<1x32x256xf32>
    %cst_43 = arith.constant dense<0.000000e+00> : vector<1x32xf32>
    %48 = vector.multi_reduction <add>, %47, %cst_43 [2] : vector<1x32x256xf32> to vector<1x32xf32>
    %49 = arith.addf %46, %48 : vector<1x32xf32>
    %c0_44 = arith.constant 0 : index
    %c1_45 = arith.constant 1 : index
    %c0_46 = arith.constant 0 : index
    %50 = vector.load %arg6[%c0_44, %c1_45, %c0_46] : memref<1x2x32xf32, #tpu.memory_space<vmem>>, vector<1x1x32xf32>
    %51 = vector.shape_cast %50 : vector<1x1x32xf32> to vector<1x32xf32>
    %52 = vector.shape_cast %49 : vector<1x32xf32> to vector<1x1x32xf32>
    tpu.vector_store %arg6[%c0_44, %c1_45, %c0_46], %52 {strides = array<i32>} : memref<1x2x32xf32, #tpu.memory_space<vmem>>, vector<1x1x32xf32>,
    return
  }
  func.func @transform_0(%arg0: i32, %arg1: i32) -> (i32, i32, i32, i32) {
    %c0_i32 = arith.constant 0 : i32
    %c0_i32_0 = arith.constant 0 : i32
    %c0_i32_1 = arith.constant 0 : i32
    return %arg1, %arg0, %c0_i32, %c0_i32_0 : i32, i32, i32, i32
  }
  func.func @transform_1(%arg0: i32, %arg1: i32) -> (i32, i32, i32) {
    %c0_i32 = arith.constant 0 : i32
    %c0_i32_0 = arith.constant 0 : i32
    %c0_i32_1 = arith.constant 0 : i32
    %c0_i32_2 = arith.constant 0 : i32
    return %c0_i32, %c0_i32_0, %c0_i32_1 : i32, i32, i32
  }
  func.func @transform_2(%arg0: i32, %arg1: i32) -> (i32, i32) {
    %c0_i32 = arith.constant 0 : i32
    %c0_i32_0 = arith.constant 0 : i32
    %c0_i32_1 = arith.constant 0 : i32
    return %c0_i32, %c0_i32_0 : i32, i32
  }
  func.func @transform_3(%arg0: i32, %arg1: i32) -> (i32, i32, i32, i32) {
    %c0_i32 = arith.constant 0 : i32
    %c0_i32_0 = arith.constant 0 : i32
    %c0_i32_1 = arith.constant 0 : i32
    return %arg1, %arg0, %c0_i32, %c0_i32_0 : i32, i32, i32, i32
  }
  func.func @transform_4(%arg0: i32, %arg1: i32) -> (i32, i32, i32) {
    %c0_i32 = arith.constant 0 : i32
    %c0_i32_0 = arith.constant 0 : i32
    %c0_i32_1 = arith.constant 0 : i32
    return %arg0, %c0_i32, %c0_i32_0 : i32, i32, i32
  }
}

module attributes {stable_mosaic.version = 11 : i64} {
  func.func @_inv_kernel(%arg0: i32, %arg1: i32, %arg2: memref<1x1x32x256xf32, #tpu.memory_space<vmem>>, %arg3: memref<2x32x1xf32, #tpu.memory_space<vmem>>, %arg4: memref<256x256xf32, #tpu.memory_space<vmem>>, %arg5: memref<1x1x32x256xbf16, #tpu.memory_space<vmem>>, %arg6: memref<1x2x32xf32, #tpu.memory_space<vmem>>, %arg7: memref<32x256xf32, #tpu.memory_space<vmem>>) attributes {dimension_semantics = [#tpu.dimension_semantics<parallel>, #tpu.dimension_semantics<arbitrary>], iteration_bounds = array<i64: 2, 2>, scalar_prefetch = 0 : i64, scratch_operands = 1 : i64, tpu.core_type = #tpu.core_type<tc>, window_params = [{transform_indices = @transform_0, window_bounds = array<i64: 1, 1, 32, 256>}, {pipeline_mode = #tpu.pipeline_mode<synchronous>, transform_indices = @transform_1, window_bounds = array<i64: 2, 32, 1>}, {pipeline_mode = #tpu.pipeline_mode<synchronous>, transform_indices = @transform_2, window_bounds = array<i64: 256, 256>}, {transform_indices = @transform_3, window_bounds = array<i64: 1, 1, 32, 256>}, {transform_indices = @transform_4, window_bounds = array<i64: 1, 2, 32>}]} {
    %c0_i32 = arith.constant 0 : i32
    %0 = arith.cmpi eq, %arg1, %c0_i32 : i32
    %1 = arith.extui %0 : i1 to i32
    %c0_i32_0 = arith.constant 0 : i32
    %2 = arith.cmpi ne, %1, %c0_i32_0 : i32
    scf.if %2 {
      %cst_39 = arith.constant 0.000000e+00 : f32
      %53 = vector.broadcast %cst_39 : f32 to vector<32x256xf32>
      %c0_40 = arith.constant 0 : index
      %c0_41 = arith.constant 0 : index
      %54 = vector.load %arg7[%c0_40, %c0_41] : memref<32x256xf32, #tpu.memory_space<vmem>>, vector<32x256xf32>
      tpu.vector_store %arg7[%c0_40, %c0_41], %53 {strides = array<i32>} : memref<32x256xf32, #tpu.memory_space<vmem>>, vector<32x256xf32>,
      %cst_42 = arith.constant 0.000000e+00 : f32
      %55 = vector.broadcast %cst_42 : f32 to vector<1x2x32xf32>
      %c0_43 = arith.constant 0 : index
      %c0_44 = arith.constant 0 : index
      %c0_45 = arith.constant 0 : index
      %56 = vector.load %arg6[%c0_43, %c0_44, %c0_45] : memref<1x2x32xf32, #tpu.memory_space<vmem>>, vector<1x2x32xf32>
      tpu.vector_store %arg6[%c0_43, %c0_44, %c0_45], %55 {strides = array<i32>} : memref<1x2x32xf32, #tpu.memory_space<vmem>>, vector<1x2x32xf32>,
    } else {
    }
    %c0 = arith.constant 0 : index
    %c0_1 = arith.constant 0 : index
    %c0_2 = arith.constant 0 : index
    %c0_3 = arith.constant 0 : index
    %3 = vector.load %arg2[%c0, %c0_1, %c0_2, %c0_3] : memref<1x1x32x256xf32, #tpu.memory_space<vmem>>, vector<1x1x32x256xf32>
    %4 = vector.shape_cast %3 : vector<1x1x32x256xf32> to vector<1x32x256xf32>
    %c0_4 = arith.constant 0 : index
    %c0_5 = arith.constant 0 : index
    %c0_6 = arith.constant 0 : index
    %5 = vector.load %arg3[%c0_4, %c0_5, %c0_6] : memref<2x32x1xf32, #tpu.memory_space<vmem>>, vector<1x32x1xf32>
    %6 = vector.shape_cast %5 : vector<1x32x1xf32> to vector<32x1xf32>
    %7 = vector.shape_cast %6 : vector<32x1xf32> to vector<1x32x1xf32>
    %8 = vector.broadcast %7 : vector<1x32x1xf32> to vector<1x32x256xf32>
    %9 = arith.mulf %4, %8 : vector<1x32x256xf32>
    %c1 = arith.constant 1 : index
    %c0_7 = arith.constant 0 : index
    %c0_8 = arith.constant 0 : index
    %10 = vector.load %arg3[%c1, %c0_7, %c0_8] : memref<2x32x1xf32, #tpu.memory_space<vmem>>, vector<1x32x1xf32>
    %11 = vector.shape_cast %10 : vector<1x32x1xf32> to vector<32x1xf32>
    %12 = vector.shape_cast %11 : vector<32x1xf32> to vector<1x32x1xf32>
    %13 = vector.broadcast %12 : vector<1x32x1xf32> to vector<1x32x256xf32>
    %14 = arith.addf %9, %13 : vector<1x32x256xf32>
    %15 = vector.shape_cast %14 : vector<1x32x256xf32> to vector<32x256xf32>
    %c0_9 = arith.constant 0 : index
    %c0_10 = arith.constant 0 : index
    %16 = vector.load %arg4[%c0_9, %c0_10] : memref<256x256xf32, #tpu.memory_space<vmem>>, vector<256x256xf32>
    %cst = arith.constant dense<0.000000e+00> : vector<32x256xf32>
    %17 = tpu.matmul %15, %16, %cst {dimension_numbers = #tpu.dot_dimension_numbers<[1], [0], [0], [1], [0, 0, 1, 1], [], []>} : vector<32x256xf32>, vector<256x256xf32>, vector<32x256xf32> -> vector<32x256xf32>
    %c0_11 = arith.constant 0 : index
    %c0_12 = arith.constant 0 : index
    %18 = vector.load %arg7[%c0_11, %c0_12] : memref<32x256xf32, #tpu.memory_space<vmem>>, vector<32x256xf32>
    %19 = arith.addf %18, %17 : vector<32x256xf32>
    %cst_13 = arith.constant 1.000000e+00 : f32
    %20 = vector.broadcast %cst_13 : f32 to vector<32x256xf32>
    %21 = arith.cmpf oge, %19, %20 : vector<32x256xf32>
    %cst_14 = arith.constant -1.000000e+00 : f32
    %22 = vector.broadcast %cst_14 : f32 to vector<32x256xf32>
    %23 = arith.cmpf ole, %19, %22 : vector<32x256xf32>
    %24 = arith.ori %21, %23 : vector<32x256xi1>
    %cst_15 = arith.constant 0.000000e+00 : f32
    %25 = vector.broadcast %cst_15 : f32 to vector<32x256xf32>
    %26 = arith.select %24, %25, %19 : vector<32x256xi1>, vector<32x256xf32>
    %c0_16 = arith.constant 0 : index
    %c0_17 = arith.constant 0 : index
    %27 = vector.load %arg7[%c0_16, %c0_17] : memref<32x256xf32, #tpu.memory_space<vmem>>, vector<32x256xf32>
    tpu.vector_store %arg7[%c0_16, %c0_17], %26 {strides = array<i32>} : memref<32x256xf32, #tpu.memory_space<vmem>>, vector<32x256xf32>,
    %cst_18 = arith.constant -1.000000e+00 : f32
    %cst_19 = arith.constant 0.000000e+00 : f32
    %28 = vector.broadcast %cst_18 : f32 to vector<32x256xf32>
    %29 = vector.broadcast %cst_19 : f32 to vector<32x256xf32>
    %30 = arith.select %23, %28, %29 : vector<32x256xi1>, vector<32x256xf32>
    %cst_20 = arith.constant 1.000000e+00 : f32
    %31 = vector.broadcast %cst_20 : f32 to vector<32x256xf32>
    %32 = arith.select %21, %31, %30 : vector<32x256xi1>, vector<32x256xf32>
    %33 = vector.shape_cast %32 : vector<32x256xf32> to vector<1x32x256xf32>
    %34 = arith.truncf %33 : vector<1x32x256xf32> to vector<1x32x256xbf16>
    %c0_21 = arith.constant 0 : index
    %c0_22 = arith.constant 0 : index
    %c0_23 = arith.constant 0 : index
    %c0_24 = arith.constant 0 : index
    %35 = vector.load %arg5[%c0_21, %c0_22, %c0_23, %c0_24] : memref<1x1x32x256xbf16, #tpu.memory_space<vmem>>, vector<1x1x32x256xbf16>
    %36 = vector.shape_cast %35 : vector<1x1x32x256xbf16> to vector<1x32x256xbf16>
    %37 = vector.shape_cast %34 : vector<1x32x256xbf16> to vector<1x1x32x256xbf16>
    tpu.vector_store %arg5[%c0_21, %c0_22, %c0_23, %c0_24], %37 {strides = array<i32>} : memref<1x1x32x256xbf16, #tpu.memory_space<vmem>>, vector<1x1x32x256xbf16>,
    %c0_25 = arith.constant 0 : index
    %c0_26 = arith.constant 0 : index
    %c0_27 = arith.constant 0 : index
    %38 = vector.load %arg6[%c0_25, %c0_26, %c0_27] : memref<1x2x32xf32, #tpu.memory_space<vmem>>, vector<1x1x32xf32>
    %39 = vector.shape_cast %38 : vector<1x1x32xf32> to vector<1x32xf32>
    %cst_28 = arith.constant dense<0.000000e+00> : vector<1x32xf32>
    %40 = vector.multi_reduction <add>, %33, %cst_28 [2] : vector<1x32x256xf32> to vector<1x32xf32>
    %41 = arith.addf %39, %40 : vector<1x32xf32>
    %c0_29 = arith.constant 0 : index
    %c0_30 = arith.constant 0 : index
    %c0_31 = arith.constant 0 : index
    %42 = vector.load %arg6[%c0_29, %c0_30, %c0_31] : memref<1x2x32xf32, #tpu.memory_space<vmem>>, vector<1x1x32xf32>
    %43 = vector.shape_cast %42 : vector<1x1x32xf32> to vector<1x32xf32>
    %44 = vector.shape_cast %41 : vector<1x32xf32> to vector<1x1x32xf32>
    tpu.vector_store %arg6[%c0_29, %c0_30, %c0_31], %44 {strides = array<i32>} : memref<1x2x32xf32, #tpu.memory_space<vmem>>, vector<1x1x32xf32>,
    %c0_32 = arith.constant 0 : index
    %c1_33 = arith.constant 1 : index
    %c0_34 = arith.constant 0 : index
    %45 = vector.load %arg6[%c0_32, %c1_33, %c0_34] : memref<1x2x32xf32, #tpu.memory_space<vmem>>, vector<1x1x32xf32>
    %46 = vector.shape_cast %45 : vector<1x1x32xf32> to vector<1x32xf32>
    %47 = arith.mulf %33, %33 : vector<1x32x256xf32>
    %cst_35 = arith.constant dense<0.000000e+00> : vector<1x32xf32>
    %48 = vector.multi_reduction <add>, %47, %cst_35 [2] : vector<1x32x256xf32> to vector<1x32xf32>
    %49 = arith.addf %46, %48 : vector<1x32xf32>
    %c0_36 = arith.constant 0 : index
    %c1_37 = arith.constant 1 : index
    %c0_38 = arith.constant 0 : index
    %50 = vector.load %arg6[%c0_36, %c1_37, %c0_38] : memref<1x2x32xf32, #tpu.memory_space<vmem>>, vector<1x1x32xf32>
    %51 = vector.shape_cast %50 : vector<1x1x32xf32> to vector<1x32xf32>
    %52 = vector.shape_cast %49 : vector<1x32xf32> to vector<1x1x32xf32>
    tpu.vector_store %arg6[%c0_36, %c1_37, %c0_38], %52 {strides = array<i32>} : memref<1x2x32xf32, #tpu.memory_space<vmem>>, vector<1x1x32xf32>,
    return
  }
  func.func @transform_0(%arg0: i32, %arg1: i32) -> (i32, i32, i32, i32) {
    %c0_i32 = arith.constant 0 : i32
    %c0_i32_0 = arith.constant 0 : i32
    %c0_i32_1 = arith.constant 0 : i32
    return %arg1, %arg0, %c0_i32, %c0_i32_0 : i32, i32, i32, i32
  }
  func.func @transform_1(%arg0: i32, %arg1: i32) -> (i32, i32, i32) {
    %c0_i32 = arith.constant 0 : i32
    %c0_i32_0 = arith.constant 0 : i32
    %c0_i32_1 = arith.constant 0 : i32
    %c0_i32_2 = arith.constant 0 : i32
    return %c0_i32, %c0_i32_0, %c0_i32_1 : i32, i32, i32
  }
  func.func @transform_2(%arg0: i32, %arg1: i32) -> (i32, i32) {
    %c0_i32 = arith.constant 0 : i32
    %c0_i32_0 = arith.constant 0 : i32
    %c0_i32_1 = arith.constant 0 : i32
    return %c0_i32, %c0_i32_0 : i32, i32
  }
  func.func @transform_3(%arg0: i32, %arg1: i32) -> (i32, i32, i32, i32) {
    %c0_i32 = arith.constant 0 : i32
    %c0_i32_0 = arith.constant 0 : i32
    %c0_i32_1 = arith.constant 0 : i32
    return %arg1, %arg0, %c0_i32, %c0_i32_0 : i32, i32, i32, i32
  }
  func.func @transform_4(%arg0: i32, %arg1: i32) -> (i32, i32, i32) {
    %c0_i32 = arith.constant 0 : i32
    %c0_i32_0 = arith.constant 0 : i32
    %c0_i32_1 = arith.constant 0 : i32
    return %arg0, %c0_i32, %c0_i32_0 : i32, i32, i32
  }
}

module attributes {stable_mosaic.version = 11 : i64} {
  func.func @_combine_kernel(%arg0: i32, %arg1: memref<2x32x256xbf16, #tpu.memory_space<vmem>>, %arg2: memref<2x32x256xf32, #tpu.memory_space<vmem>>, %arg3: memref<2x32x256xf32, #tpu.memory_space<vmem>>, %arg4: memref<6x32x1xf32, #tpu.memory_space<vmem>>, %arg5: memref<2x32x256xf32, #tpu.memory_space<vmem>>) attributes {dimension_semantics = [#tpu.dimension_semantics<parallel>], iteration_bounds = array<i64: 2>, scalar_prefetch = 0 : i64, scratch_operands = 0 : i64, tpu.core_type = #tpu.core_type<tc>, window_params = [{transform_indices = @transform_0, window_bounds = array<i64: 2, 32, 256>}, {transform_indices = @transform_1, window_bounds = array<i64: 2, 32, 256>}, {transform_indices = @transform_2, window_bounds = array<i64: 2, 32, 256>}, {pipeline_mode = #tpu.pipeline_mode<synchronous>, transform_indices = @transform_3, window_bounds = array<i64: 6, 32, 1>}, {transform_indices = @transform_4, window_bounds = array<i64: 2, 32, 256>}]} {
    %c0 = arith.constant 0 : index
    %c0_0 = arith.constant 0 : index
    %c0_1 = arith.constant 0 : index
    %0 = vector.load %arg1[%c0, %c0_0, %c0_1] : memref<2x32x256xbf16, #tpu.memory_space<vmem>>, vector<2x32x256xbf16>
    %1 = arith.extf %0 : vector<2x32x256xbf16> to vector<2x32x256xf32>
    %c0_2 = arith.constant 0 : index
    %c0_3 = arith.constant 0 : index
    %c0_4 = arith.constant 0 : index
    %2 = vector.load %arg4[%c0_2, %c0_3, %c0_4] : memref<6x32x1xf32, #tpu.memory_space<vmem>>, vector<1x32x1xf32>
    %3 = vector.shape_cast %2 : vector<1x32x1xf32> to vector<32x1xf32>
    %4 = vector.shape_cast %3 : vector<32x1xf32> to vector<1x32x1xf32>
    %5 = vector.broadcast %4 : vector<1x32x1xf32> to vector<2x32x256xf32>
    %6 = arith.mulf %1, %5 : vector<2x32x256xf32>
    %c1 = arith.constant 1 : index
    %c0_5 = arith.constant 0 : index
    %c0_6 = arith.constant 0 : index
    %7 = vector.load %arg4[%c1, %c0_5, %c0_6] : memref<6x32x1xf32, #tpu.memory_space<vmem>>, vector<1x32x1xf32>
    %8 = vector.shape_cast %7 : vector<1x32x1xf32> to vector<32x1xf32>
    %9 = vector.shape_cast %8 : vector<32x1xf32> to vector<1x32x1xf32>
    %10 = vector.broadcast %9 : vector<1x32x1xf32> to vector<2x32x256xf32>
    %11 = arith.addf %6, %10 : vector<2x32x256xf32>
    %c0_7 = arith.constant 0 : index
    %c0_8 = arith.constant 0 : index
    %c0_9 = arith.constant 0 : index
    %12 = vector.load %arg2[%c0_7, %c0_8, %c0_9] : memref<2x32x256xf32, #tpu.memory_space<vmem>>, vector<2x32x256xf32>
    %c2 = arith.constant 2 : index
    %c0_10 = arith.constant 0 : index
    %c0_11 = arith.constant 0 : index
    %13 = vector.load %arg4[%c2, %c0_10, %c0_11] : memref<6x32x1xf32, #tpu.memory_space<vmem>>, vector<1x32x1xf32>
    %14 = vector.shape_cast %13 : vector<1x32x1xf32> to vector<32x1xf32>
    %15 = vector.shape_cast %14 : vector<32x1xf32> to vector<1x32x1xf32>
    %16 = vector.broadcast %15 : vector<1x32x1xf32> to vector<2x32x256xf32>
    %17 = arith.mulf %12, %16 : vector<2x32x256xf32>
    %18 = arith.addf %11, %17 : vector<2x32x256xf32>
    %c3 = arith.constant 3 : index
    %c0_12 = arith.constant 0 : index
    %c0_13 = arith.constant 0 : index
    %19 = vector.load %arg4[%c3, %c0_12, %c0_13] : memref<6x32x1xf32, #tpu.memory_space<vmem>>, vector<1x32x1xf32>
    %20 = vector.shape_cast %19 : vector<1x32x1xf32> to vector<32x1xf32>
    %21 = vector.shape_cast %20 : vector<32x1xf32> to vector<1x32x1xf32>
    %22 = vector.broadcast %21 : vector<1x32x1xf32> to vector<2x32x256xf32>
    %23 = arith.addf %18, %22 : vector<2x32x256xf32>
    %c0_14 = arith.constant 0 : index
    %c0_15 = arith.constant 0 : index
    %c0_16 = arith.constant 0 : index
    %24 = vector.load %arg3[%c0_14, %c0_15, %c0_16] : memref<2x32x256xf32, #tpu.memory_space<vmem>>, vector<2x32x256xf32>
    %c4 = arith.constant 4 : index
    %c0_17 = arith.constant 0 : index
    %c0_18 = arith.constant 0 : index
    %25 = vector.load %arg4[%c4, %c0_17, %c0_18] : memref<6x32x1xf32, #tpu.memory_space<vmem>>, vector<1x32x1xf32>
    %26 = vector.shape_cast %25 : vector<1x32x1xf32> to vector<32x1xf32>
    %27 = vector.shape_cast %26 : vector<32x1xf32> to vector<1x32x1xf32>
    %28 = vector.broadcast %27 : vector<1x32x1xf32> to vector<2x32x256xf32>
    %29 = arith.mulf %24, %28 : vector<2x32x256xf32>
    %30 = arith.addf %23, %29 : vector<2x32x256xf32>
    %c5 = arith.constant 5 : index
    %c0_19 = arith.constant 0 : index
    %c0_20 = arith.constant 0 : index
    %31 = vector.load %arg4[%c5, %c0_19, %c0_20] : memref<6x32x1xf32, #tpu.memory_space<vmem>>, vector<1x32x1xf32>
    %32 = vector.shape_cast %31 : vector<1x32x1xf32> to vector<32x1xf32>
    %33 = vector.shape_cast %32 : vector<32x1xf32> to vector<1x32x1xf32>
    %34 = vector.broadcast %33 : vector<1x32x1xf32> to vector<2x32x256xf32>
    %35 = arith.addf %30, %34 : vector<2x32x256xf32>
    %c0_21 = arith.constant 0 : index
    %c0_22 = arith.constant 0 : index
    %c0_23 = arith.constant 0 : index
    %36 = vector.load %arg5[%c0_21, %c0_22, %c0_23] : memref<2x32x256xf32, #tpu.memory_space<vmem>>, vector<2x32x256xf32>
    tpu.vector_store %arg5[%c0_21, %c0_22, %c0_23], %35 {strides = array<i32>} : memref<2x32x256xf32, #tpu.memory_space<vmem>>, vector<2x32x256xf32>,
    return
  }
  func.func @transform_0(%arg0: i32) -> (i32, i32, i32) {
    %c0_i32 = arith.constant 0 : i32
    %c0_i32_0 = arith.constant 0 : i32
    %c0_i32_1 = arith.constant 0 : i32
    return %arg0, %c0_i32, %c0_i32_0 : i32, i32, i32
  }
  func.func @transform_1(%arg0: i32) -> (i32, i32, i32) {
    %c0_i32 = arith.constant 0 : i32
    %c0_i32_0 = arith.constant 0 : i32
    %c0_i32_1 = arith.constant 0 : i32
    return %arg0, %c0_i32, %c0_i32_0 : i32, i32, i32
  }
  func.func @transform_2(%arg0: i32) -> (i32, i32, i32) {
    %c0_i32 = arith.constant 0 : i32
    %c0_i32_0 = arith.constant 0 : i32
    %c0_i32_1 = arith.constant 0 : i32
    return %arg0, %c0_i32, %c0_i32_0 : i32, i32, i32
  }
  func.func @transform_3(%arg0: i32) -> (i32, i32, i32) {
    %c0_i32 = arith.constant 0 : i32
    %c0_i32_0 = arith.constant 0 : i32
    %c0_i32_1 = arith.constant 0 : i32
    %c0_i32_2 = arith.constant 0 : i32
    return %c0_i32, %c0_i32_0, %c0_i32_1 : i32, i32, i32
  }
  func.func @transform_4(%arg0: i32) -> (i32, i32, i32) {
    %c0_i32 = arith.constant 0 : i32
    %c0_i32_0 = arith.constant 0 : i32
    %c0_i32_1 = arith.constant 0 : i32
    return %arg0, %c0_i32, %c0_i32_0 : i32, i32, i32
  }
}

</mosaic_0001>

<llo_original>
// kernel: fatm_forward.7
$region0: #{fatm_forward.7}
  #allocation0 [shape = 'u32[]', space=smem, size = 0x4, offset = 0x4, fixed_abs, tag = 'smem constant byte address 0x4 - core index']
  #allocation1 [shape = 'u32[144,128]{1,0:T(1,128)}', space=vmem, size = 0x12000, scoped, tag = 'internal scratch']
  %s0 = inlined_call_operand.vmem [shape: bf16[4,32,256], index: 0, kind: input, shape index: {}]
  %s1 = inlined_call_operand.vmem [shape: f32[4,32,256], index: 1, kind: input, shape index: {}]
  %s2 = inlined_call_operand.vmem [shape: f32[4,32,256], index: 2, kind: input, shape index: {}]
  %s3 = inlined_call_operand.vmem [shape: f32[6,32,1], index: 3, kind: input, shape index: {}]
  %s4 = inlined_call_operand.vmem [shape: f32[4,32,256], index: 4, kind: output, shape index: {}]
  %s5 = sld [smem:[#allocation0]]
  $region49: #{fatm_forward.7} parent=0
    _
  %s7 = ssub.s32 1, %s5
  %s8 = scalar_select 0, %s7, %s5
  loop: start=0, step=1, limit=4
  $region2: #{fatm_forward.7} parent=0 // loop_pre_header
    _
  $region3: #{fatm_forward.7} parent=0 // loop_header
    %s10 = sphi 0, %s14
    %p11 = scmp.ge.s32.totalorder %s10, 4
    %s20 = sphi 0, %s22
    %s23 = sphi 0, %s20
    %s24 = sphi 0, %s23
    %s40 = sphi 0, %s24
    %s46 = sphi 0, %s48
    %s49 = sphi 0, %s46
    %s50 = sphi 0, %s49
    %s66 = sphi 0, %s50
    %s72 = sphi 0, %s74
    %s75 = sphi 0, %s72
    %s76 = sphi 0, %s75
    %s92 = sphi 0, %s76
    %s96 = sphi 0, %s96
    %s98 = sphi 0, %s96
    %s99 = sphi 0, %s98
    %s113 = sphi 0, %s99
    %s119 = sphi 0, %s121
    %s122 = sphi 0, %s119
    %s123 = sphi 0, %s122
    %s139 = sphi 0, %s123
  $region4: #{fatm_forward.7} parent=0 // loop_header_branch
    %13 = sbr.rel (%p11) target = $region8
  $region5: #{fatm_forward.7} parent=0 // loop_body
    %s15 = ssub.s32 %s10, 1
    %s16 = ssub.s32 %s10, 2
    %s17 = sadd.s32 %s10, 1
    %s18 = ssub.s32 %s10, %s17
    %p19 = scmp.eq.s32.totalorder %s18, 0
    %s21 = sadd.s32 %s20, 1
    %s22 = scalar_select %p19, %s20, %s21
    %p25 = pneg %p19
    %p26 = scmp.eq.s32.totalorder %s10, 1
    %p27 = por %p25, %p26
    %p28 = scmp.ne.s32.totalorder %s20, %s23
    %p29 = scmp.eq.s32.totalorder %s10, 0
    %p30 = por %p28, %p29
    %p31 = scmp.ne.s32.totalorder %s20, %s23
    %p32 = scmp.eq.s32.totalorder %s15, 1
    %p33 = por %p31, %p32
    %p34 = scmp.ne.s32.totalorder %s23, %s24
    %p35 = scmp.eq.s32.totalorder %s15, 0
    %p36 = por %p34, %p35
    %p37 = scmp.ne.s32.totalorder %s23, %s24
    %p38 = scmp.eq.s32.totalorder %s16, 1
    %p39 = por %p37, %p38
    %p41 = scmp.ne.s32.totalorder %s24, %s40
    %p42 = scmp.eq.s32.totalorder %s16, 0
    %p43 = por %p41, %p42
    %s44 = ssub.s32 %s10, %s17
    %p45 = scmp.eq.s32.totalorder %s44, 0
    %s47 = sadd.s32 %s46, 1
    %s48 = scalar_select %p45, %s46, %s47
    %p51 = pneg %p45
    %p52 = scmp.eq.s32.totalorder %s10, 1
    %p53 = por %p51, %p52
    %p54 = scmp.ne.s32.totalorder %s46, %s49
    %p55 = scmp.eq.s32.totalorder %s10, 0
    %p56 = por %p54, %p55
    %p57 = scmp.ne.s32.totalorder %s46, %s49
    %p58 = scmp.eq.s32.totalorder %s15, 1
    %p59 = por %p57, %p58
    %p60 = scmp.ne.s32.totalorder %s49, %s50
    %p61 = scmp.eq.s32.totalorder %s15, 0
    %p62 = por %p60, %p61
    %p63 = scmp.ne.s32.totalorder %s49, %s50
    %p64 = scmp.eq.s32.totalorder %s16, 1
    %p65 = por %p63, %p64
    %p67 = scmp.ne.s32.totalorder %s50, %s66
    %p68 = scmp.eq.s32.totalorder %s16, 0
    %p69 = por %p67, %p68
    %s70 = ssub.s32 %s10, %s17
    %p71 = scmp.eq.s32.totalorder %s70, 0
    %s73 = sadd.s32 %s72, 1
    %s74 = scalar_select %p71, %s72, %s73
    %p77 = pneg %p71
    %p78 = scmp.eq.s32.totalorder %s10, 1
    %p79 = por %p77, %p78
    %p80 = scmp.ne.s32.totalorder %s72, %s75
    %p81 = scmp.eq.s32.totalorder %s10, 0
    %p82 = por %p80, %p81
    %p83 = scmp.ne.s32.totalorder %s72, %s75
    %p84 = scmp.eq.s32.totalorder %s15, 1
    %p85 = por %p83, %p84
    %p86 = scmp.ne.s32.totalorder %s75, %s76
    %p87 = scmp.eq.s32.totalorder %s15, 0
    %p88 = por %p86, %p87
    %p89 = scmp.ne.s32.totalorder %s75, %s76
    %p90 = scmp.eq.s32.totalorder %s16, 1
    %p91 = por %p89, %p90
    %p93 = scmp.ne.s32.totalorder %s76, %s92
    %p94 = scmp.eq.s32.totalorder %s16, 0
    %p95 = por %p93, %p94
    %s97 = sadd.s32 %s96, 1
    %p100 = scmp.eq.s32.totalorder %s10, 1
    %p101 = scmp.ne.s32.totalorder %s96, %s98
    %p102 = scmp.eq.s32.totalorder %s10, 0
    %p103 = por %p101, %p102
    %p104 = scmp.ne.s32.totalorder %s96, %s98
    %p105 = scmp.eq.s32.totalorder %s15, 1
    %p106 = por %p104, %p105
    %p107 = scmp.ne.s32.totalorder %s98, %s99
    %p108 = scmp.eq.s32.totalorder %s15, 0
    %p109 = por %p107, %p108
    %p110 = scmp.ne.s32.totalorder %s98, %s99
    %p111 = scmp.eq.s32.totalorder %s16, 1
    %p112 = por %p110, %p111
    %p114 = scmp.ne.s32.totalorder %s99, %s113
    %p115 = scmp.eq.s32.totalorder %s16, 0
    %p116 = por %p114, %p115
    %s117 = ssub.s32 %s10, %s17
    %p118 = scmp.eq.s32.totalorder %s117, 0
    %s120 = sadd.s32 %s119, 1
    %s121 = scalar_select %p118, %s119, %s120
    %p124 = pneg %p118
    %p125 = scmp.eq.s32.totalorder %s10, 1
    %p126 = por %p124, %p125
    %p127 = scmp.ne.s32.totalorder %s119, %s122
    %p128 = scmp.eq.s32.totalorder %s10, 0
    %p129 = por %p127, %p128
    %p130 = scmp.ne.s32.totalorder %s119, %s122
    %p131 = scmp.eq.s32.totalorder %s15, 1
    %p132 = por %p130, %p131
    %p133 = scmp.ne.s32.totalorder %s122, %s123
    %p134 = scmp.eq.s32.totalorder %s15, 0
    %p135 = por %p133, %p134
    %p136 = scmp.ne.s32.totalorder %s122, %s123
    %p137 = scmp.eq.s32.totalorder %s16, 1
    %p138 = por %p136, %p137
    %p140 = scmp.ne.s32.totalorder %s123, %s139
    %p141 = scmp.eq.s32.totalorder %s16, 0
    %p142 = por %p140, %p141
    %p143 = scmp.le.s32.totalorder 1, %s10
    %p144 = scmp.lt.s32.totalorder %s10, 3
    %p145 = pnand %p143, %p144
    %p146 = pneg %p145
    // Predicated region
    $region9: #{fatm_forward.7} parent=5 // pred_check
      _
    $region10: #{fatm_forward.7} parent=5 // pred_check_branch
      %148 = sbr.rel (%p145) target = $region12
    $region11: #{fatm_forward.7} parent=5 // pred_region
      %s149 = ssub.s32 %s10, 1
      // Predicated region
      $region13: #{fatm_forward.7} parent=11 // pred_check
        %p150 = pneg %p109
      $region14: #{fatm_forward.7} parent=11 // pred_check_branch
        %152 = sbr.rel (%p150) target = $region16
      $region15: #{fatm_forward.7} parent=11 // pred_region
        _
      $region16: #{fatm_forward.7} parent=11 // pred_fallthru
        _
    $region12: #{fatm_forward.7} parent=5 // pred_fallthru
      _
    %p153 = scmp.lt.s32.totalorder %s10, 2
    // Predicated region
    $region17: #{fatm_forward.7} parent=5 // pred_check
      %p154 = pneg %p153
    $region18: #{fatm_forward.7} parent=5 // pred_check_branch
      %156 = sbr.rel (%p154) target = $region20
    $region19: #{fatm_forward.7} parent=5 // pred_region
      // Predicated region
      $region21: #{fatm_forward.7} parent=19 // pred_check
        %p157 = pneg %p30
      $region22: #{fatm_forward.7} parent=19 // pred_check_branch
        %159 = sbr.rel (%p157) target = $region24
      $region23: #{fatm_forward.7} parent=19 // pred_region
        %s160 = smul.u32 2, %s10
        %p161 = scmp.lt.s32.totalorder %s160, 3
        %s162 = scalar_select %p161, %s160, 3
        %s163 = smul.addr %s162, 8
        %s164 = smul.addr %s163, 4
        %s165 = scalar_lea.vmem %s0, %s164
        %s166 = smul.u32 2, %s10
      $region24: #{fatm_forward.7} parent=19 // pred_fallthru
        _
      // Predicated region
      $region25: #{fatm_forward.7} parent=19 // pred_check
        %p167 = pneg %p56
      $region26: #{fatm_forward.7} parent=19 // pred_check_branch
        %169 = sbr.rel (%p167) target = $region28
      $region27: #{fatm_forward.7} parent=19 // pred_region
        %s170 = smul.u32 2, %s10
        %p171 = scmp.lt.s32.totalorder %s170, 3
        %s172 = scalar_select %p171, %s170, 3
        %s173 = smul.addr %s172, 8
        %s174 = smul.addr %s173, 8
        %s175 = scalar_lea.vmem %s1, %s174
        %s176 = smul.u32 2, %s10
      $region28: #{fatm_forward.7} parent=19 // pred_fallthru
        _
      // Predicated region
      $region29: #{fatm_forward.7} parent=19 // pred_check
        %p177 = pneg %p82
      $region30: #{fatm_forward.7} parent=19 // pred_check_branch
        %179 = sbr.rel (%p177) target = $region32
      $region31: #{fatm_forward.7} parent=19 // pred_region
        %s180 = smul.u32 2, %s10
        %p181 = scmp.lt.s32.totalorder %s180, 3
        %s182 = scalar_select %p181, %s180, 3
        %s183 = smul.addr %s182, 8
        %s184 = smul.addr %s183, 8
        %s185 = scalar_lea.vmem %s2, %s184
        %s186 = smul.u32 2, %s10
      $region32: #{fatm_forward.7} parent=19 // pred_fallthru
        _
    $region20: #{fatm_forward.7} parent=5 // pred_fallthru
      _
    %p187 = scmp.le.s32.totalorder 1, %s10
    %p188 = scmp.lt.s32.totalorder %s10, 3
    %p189 = pnand %p187, %p188
    %p190 = pneg %p189
    // Predicated region
    $region33: #{fatm_forward.7} parent=5 // pred_check
      _
    $region34: #{fatm_forward.7} parent=5 // pred_check_branch
      %192 = sbr.rel (%p189) target = $region36
    $region35: #{fatm_forward.7} parent=5 // pred_region
      %s193 = ssub.s32 %s10, 1
      %s194 = smul.u32 2, %s15
      %p195 = scmp.lt.s32.totalorder %s194, 3
      %s196 = scalar_select %p195, %s194, 3
      %s197 = smul.addr %s196, 8
      %s198 = smul.addr %s197, 4
      %s199 = scalar_lea.vmem %s0, %s198
      %p200 = pneg %p36
      %p201 = pneg %p33
      %s202 = smul.u32 2, %s15
      %p203 = scmp.lt.s32.totalorder %s202, 3
      %s204 = scalar_select %p203, %s202, 3
      %s205 = smul.addr %s204, 8
      %s206 = smul.addr %s205, 8
      %s207 = scalar_lea.vmem %s1, %s206
      %p208 = pneg %p62
      %p209 = pneg %p59
      %s210 = smul.u32 2, %s15
      %p211 = scmp.lt.s32.totalorder %s210, 3
      %s212 = scalar_select %p211, %s210, 3
      %s213 = smul.addr %s212, 8
      %s214 = smul.addr %s213, 8
      %s215 = scalar_lea.vmem %s2, %s214
      %p216 = pneg %p88
      %p217 = pneg %p85
      %p218 = pneg %p109
      %p219 = pneg %p106
      %p220 = pneg %p135
      %p221 = pneg %p132
      %s222 = smul.u32 2, %s15
      %p223 = scmp.lt.s32.totalorder %s222, 3
      %s224 = scalar_select %p223, %s222, 3
      %s225 = smul.addr %s224, 8
      %s226 = smul.addr %s225, 8
      %s227 = scalar_lea.vmem %s4, %s226
      %s228 = smul.u32 2, %s15
      %p229 = scmp.lt.s32.totalorder %s228, 3
      %s230 = scalar_select %p229, %s228, 3
      %s231 = smul.addr %s230, 8
      %s232 = smul.addr %s231, 4
      %s233 = scalar_lea.vmem %s0, %s232
      %s234 = smul.u32 2, %s15
      %s235 = smul.u32 2, %s15
      %p236 = scmp.lt.s32.totalorder %s235, 3
      %s237 = scalar_select %p236, %s235, 3
      %s238 = smul.addr %s237, 8
      %s239 = smul.addr %s238, 8
      %s240 = scalar_lea.vmem %s1, %s239
      %s241 = smul.u32 2, %s15
      %s242 = smul.u32 2, %s15
      %p243 = scmp.lt.s32.totalorder %s242, 3
      %s244 = scalar_select %p243, %s242, 3
      %s245 = smul.addr %s244, 8
      %s246 = smul.addr %s245, 8
      %s247 = scalar_lea.vmem %s2, %s246
      %s248 = smul.u32 2, %s15
      %s249 = smul.u32 2, %s15
      %p250 = scmp.lt.s32.totalorder %s249, 3
      %s251 = scalar_select %p250, %s249, 3
      %s252 = smul.addr %s251, 8
      %s253 = smul.addr %s252, 8
      %s254 = scalar_lea.vmem %s4, %s253
      %s255 = smul.u32 2, %s15
      %v256 = vld [vmem:[%s233] sm:$0xff]
      %v257 = vld [vmem:[%s233 + $0x8] sm:$0xff]
      %v258 = vld [vmem:[%s233 + $0x10] sm:$0xff]
      %v259 = vld [vmem:[%s233 + $0x18] sm:$0xff]
      %v260 = vld [vmem:[%s233 + $0x20] sm:$0xff]
      %v261 = vld [vmem:[%s233 + $0x28] sm:$0xff]
      %v262 = vld [vmem:[%s233 + $0x30] sm:$0xff]
      %v263 = vld [vmem:[%s233 + $0x38] sm:$0xff]
      %v264 = vunpack.c.l.bf16 %v256
      %v265 = vunpack.c.h.bf16 %v256
      %v266 = vunpack.c.l.bf16 %v257
      %v267 = vunpack.c.h.bf16 %v257
      %v268 = vunpack.c.l.bf16 %v258
      %v269 = vunpack.c.h.bf16 %v258
      %v270 = vunpack.c.l.bf16 %v259
      %v271 = vunpack.c.h.bf16 %v259
      %v272 = vunpack.c.l.bf16 %v260
      %v273 = vunpack.c.h.bf16 %v260
      %v274 = vunpack.c.l.bf16 %v261
      %v275 = vunpack.c.h.bf16 %v261
      %v276 = vunpack.c.l.bf16 %v262
      %v277 = vunpack.c.h.bf16 %v262
      %v278 = vunpack.c.l.bf16 %v263
      %v279 = vunpack.c.h.bf16 %v263
      %v280 = vld [vmem:[%s3] sm:$0xff]
      %v281 = vld [vmem:[%s3 + $0x8] sm:$0xff]
      %v282 = vld [vmem:[%s3 + $0x10] sm:$0xff]
      %v283 = vld [vmem:[%s3 + $0x18] sm:$0xff]
      %285 = vset.pattern.permute.xlu0 0
      %286 = vperm.xlu0 %285, %v280
      %v287 = vpop.permute.xlu0 %286
      %290 = vset.pattern.permute.xlu0 0
      %291 = vperm.xlu0 %290, %v281
      %v292 = vpop.permute.xlu0 %291
      %295 = vset.pattern.permute.xlu0 0
      %296 = vperm.xlu0 %295, %v282
      %v297 = vpop.permute.xlu0 %296
      %300 = vset.pattern.permute.xlu0 0
      %301 = vperm.xlu0 %300, %v283
      %v302 = vpop.permute.xlu0 %301
      %v304 = vmul.f32 %v264, %v287
      %v305 = vmul.f32 %v265, %v287
      %v306 = vmul.f32 %v266, %v292
      %v307 = vmul.f32 %v267, %v292
      %v308 = vmul.f32 %v268, %v297
      %v309 = vmul.f32 %v269, %v297
      %v310 = vmul.f32 %v270, %v302
      %v311 = vmul.f32 %v271, %v302
      %v312 = vmul.f32 %v272, %v287
      %v313 = vmul.f32 %v273, %v287
      %v314 = vmul.f32 %v274, %v292
      %v315 = vmul.f32 %v275, %v292
      %v316 = vmul.f32 %v276, %v297
      %v317 = vmul.f32 %v277, %v297
      %v318 = vmul.f32 %v278, %v302
      %v319 = vmul.f32 %v279, %v302
      %s320 = scalar_lea.vmem %s3, 32
      %v321 = vld [vmem:[%s320] sm:$0xff]
      %v322 = vld [vmem:[%s320 + $0x8] sm:$0xff]
      %v323 = vld [vmem:[%s320 + $0x10] sm:$0xff]
      %v324 = vld [vmem:[%s320 + $0x18] sm:$0xff]
      %326 = vset.pattern.permute.xlu0 0
      %327 = vperm.xlu0 %326, %v321
      %v328 = vpop.permute.xlu0 %327
      %331 = vset.pattern.permute.xlu0 0
      %332 = vperm.xlu0 %331, %v322
      %v333 = vpop.permute.xlu0 %332
      %336 = vset.pattern.permute.xlu0 0
      %337 = vperm.xlu0 %336, %v323
      %v338 = vpop.permute.xlu0 %337
      %341 = vset.pattern.permute.xlu0 0
      %342 = vperm.xlu0 %341, %v324
      %v343 = vpop.permute.xlu0 %342
      %v345 = vadd.f32 %v304, %v328
      %v346 = vadd.f32 %v305, %v328
      %v347 = vadd.f32 %v306, %v333
      %v348 = vadd.f32 %v307, %v333
      %v349 = vadd.f32 %v308, %v338
      %v350 = vadd.f32 %v309, %v338
      %v351 = vadd.f32 %v310, %v343
      %v352 = vadd.f32 %v311, %v343
      %v353 = vadd.f32 %v312, %v328
      %v354 = vadd.f32 %v313, %v328
      %v355 = vadd.f32 %v314, %v333
      %v356 = vadd.f32 %v315, %v333
      %v357 = vadd.f32 %v316, %v338
      %v358 = vadd.f32 %v317, %v338
      %v359 = vadd.f32 %v318, %v343
      %v360 = vadd.f32 %v319, %v343
      %v361 = vld [vmem:[%s240] sm:$0xff]
      %v362 = vld [vmem:[%s240 + $0x8] sm:$0xff]
      %v363 = vld [vmem:[%s240 + $0x10] sm:$0xff]
      %v364 = vld [vmem:[%s240 + $0x18] sm:$0xff]
      %v365 = vld [vmem:[%s240 + $0x20] sm:$0xff]
      %v366 = vld [vmem:[%s240 + $0x28] sm:$0xff]
      %v367 = vld [vmem:[%s240 + $0x30] sm:$0xff]
      %v368 = vld [vmem:[%s240 + $0x38] sm:$0xff]
      %v369 = vld [vmem:[%s240 + $0x40] sm:$0xff]
      %v370 = vld [vmem:[%s240 + $0x48] sm:$0xff]
      %v371 = vld [vmem:[%s240 + $0x50] sm:$0xff]
      %v372 = vld [vmem:[%s240 + $0x58] sm:$0xff]
      %v373 = vld [vmem:[%s240 + $0x60] sm:$0xff]
      %v374 = vld [vmem:[%s240 + $0x68] sm:$0xff]
      %v375 = vld [vmem:[%s240 + $0x70] sm:$0xff]
      %v376 = vld [vmem:[%s240 + $0x78] sm:$0xff]
      %s377 = scalar_lea.vmem %s3, 64
      %v378 = vld [vmem:[%s377] sm:$0xff]
      %v379 = vld [vmem:[%s377 + $0x8] sm:$0xff]
      %v380 = vld [vmem:[%s377 + $0x10] sm:$0xff]
      %v381 = vld [vmem:[%s377 + $0x18] sm:$0xff]
      %383 = vset.pattern.permute.xlu0 0
      %384 = vperm.xlu0 %383, %v378
      %v385 = vpop.permute.xlu0 %384
      %388 = vset.pattern.permute.xlu0 0
      %389 = vperm.xlu0 %388, %v379
      %v390 = vpop.permute.xlu0 %389
      %393 = vset.pattern.permute.xlu0 0
      %394 = vperm.xlu0 %393, %v380
      %v395 = vpop.permute.xlu0 %394
      %398 = vset.pattern.permute.xlu0 0
      %399 = vperm.xlu0 %398, %v381
      %v400 = vpop.permute.xlu0 %399
      %v402 = vmul.f32 %v361, %v385
      %v403 = vmul.f32 %v362, %v385
      %v404 = vmul.f32 %v363, %v390
      %v405 = vmul.f32 %v364, %v390
      %v406 = vmul.f32 %v365, %v395
      %v407 = vmul.f32 %v366, %v395
      %v408 = vmul.f32 %v367, %v400
      %v409 = vmul.f32 %v368, %v400
      %v410 = vmul.f32 %v369, %v385
      %v411 = vmul.f32 %v370, %v385
      %v412 = vmul.f32 %v371, %v390
      %v413 = vmul.f32 %v372, %v390
      %v414 = vmul.f32 %v373, %v395
      %v415 = vmul.f32 %v374, %v395
      %v416 = vmul.f32 %v375, %v400
      %v417 = vmul.f32 %v376, %v400
      %v418 = vadd.f32 %v345, %v402
      %v419 = vadd.f32 %v346, %v403
      %v420 = vadd.f32 %v347, %v404
      %v421 = vadd.f32 %v348, %v405
      %v422 = vadd.f32 %v349, %v406
      %v423 = vadd.f32 %v350, %v407
      %v424 = vadd.f32 %v351, %v408
      %v425 = vadd.f32 %v352, %v409
      %v426 = vadd.f32 %v353, %v410
      %v427 = vadd.f32 %v354, %v411
      %v428 = vadd.f32 %v355, %v412
      %v429 = vadd.f32 %v356, %v413
      %v430 = vadd.f32 %v357, %v414
      %v431 = vadd.f32 %v358, %v415
      %v432 = vadd.f32 %v359, %v416
      %v433 = vadd.f32 %v360, %v417
      %s434 = scalar_lea.vmem %s3, 96
      %v435 = vld [vmem:[%s434] sm:$0xff]
      %v436 = vld [vmem:[%s434 + $0x8] sm:$0xff]
      %v437 = vld [vmem:[%s434 + $0x10] sm:$0xff]
      %v438 = vld [vmem:[%s434 + $0x18] sm:$0xff]
      %440 = vset.pattern.permute.xlu0 0
      %441 = vperm.xlu0 %440, %v435
      %v442 = vpop.permute.xlu0 %441
      %445 = vset.pattern.permute.xlu0 0
      %446 = vperm.xlu0 %445, %v436
      %v447 = vpop.permute.xlu0 %446
      %450 = vset.pattern.permute.xlu0 0
      %451 = vperm.xlu0 %450, %v437
      %v452 = vpop.permute.xlu0 %451
      %455 = vset.pattern.permute.xlu0 0
      %456 = vperm.xlu0 %455, %v438
      %v457 = vpop.permute.xlu0 %456
      %v459 = vadd.f32 %v418, %v442
      %v460 = vadd.f32 %v419, %v442
      %v461 = vadd.f32 %v420, %v447
      %v462 = vadd.f32 %v421, %v447
      %v463 = vadd.f32 %v422, %v452
      %v464 = vadd.f32 %v423, %v452
      %v465 = vadd.f32 %v424, %v457
      %v466 = vadd.f32 %v425, %v457
      %v467 = vadd.f32 %v426, %v442
      %v468 = vadd.f32 %v427, %v442
      %v469 = vadd.f32 %v428, %v447
      %v470 = vadd.f32 %v429, %v447
      %v471 = vadd.f32 %v430, %v452
      %v472 = vadd.f32 %v431, %v452
      %v473 = vadd.f32 %v432, %v457
      %v474 = vadd.f32 %v433, %v457
      %v475 = vld [vmem:[%s247] sm:$0xff]
      %v476 = vld [vmem:[%s247 + $0x8] sm:$0xff]
      %v477 = vld [vmem:[%s247 + $0x10] sm:$0xff]
      %v478 = vld [vmem:[%s247 + $0x18] sm:$0xff]
      %v479 = vld [vmem:[%s247 + $0x20] sm:$0xff]
      %v480 = vld [vmem:[%s247 + $0x28] sm:$0xff]
      %v481 = vld [vmem:[%s247 + $0x30] sm:$0xff]
      %v482 = vld [vmem:[%s247 + $0x38] sm:$0xff]
      %v483 = vld [vmem:[%s247 + $0x40] sm:$0xff]
      %v484 = vld [vmem:[%s247 + $0x48] sm:$0xff]
      %v485 = vld [vmem:[%s247 + $0x50] sm:$0xff]
      %v486 = vld [vmem:[%s247 + $0x58] sm:$0xff]
      %v487 = vld [vmem:[%s247 + $0x60] sm:$0xff]
      %v488 = vld [vmem:[%s247 + $0x68] sm:$0xff]
      %v489 = vld [vmem:[%s247 + $0x70] sm:$0xff]
      %v490 = vld [vmem:[%s247 + $0x78] sm:$0xff]
      %s491 = scalar_lea.vmem %s3, 128
      %v492 = vld [vmem:[%s491] sm:$0xff]
      %v493 = vld [vmem:[%s491 + $0x8] sm:$0xff]
      %v494 = vld [vmem:[%s491 + $0x10] sm:$0xff]
      %v495 = vld [vmem:[%s491 + $0x18] sm:$0xff]
      %497 = vset.pattern.permute.xlu0 0
      %498 = vperm.xlu0 %497, %v492
      %v499 = vpop.permute.xlu0 %498
      %502 = vset.pattern.permute.xlu0 0
      %503 = vperm.xlu0 %502, %v493
      %v504 = vpop.permute.xlu0 %503
      %507 = vset.pattern.permute.xlu0 0
      %508 = vperm.xlu0 %507, %v494
      %v509 = vpop.permute.xlu0 %508
      %512 = vset.pattern.permute.xlu0 0
      %513 = vperm.xlu0 %512, %v495
      %v514 = vpop.permute.xlu0 %513
      %v516 = vmul.f32 %v475, %v499
      %v517 = vmul.f32 %v476, %v499
      %v518 = vmul.f32 %v477, %v504
      %v519 = vmul.f32 %v478, %v504
      %v520 = vmul.f32 %v479, %v509
      %v521 = vmul.f32 %v480, %v509
      %v522 = vmul.f32 %v481, %v514
      %v523 = vmul.f32 %v482, %v514
      %v524 = vmul.f32 %v483, %v499
      %v525 = vmul.f32 %v484, %v499
      %v526 = vmul.f32 %v485, %v504
      %v527 = vmul.f32 %v486, %v504
      %v528 = vmul.f32 %v487, %v509
      %v529 = vmul.f32 %v488, %v509
      %v530 = vmul.f32 %v489, %v514
      %v531 = vmul.f32 %v490, %v514
      %v532 = vadd.f32 %v459, %v516
      %v533 = vadd.f32 %v460, %v517
      %v534 = vadd.f32 %v461, %v518
      %v535 = vadd.f32 %v462, %v519
      %v536 = vadd.f32 %v463, %v520
      %v537 = vadd.f32 %v464, %v521
      %v538 = vadd.f32 %v465, %v522
      %v539 = vadd.f32 %v466, %v523
      %v540 = vadd.f32 %v467, %v524
      %v541 = vadd.f32 %v468, %v525
      %v542 = vadd.f32 %v469, %v526
      %v543 = vadd.f32 %v470, %v527
      %v544 = vadd.f32 %v471, %v528
      %v545 = vadd.f32 %v472, %v529
      %v546 = vadd.f32 %v473, %v530
      %v547 = vadd.f32 %v474, %v531
      %s548 = scalar_lea.vmem %s3, 160
      %v549 = vld [vmem:[%s548] sm:$0xff]
      %v550 = vld [vmem:[%s548 + $0x8] sm:$0xff]
      %v551 = vld [vmem:[%s548 + $0x10] sm:$0xff]
      %v552 = vld [vmem:[%s548 + $0x18] sm:$0xff]
      %554 = vset.pattern.permute.xlu0 0
      %555 = vperm.xlu0 %554, %v549
      %v556 = vpop.permute.xlu0 %555
      %559 = vset.pattern.permute.xlu0 0
      %560 = vperm.xlu0 %559, %v550
      %v561 = vpop.permute.xlu0 %560
      %564 = vset.pattern.permute.xlu0 0
      %565 = vperm.xlu0 %564, %v551
      %v566 = vpop.permute.xlu0 %565
      %569 = vset.pattern.permute.xlu0 0
      %570 = vperm.xlu0 %569, %v552
      %v571 = vpop.permute.xlu0 %570
      %v573 = vadd.f32 %v532, %v556
      %v574 = vadd.f32 %v533, %v556
      %v575 = vadd.f32 %v534, %v561
      %v576 = vadd.f32 %v535, %v561
      %v577 = vadd.f32 %v536, %v566
      %v578 = vadd.f32 %v537, %v566
      %v579 = vadd.f32 %v538, %v571
      %v580 = vadd.f32 %v539, %v571
      %v581 = vadd.f32 %v540, %v556
      %v582 = vadd.f32 %v541, %v556
      %v583 = vadd.f32 %v542, %v561
      %v584 = vadd.f32 %v543, %v561
      %v585 = vadd.f32 %v544, %v566
      %v586 = vadd.f32 %v545, %v566
      %v587 = vadd.f32 %v546, %v571
      %v588 = vadd.f32 %v547, %v571
      %589 = vst [vmem:[%s254] sm:$0xff] %v573
      %590 = vst [vmem:[%s254 + $0x8] sm:$0xff] %v574
      %591 = vst [vmem:[%s254 + $0x10] sm:$0xff] %v575
      %592 = vst [vmem:[%s254 + $0x18] sm:$0xff] %v576
      %593 = vst [vmem:[%s254 + $0x20] sm:$0xff] %v577
      %594 = vst [vmem:[%s254 + $0x28] sm:$0xff] %v578
      %595 = vst [vmem:[%s254 + $0x30] sm:$0xff] %v579
      %596 = vst [vmem:[%s254 + $0x38] sm:$0xff] %v580
      %597 = vst [vmem:[%s254 + $0x40] sm:$0xff] %v581
      %598 = vst [vmem:[%s254 + $0x48] sm:$0xff] %v582
      %599 = vst [vmem:[%s254 + $0x50] sm:$0xff] %v583
      %600 = vst [vmem:[%s254 + $0x58] sm:$0xff] %v584
      %601 = vst [vmem:[%s254 + $0x60] sm:$0xff] %v585
      %602 = vst [vmem:[%s254 + $0x68] sm:$0xff] %v586
      %603 = vst [vmem:[%s254 + $0x70] sm:$0xff] %v587
      %604 = vst [vmem:[%s254 + $0x78] sm:$0xff] %v588
      %s605 = smul.u32 2, %s15
      %p606 = scmp.lt.s32.totalorder %s605, 3
      %s607 = scalar_select %p606, %s605, 3
      %s608 = smul.addr %s607, 8
      %s609 = smul.addr %s608, 8
      %s610 = scalar_lea.vmem %s4, %s609
      // Predicated region
      $region37: #{fatm_forward.7} parent=35 // pred_check
        %p611 = pneg %p132
      $region38: #{fatm_forward.7} parent=35 // pred_check_branch
        %613 = sbr.rel (%p611) target = $region40
      $region39: #{fatm_forward.7} parent=35 // pred_region
        %s614 = smul.u32 2, %s15
      $region40: #{fatm_forward.7} parent=35 // pred_fallthru
        _
    $region36: #{fatm_forward.7} parent=5 // pred_fallthru
      _
    %p615 = scmp.le.s32.totalorder 2, %s10
    // Predicated region
    $region41: #{fatm_forward.7} parent=5 // pred_check
      %p616 = pneg %p615
    $region42: #{fatm_forward.7} parent=5 // pred_check_branch
      %618 = sbr.rel (%p616) target = $region44
    $region43: #{fatm_forward.7} parent=5 // pred_region
      %s619 = ssub.s32 %s10, 2
      // Predicated region
      $region45: #{fatm_forward.7} parent=43 // pred_check
        %p620 = pneg %p138
      $region46: #{fatm_forward.7} parent=43 // pred_check_branch
        %622 = sbr.rel (%p620) target = $region48
      $region47: #{fatm_forward.7} parent=43 // pred_region
        %s623 = smul.u32 2, %s16
        %p624 = scmp.lt.s32.totalorder %s623, 3
        %s625 = scalar_select %p624, %s623, 3
        %s626 = smul.addr %s625, 8
        %s627 = smul.addr %s626, 8
        %s628 = scalar_lea.vmem %s4, %s627
      $region48: #{fatm_forward.7} parent=43 // pred_fallthru
        _
    $region44: #{fatm_forward.7} parent=5 // pred_fallthru
      _
  $region6: #{fatm_forward.7} parent=0 // loop_footer
    %s14 = sadd.s32 1, %s10
  $region7: #{fatm_forward.7} parent=0 // loop_footer_branch
    %9 = sbr.rel target = $region3
  $region8: #{fatm_forward.7} parent=0 // loop_exit
    _

// kernel: fatm_forward.5
$region0: #{fatm_forward.5}
  #allocation0 [shape = 'u32[]', space=smem, size = 0x4, offset = 0x4, fixed_abs, tag = 'smem constant byte address 0x4 - core index']
  #allocation1 [shape = 'u32[144,128]{1,0:T(1,128)}', space=vmem, size = 0x12000, scoped, tag = 'internal scratch']
  #allocation2 [shape = 'f32[1,32,256]{2,1,0:T(8,128)}', space=vmem, size = 0x8000, scoped, tag = 'scratch operand']
  %s0 = inlined_call_operand.vmem [shape: bf16[2,2,32,256], index: 0, kind: input, shape index: {}]
  %s1 = inlined_call_operand.vmem [shape: f32[2,32,1], index: 1, kind: input, shape index: {}]
  %s2 = inlined_call_operand.vmem [shape: f32[32,32], index: 2, kind: input, shape index: {}]
  %s3 = inlined_call_operand.vmem [shape: f32[2,2,32,256], index: 3, kind: output, shape index: {0}]
  %s4 = inlined_call_operand.vmem [shape: f32[2,2,32], index: 4, kind: output, shape index: {1}]
  %5 = xla_tuple %s3, %s4
  %s6 = sld [smem:[#allocation0]]
  $region57: #{fatm_forward.5} parent=0
    _
  %s8 = ssub.s32 1, %s6
  %s9 = scalar_select 0, %s8, %s6
  loop: start=0, step=1, limit=6
  $region2: #{fatm_forward.5} parent=0 // loop_pre_header
    _
  $region3: #{fatm_forward.5} parent=0 // loop_header
    %s11 = sphi 0, %s15
    %p12 = scmp.ge.s32.totalorder %s11, 6
    %s18 = sphi 0, %s30
    %s19 = sphi 0, %s26
    %s20 = sphi 0, %s18
    %s21 = sphi 0, %s19
    %s22 = sphi 0, %s20
    %s23 = sphi 0, %s21
    %s35 = sphi 0, %s37
    %s38 = sphi 0, %s35
    %s39 = sphi 0, %s38
    %s55 = sphi 0, %s39
    %s59 = sphi 0, %s59
    %s61 = sphi 0, %s59
    %s62 = sphi 0, %s61
    %s76 = sphi 0, %s62
    %s80 = sphi 0, %s80
    %s82 = sphi 0, %s80
    %s83 = sphi 0, %s82
    %s97 = sphi 0, %s83
    %s105 = sphi 0, %s107
    %s108 = sphi 0, %s105
    %s109 = sphi 0, %s108
    %s125 = sphi 0, %s109
    %s131 = sphi 0, %s133
    %s134 = sphi 0, %s131
    %s135 = sphi 0, %s134
    %s151 = sphi 0, %s135
  $region4: #{fatm_forward.5} parent=0 // loop_header_branch
    %14 = sbr.rel (%p12) target = $region8
  $region5: #{fatm_forward.5} parent=0 // loop_body
    %s16 = ssub.s32 %s11, 1
    %s17 = ssub.s32 %s11, 2
    %s24 = sadd.s32 1, %s19
    %p25 = scmp.ge.s32.totalorder %s24, 2
    %s26 = scalar_select %p25, 0, %s24
    %s27 = sadd.s32 1, %s18
    %s28 = scalar_select %p25, %s27, %s18
    %p29 = scmp.ge.s32.totalorder %s28, 2
    %s30 = scalar_select %p29, 0, %s28
    %s31 = ssub.s32 %s19, %s26
    %s32 = ssub.s32 %s18, %s30
    %s33 = sor.u32 %s31, %s32
    %p34 = scmp.eq.s32.totalorder %s33, 0
    %s36 = sadd.s32 %s35, 1
    %s37 = scalar_select %p34, %s35, %s36
    %p40 = pneg %p34
    %p41 = scmp.eq.s32.totalorder %s11, 3
    %p42 = por %p40, %p41
    %p43 = scmp.ne.s32.totalorder %s35, %s38
    %p44 = scmp.eq.s32.totalorder %s11, 0
    %p45 = por %p43, %p44
    %p46 = scmp.ne.s32.totalorder %s35, %s38
    %p47 = scmp.eq.s32.totalorder %s16, 3
    %p48 = por %p46, %p47
    %p49 = scmp.ne.s32.totalorder %s38, %s39
    %p50 = scmp.eq.s32.totalorder %s16, 0
    %p51 = por %p49, %p50
    %p52 = scmp.ne.s32.totalorder %s38, %s39
    %p53 = scmp.eq.s32.totalorder %s17, 3
    %p54 = por %p52, %p53
    %p56 = scmp.ne.s32.totalorder %s39, %s55
    %p57 = scmp.eq.s32.totalorder %s17, 0
    %p58 = por %p56, %p57
    %s60 = sadd.s32 %s59, 1
    %p63 = scmp.eq.s32.totalorder %s11, 3
    %p64 = scmp.ne.s32.totalorder %s59, %s61
    %p65 = scmp.eq.s32.totalorder %s11, 0
    %p66 = por %p64, %p65
    %p67 = scmp.ne.s32.totalorder %s59, %s61
    %p68 = scmp.eq.s32.totalorder %s16, 3
    %p69 = por %p67, %p68
    %p70 = scmp.ne.s32.totalorder %s61, %s62
    %p71 = scmp.eq.s32.totalorder %s16, 0
    %p72 = por %p70, %p71
    %p73 = scmp.ne.s32.totalorder %s61, %s62
    %p74 = scmp.eq.s32.totalorder %s17, 3
    %p75 = por %p73, %p74
    %p77 = scmp.ne.s32.totalorder %s62, %s76
    %p78 = scmp.eq.s32.totalorder %s17, 0
    %p79 = por %p77, %p78
    %s81 = sadd.s32 %s80, 1
    %p84 = scmp.eq.s32.totalorder %s11, 3
    %p85 = scmp.ne.s32.totalorder %s80, %s82
    %p86 = scmp.eq.s32.totalorder %s11, 0
    %p87 = por %p85, %p86
    %p88 = scmp.ne.s32.totalorder %s80, %s82
    %p89 = scmp.eq.s32.totalorder %s16, 3
    %p90 = por %p88, %p89
    %p91 = scmp.ne.s32.totalorder %s82, %s83
    %p92 = scmp.eq.s32.totalorder %s16, 0
    %p93 = por %p91, %p92
    %p94 = scmp.ne.s32.totalorder %s82, %s83
    %p95 = scmp.eq.s32.totalorder %s17, 3
    %p96 = por %p94, %p95
    %p98 = scmp.ne.s32.totalorder %s83, %s97
    %p99 = scmp.eq.s32.totalorder %s17, 0
    %p100 = por %p98, %p99
    %s101 = ssub.s32 %s19, %s26
    %s102 = ssub.s32 %s18, %s30
    %s103 = sor.u32 %s101, %s102
    %p104 = scmp.eq.s32.totalorder %s103, 0
    %s106 = sadd.s32 %s105, 1
    %s107 = scalar_select %p104, %s105, %s106
    %p110 = pneg %p104
    %p111 = scmp.eq.s32.totalorder %s11, 3
    %p112 = por %p110, %p111
    %p113 = scmp.ne.s32.totalorder %s105, %s108
    %p114 = scmp.eq.s32.totalorder %s11, 0
    %p115 = por %p113, %p114
    %p116 = scmp.ne.s32.totalorder %s105, %s108
    %p117 = scmp.eq.s32.totalorder %s16, 3
    %p118 = por %p116, %p117
    %p119 = scmp.ne.s32.totalorder %s108, %s109
    %p120 = scmp.eq.s32.totalorder %s16, 0
    %p121 = por %p119, %p120
    %p122 = scmp.ne.s32.totalorder %s108, %s109
    %p123 = scmp.eq.s32.totalorder %s17, 3
    %p124 = por %p122, %p123
    %p126 = scmp.ne.s32.totalorder %s109, %s125
    %p127 = scmp.eq.s32.totalorder %s17, 0
    %p128 = por %p126, %p127
    %s129 = ssub.s32 %s18, %s30
    %p130 = scmp.eq.s32.totalorder %s129, 0
    %s132 = sadd.s32 %s131, 1
    %s133 = scalar_select %p130, %s131, %s132
    %p136 = pneg %p130
    %p137 = scmp.eq.s32.totalorder %s11, 3
    %p138 = por %p136, %p137
    %p139 = scmp.ne.s32.totalorder %s131, %s134
    %p140 = scmp.eq.s32.totalorder %s11, 0
    %p141 = por %p139, %p140
    %p142 = scmp.ne.s32.totalorder %s131, %s134
    %p143 = scmp.eq.s32.totalorder %s16, 3
    %p144 = por %p142, %p143
    %p145 = scmp.ne.s32.totalorder %s134, %s135
    %p146 = scmp.eq.s32.totalorder %s16, 0
    %p147 = por %p145, %p146
    %p148 = scmp.ne.s32.totalorder %s134, %s135
    %p149 = scmp.eq.s32.totalorder %s17, 3
    %p150 = por %p148, %p149
    %p152 = scmp.ne.s32.totalorder %s135, %s151
    %p153 = scmp.eq.s32.totalorder %s17, 0
    %p154 = por %p152, %p153
    %p155 = scmp.le.s32.totalorder 1, %s11
    %p156 = scmp.lt.s32.totalorder %s11, 5
    %p157 = pnand %p155, %p156
    %p158 = pneg %p157
    // Predicated region
    $region9: #{fatm_forward.5} parent=5 // pred_check
      _
    $region10: #{fatm_forward.5} parent=5 // pred_check_branch
      %160 = sbr.rel (%p157) target = $region12
    $region11: #{fatm_forward.5} parent=5 // pred_region
      %s161 = ssub.s32 %s11, 1
      // Predicated region
      $region13: #{fatm_forward.5} parent=11 // pred_check
        %p162 = pneg %p72
      $region14: #{fatm_forward.5} parent=11 // pred_check_branch
        %164 = sbr.rel (%p162) target = $region16
      $region15: #{fatm_forward.5} parent=11 // pred_region
        _
      $region16: #{fatm_forward.5} parent=11 // pred_fallthru
        _
      // Predicated region
      $region17: #{fatm_forward.5} parent=11 // pred_check
        %p165 = pneg %p93
      $region18: #{fatm_forward.5} parent=11 // pred_check_branch
        %167 = sbr.rel (%p165) target = $region20
      $region19: #{fatm_forward.5} parent=11 // pred_region
        _
      $region20: #{fatm_forward.5} parent=11 // pred_fallthru
        _
    $region12: #{fatm_forward.5} parent=5 // pred_fallthru
      _
    %p168 = scmp.lt.s32.totalorder %s11, 4
    // Predicated region
    $region21: #{fatm_forward.5} parent=5 // pred_check
      %p169 = pneg %p168
    $region22: #{fatm_forward.5} parent=5 // pred_check_branch
      %171 = sbr.rel (%p169) target = $region24
    $region23: #{fatm_forward.5} parent=5 // pred_region
      // Predicated region
      $region25: #{fatm_forward.5} parent=23 // pred_check
        %p172 = pneg %p45
      $region26: #{fatm_forward.5} parent=23 // pred_check_branch
        %174 = sbr.rel (%p172) target = $region28
      $region27: #{fatm_forward.5} parent=23 // pred_region
        %p175 = scmp.lt.s32.totalorder %s19, 1
        %s176 = scalar_select %p175, %s19, 1
        %p177 = scmp.lt.s32.totalorder %s18, 1
        %s178 = scalar_select %p177, %s18, 1
        %s179 = smul.addr %s178, 8
        %s180 = smul.addr %s176, 16
        %s181 = sadd.s32 %s179, %s180
        %s182 = smul.addr %s181, 4
        %s183 = scalar_lea.vmem %s0, %s182
      $region28: #{fatm_forward.5} parent=23 // pred_fallthru
        _
    $region24: #{fatm_forward.5} parent=5 // pred_fallthru
      _
    %p184 = scmp.le.s32.totalorder 1, %s11
    %p185 = scmp.lt.s32.totalorder %s11, 5
    %p186 = pnand %p184, %p185
    %p187 = pneg %p186
    // Predicated region
    $region29: #{fatm_forward.5} parent=5 // pred_check
      _
    $region30: #{fatm_forward.5} parent=5 // pred_check_branch
      %189 = sbr.rel (%p186) target = $region32
    $region31: #{fatm_forward.5} parent=5 // pred_region
      %s190 = ssub.s32 %s11, 1
      %p191 = scmp.lt.s32.totalorder %s21, 1
      %s192 = scalar_select %p191, %s21, 1
      %p193 = scmp.lt.s32.totalorder %s20, 1
      %s194 = scalar_select %p193, %s20, 1
      %s195 = smul.addr %s194, 8
      %s196 = smul.addr %s192, 16
      %s197 = sadd.s32 %s195, %s196
      %s198 = smul.addr %s197, 4
      %s199 = scalar_lea.vmem %s0, %s198
      %p200 = pneg %p51
      %p201 = pneg %p48
      %p202 = pneg %p72
      %p203 = pneg %p69
      %p204 = pneg %p93
      %p205 = pneg %p90
      %p206 = pneg %p121
      %p207 = pneg %p118
      %p208 = scmp.lt.s32.totalorder %s21, 1
      %s209 = scalar_select %p208, %s21, 1
      %p210 = scmp.lt.s32.totalorder %s20, 1
      %s211 = scalar_select %p210, %s20, 1
      %s212 = smul.addr %s211, 8
      %s213 = smul.addr %s209, 16
      %s214 = sadd.s32 %s212, %s213
      %s215 = smul.addr %s214, 8
      %s216 = scalar_lea.vmem %s3, %s215
      %p217 = pneg %p147
      %p218 = pneg %p144
      %p219 = scmp.lt.s32.totalorder %s20, 1
      %s220 = scalar_select %p219, %s20, 1
      %s221 = smul.addr %s220, 2
      %s222 = scalar_lea.vmem %s4, %s221
      %p223 = scmp.lt.s32.totalorder %s21, 1
      %s224 = scalar_select %p223, %s21, 1
      %p225 = scmp.lt.s32.totalorder %s20, 1
      %s226 = scalar_select %p225, %s20, 1
      %s227 = smul.addr %s226, 8
      %s228 = smul.addr %s224, 16
      %s229 = sadd.s32 %s227, %s228
      %s230 = smul.addr %s229, 4
      %s231 = scalar_lea.vmem %s0, %s230
      %p232 = scmp.lt.s32.totalorder %s21, 1
      %s233 = scalar_select %p232, %s21, 1
      %p234 = scmp.lt.s32.totalorder %s20, 1
      %s235 = scalar_select %p234, %s20, 1
      %s236 = smul.addr %s235, 8
      %s237 = smul.addr %s233, 16
      %s238 = sadd.s32 %s236, %s237
      %s239 = smul.addr %s238, 8
      %s240 = scalar_lea.vmem %s3, %s239
      %p241 = scmp.lt.s32.totalorder %s20, 1
      %s242 = scalar_select %p241, %s20, 1
      %s243 = smul.addr %s242, 2
      %s244 = scalar_lea.vmem %s4, %s243
      %p245 = scmp.eq.s32.totalorder %s21, 0
      // Predicated region
      $region33: #{fatm_forward.5} parent=31 // pred_check
        %p246 = pneg %p245
      $region34: #{fatm_forward.5} parent=31 // pred_check_branch
        %248 = sbr.rel (%p246) target = $region36
      $region35: #{fatm_forward.5} parent=31 // pred_region
        %249 = vst [vmem:[#allocation2] sm:$0xff] 0.0
        %250 = vst [vmem:[#allocation2 + $0x8] sm:$0xff] 0.0
        %251 = vst [vmem:[#allocation2 + $0x10] sm:$0xff] 0.0
        %252 = vst [vmem:[#allocation2 + $0x18] sm:$0xff] 0.0
        %253 = vst [vmem:[#allocation2 + $0x20] sm:$0xff] 0.0
        %254 = vst [vmem:[#allocation2 + $0x28] sm:$0xff] 0.0
        %255 = vst [vmem:[#allocation2 + $0x30] sm:$0xff] 0.0
        %256 = vst [vmem:[#allocation2 + $0x38] sm:$0xff] 0.0
        %vm257 = vcmask 254976
        %258 = vst.msk [vmem:[%s244] sm:$0x3] %vm257, 0.0
      $region36: #{fatm_forward.5} parent=31 // pred_fallthru
        _
      %v259 = vld [vmem:[%s231] sm:$0xff]
      %v260 = vld [vmem:[%s231 + $0x8] sm:$0xff]
      %v261 = vld [vmem:[%s231 + $0x10] sm:$0xff]
      %v262 = vld [vmem:[%s231 + $0x18] sm:$0xff]
      %v263 = vunpack.c.l.bf16 %v259
      %v264 = vunpack.c.h.bf16 %v259
      %v265 = vunpack.c.l.bf16 %v260
      %v266 = vunpack.c.h.bf16 %v260
      %v267 = vunpack.c.l.bf16 %v261
      %v268 = vunpack.c.h.bf16 %v261
      %v269 = vunpack.c.l.bf16 %v262
      %v270 = vunpack.c.h.bf16 %v262
      %v271 = vld [vmem:[%s1] sm:$0xff]
      %v272 = vld [vmem:[%s1 + $0x8] sm:$0xff]
      %v273 = vld [vmem:[%s1 + $0x10] sm:$0xff]
      %v274 = vld [vmem:[%s1 + $0x18] sm:$0xff]
      %276 = vset.pattern.permute.xlu0 0
      %277 = vperm.xlu0 %276, %v271
      %v278 = vpop.permute.xlu0 %277
      %281 = vset.pattern.permute.xlu0 0
      %282 = vperm.xlu0 %281, %v272
      %v283 = vpop.permute.xlu0 %282
      %286 = vset.pattern.permute.xlu0 0
      %287 = vperm.xlu0 %286, %v273
      %v288 = vpop.permute.xlu0 %287
      %291 = vset.pattern.permute.xlu0 0
      %292 = vperm.xlu0 %291, %v274
      %v293 = vpop.permute.xlu0 %292
      %v295 = vmul.f32 %v263, %v278
      %v296 = vmul.f32 %v264, %v278
      %v297 = vmul.f32 %v265, %v283
      %v298 = vmul.f32 %v266, %v283
      %v299 = vmul.f32 %v267, %v288
      %v300 = vmul.f32 %v268, %v288
      %v301 = vmul.f32 %v269, %v293
      %v302 = vmul.f32 %v270, %v293
      %s303 = scalar_lea.vmem %s1, 32
      %v304 = vld [vmem:[%s303] sm:$0xff]
      %v305 = vld [vmem:[%s303 + $0x8] sm:$0xff]
      %v306 = vld [vmem:[%s303 + $0x10] sm:$0xff]
      %v307 = vld [vmem:[%s303 + $0x18] sm:$0xff]
      %309 = vset.pattern.permute.xlu0 0
      %310 = vperm.xlu0 %309, %v304
      %v311 = vpop.permute.xlu0 %310
      %314 = vset.pattern.permute.xlu0 0
      %315 = vperm.xlu0 %314, %v305
      %v316 = vpop.permute.xlu0 %315
      %319 = vset.pattern.permute.xlu0 0
      %320 = vperm.xlu0 %319, %v306
      %v321 = vpop.permute.xlu0 %320
      %324 = vset.pattern.permute.xlu0 0
      %325 = vperm.xlu0 %324, %v307
      %v326 = vpop.permute.xlu0 %325
      %v328 = vadd.f32 %v295, %v311
      %v329 = vadd.f32 %v296, %v311
      %v330 = vadd.f32 %v297, %v316
      %v331 = vadd.f32 %v298, %v316
      %v332 = vadd.f32 %v299, %v321
      %v333 = vadd.f32 %v300, %v321
      %v334 = vadd.f32 %v301, %v326
      %v335 = vadd.f32 %v302, %v326
      %v336 = vld [vmem:[#allocation2] sm:$0xff]
      %v337 = vld [vmem:[#allocation2 + $0x8] sm:$0xff]
      %v338 = vld [vmem:[#allocation2 + $0x10] sm:$0xff]
      %v339 = vld [vmem:[#allocation2 + $0x18] sm:$0xff]
      %v340 = vld [vmem:[#allocation2 + $0x20] sm:$0xff]
      %v341 = vld [vmem:[#allocation2 + $0x28] sm:$0xff]
      %v342 = vld [vmem:[#allocation2 + $0x30] sm:$0xff]
      %v343 = vld [vmem:[#allocation2 + $0x38] sm:$0xff]
      %v344 = vsub.f32 %v328, %v336
      %v345 = vsub.f32 %v329, %v337
      %v346 = vsub.f32 %v330, %v338
      %v347 = vsub.f32 %v331, %v339
      %v348 = vsub.f32 %v332, %v340
      %v349 = vsub.f32 %v333, %v341
      %v350 = vsub.f32 %v334, %v342
      %v351 = vsub.f32 %v335, %v343
      %v352 = vmul.f32 %v344, 0.5
      %v353 = vmul.f32 %v345, 0.5
      %v354 = vmul.f32 %v346, 0.5
      %v355 = vmul.f32 %v347, 0.5
      %v356 = vmul.f32 %v348, 0.5
      %v357 = vmul.f32 %v349, 0.5
      %v358 = vmul.f32 %v350, 0.5
      %v359 = vmul.f32 %v351, 0.5
      %v360 = vadd.f32 %v336, %v352
      %v361 = vadd.f32 %v337, %v353
      %v362 = vadd.f32 %v338, %v354
      %v363 = vadd.f32 %v339, %v355
      %v364 = vadd.f32 %v340, %v356
      %v365 = vadd.f32 %v341, %v357
      %v366 = vadd.f32 %v342, %v358
      %v367 = vadd.f32 %v343, %v359
      %vm368 = vcmp.ge.f32.partialorder %v360, 1.0
      %vm369 = vcmp.ge.f32.partialorder %v361, 1.0
      %vm370 = vcmp.ge.f32.partialorder %v362, 1.0
      %vm371 = vcmp.ge.f32.partialorder %v363, 1.0
      %vm372 = vcmp.ge.f32.partialorder %v364, 1.0
      %vm373 = vcmp.ge.f32.partialorder %v365, 1.0
      %vm374 = vcmp.ge.f32.partialorder %v366, 1.0
      %vm375 = vcmp.ge.f32.partialorder %v367, 1.0
      %v376 = vsel %vm368, 0.0, %v360
      %v377 = vsel %vm369, 0.0, %v361
      %v378 = vsel %vm370, 0.0, %v362
      %v379 = vsel %vm371, 0.0, %v363
      %v380 = vsel %vm372, 0.0, %v364
      %v381 = vsel %vm373, 0.0, %v365
      %v382 = vsel %vm374, 0.0, %v366
      %v383 = vsel %vm375, 0.0, %v367
      %384 = vst [vmem:[#allocation2] sm:$0xff] %v376
      %385 = vst [vmem:[#allocation2 + $0x8] sm:$0xff] %v377
      %386 = vst [vmem:[#allocation2 + $0x10] sm:$0xff] %v378
      %387 = vst [vmem:[#allocation2 + $0x18] sm:$0xff] %v379
      %388 = vst [vmem:[#allocation2 + $0x20] sm:$0xff] %v380
      %389 = vst [vmem:[#allocation2 + $0x28] sm:$0xff] %v381
      %390 = vst [vmem:[#allocation2 + $0x30] sm:$0xff] %v382
      %391 = vst [vmem:[#allocation2 + $0x38] sm:$0xff] %v383
      %v392 = vsel %vm368, 1.0, 0.0
      %v393 = vsel %vm369, 1.0, 0.0
      %v394 = vsel %vm370, 1.0, 0.0
      %v395 = vsel %vm371, 1.0, 0.0
      %v396 = vsel %vm372, 1.0, 0.0
      %v397 = vsel %vm373, 1.0, 0.0
      %v398 = vsel %vm374, 1.0, 0.0
      %v399 = vsel %vm375, 1.0, 0.0
      %v400 = vld [vmem:[%s2] sm:$0xff]
      %v401 = vld [vmem:[%s2 + $0x8] sm:$0xff]
      %v402 = vld [vmem:[%s2 + $0x10] sm:$0xff]
      %v403 = vld [vmem:[%s2 + $0x18] sm:$0xff]
      %vm404 = vcmask 261120
      %v406 = vsel %vm404, %v400, 0
      %v409 = vsel %vm404, %v401, 0
      %v412 = vsel %vm404, %v402, 0
      %v415 = vsel %vm404, %v403, 0
      %417 = vmatprep.subr.mxu0 %v393
      %418 = vmatpush1.msra.mxu0 %v392
      %419 = vmatprep.subr.mxu0 %v395
      %420 = vmatpush1.msra.mxu0 %v394
      %421 = vmatprep.subr.mxu0 %v397
      %422 = vmatpush1.msra.mxu0 %v396
      %423 = vmatprep.subr.mxu0 %v399
      %424 = vmatpush1.msra.mxu0 %v398
      %425 = vmatprep.subr.mxu0 0.0
      %426 = vmatpush1.msra.mxu0 0.0
      %427 = vmatprep.subr.mxu0 0.0
      %428 = vmatpush1.msra.mxu0 0.0
      %429 = vmatprep.subr.mxu0 0.0
      %430 = vmatpush1.msra.mxu0 0.0
      %431 = vmatprep.subr.mxu0 0.0
      %432 = vmatpush1.msra.mxu0 0.0
      %433 = vmatprep.subr.mxu0 0.0
      %434 = vmatpush1.msra.mxu0 0.0
      %435 = vmatprep.subr.mxu0 0.0
      %436 = vmatpush1.msra.mxu0 0.0
      %437 = vmatprep.subr.mxu0 0.0
      %438 = vmatpush1.msra.mxu0 0.0
      %439 = vmatprep.subr.mxu0 0.0
      %440 = vmatpush1.msra.mxu0 0.0
      %441 = vmatprep.subr.mxu0 0.0
      %442 = vmatpush1.msra.mxu0 0.0
      %443 = vmatprep.subr.mxu0 0.0
      %444 = vmatpush1.msra.mxu0 0.0
      %445 = vmatprep.subr.mxu0 0.0
      %446 = vmatpush1.msra.mxu0 0.0
      %447 = vmatprep.subr.mxu0 0.0
      %448 = vmatpush1.msra.mxu0 0.0
      %449 = vmatprep.subr.mxu0 0.0
      %450 = vmatpush1.msra.mxu0 0.0
      %451 = vmatprep.subr.mxu0 0.0
      %452 = vmatpush1.msra.mxu0 0.0
      %453 = vmatprep.subr.mxu0 0.0
      %454 = vmatpush1.msra.mxu0 0.0
      %455 = vmatprep.subr.mxu0 0.0
      %456 = vmatpush1.msra.mxu0 0.0
      %457 = vmatprep.subr.mxu0 0.0
      %458 = vmatpush1.msra.mxu0 0.0
      %459 = vmatprep.subr.mxu0 0.0
      %460 = vmatpush1.msra.mxu0 0.0
      %461 = vmatprep.subr.mxu0 0.0
      %462 = vmatpush1.msra.mxu0 0.0
      %463 = vmatprep.subr.mxu0 0.0
      %464 = vmatpush1.msra.mxu0 0.0
      %465 = vmatprep.subr.mxu0 0.0
      %466 = vmatpush1.msra.mxu0 0.0
      %467 = vmatprep.subr.mxu0 0.0
      %468 = vmatpush1.msra.mxu0 0.0
      %469 = vmatprep.subr.mxu0 0.0
      %470 = vmatpush1.msra.mxu0 0.0
      %471 = vmatprep.subr.mxu0 0.0
      %472 = vmatpush1.msra.mxu0 0.0
      %473 = vmatprep.subr.mxu0 0.0
      %474 = vmatpush1.msra.mxu0 0.0
      %475 = vmatprep.subr.mxu0 0.0
      %476 = vmatpush1.msra.mxu0 0.0
      %477 = vmatprep.subr.mxu0 0.0
      %478 = vmatpush1.msra.mxu0 0.0
      %479 = vmatprep.subr.mxu0 0.0
      %480 = vmatpush1.msra.mxu0 0.0
      %481 = vmatprep.mubr.f32.mxu0 0.0
      %482 = vmatmul.mubr.f32.gmra.mrb[0].mxu0 %v406
      %v483 = vpop.f32.mrb[0].mxu0
      %v484 = vadd.f32 0.0, %v483
      %v485 = vpop.f32.mrb[0].mxu0
      %v486 = vadd.f32 0.0, %v485
      %487 = vmatprep.mubr.f32.mxu0 0.0
      %488 = vmatmul.mubr.f32.gmra.mrb[0].mxu0 %v409
      %v489 = vpop.f32.mrb[0].mxu0
      %v490 = vadd.f32 0.0, %v489
      %v491 = vpop.f32.mrb[0].mxu0
      %v492 = vadd.f32 0.0, %v491
      %493 = vmatprep.mubr.f32.mxu0 0.0
      %494 = vmatmul.mubr.f32.gmra.mrb[0].mxu0 %v412
      %v495 = vpop.f32.mrb[0].mxu0
      %v496 = vadd.f32 0.0, %v495
      %v497 = vpop.f32.mrb[0].mxu0
      %v498 = vadd.f32 0.0, %v497
      %499 = vmatprep.mubr.f32.mxu0 0.0
      %500 = vmatmul.mubr.f32.gmra.mrb[0].mxu0 %v415
      %v501 = vpop.f32.mrb[0].mxu0
      %v502 = vadd.f32 0.0, %v501
      %v503 = vpop.f32.mrb[0].mxu0
      %v504 = vadd.f32 0.0, %v503
      %505 = vdwg.mxu0
      %506 = vst [vmem:[%s240] sm:$0xff] %v484
      %507 = vst [vmem:[%s240 + $0x8] sm:$0xff] %v486
      %508 = vst [vmem:[%s240 + $0x10] sm:$0xff] %v490
      %509 = vst [vmem:[%s240 + $0x18] sm:$0xff] %v492
      %510 = vst [vmem:[%s240 + $0x20] sm:$0xff] %v496
      %511 = vst [vmem:[%s240 + $0x28] sm:$0xff] %v498
      %512 = vst [vmem:[%s240 + $0x30] sm:$0xff] %v502
      %513 = vst [vmem:[%s240 + $0x38] sm:$0xff] %v504
      %v514 = vld [vmem:[%s240] sm:$0xff]
      %v515 = vld [vmem:[%s240 + $0x8] sm:$0xff]
      %v516 = vld [vmem:[%s240 + $0x10] sm:$0xff]
      %v517 = vld [vmem:[%s240 + $0x18] sm:$0xff]
      %v518 = vld [vmem:[%s240 + $0x20] sm:$0xff]
      %v519 = vld [vmem:[%s240 + $0x28] sm:$0xff]
      %v520 = vld [vmem:[%s240 + $0x30] sm:$0xff]
      %v521 = vld [vmem:[%s240 + $0x38] sm:$0xff]
      %v522 = vld [vmem:[%s244] sm:$0x1]
      %v523 = vadd.f32 %v514, %v515
      %524 = vadd.xlane.f32.xlu0 %v523
      %v525 = vpop.xlane.xlu0 %524
      %v526 = vadd.f32 %v516, %v517
      %527 = vadd.xlane.f32.xlu0 %v526
      %v528 = vpop.xlane.xlu0 %527
      %v529 = vadd.f32 %v518, %v519
      %530 = vadd.xlane.f32.xlu0 %v529
      %v531 = vpop.xlane.xlu0 %530
      %v532 = vadd.f32 %v520, %v521
      %533 = vadd.xlane.f32.xlu0 %v532
      %v534 = vpop.xlane.xlu0 %533
      %v539 = vlaneseq
      %v540 = vand.u32 %v539, 127
      %v541 = vlaneseq
      %v542 = vshrl.u32 %v541, 7
      %v543 = vsub.s32 %v540, %v542
      %v544 = vrot.slane %v525, %v543
      %v545 = vadd.s32 %v540, 4294967288
      %v546 = vlaneseq
      %v547 = vshrl.u32 %v546, 7
      %v548 = vsub.s32 %v545, %v547
      %v549 = vrot.slane %v528, %v548
      %vm550 = vcmask 130112
      %v551 = vsel %vm550, %v549, %v544
      %v552 = vadd.s32 %v540, 4294967280
      %v553 = vlaneseq
      %v554 = vshrl.u32 %v553, 7
      %v555 = vsub.s32 %v552, %v554
      %v556 = vrot.slane %v531, %v555
      %vm557 = vcmask 195712
      %v558 = vsel %vm557, %v556, %v551
      %v559 = vadd.s32 %v540, 4294967272
      %v560 = vlaneseq
      %v561 = vshrl.u32 %v560, 7
      %v562 = vsub.s32 %v559, %v561
      %v563 = vrot.slane %v534, %v562
      %vm564 = vcmask 261312
      %v565 = vsel %vm564, %v563, %v558
      %v567 = vadd.f32 %v522, %v565
      %vm568 = vcmask 253952
      %569 = vst.msk [vmem:[%s244] sm:$0x1] %vm568, %v567
      %v570 = vld [vmem:[%s244 + $0x1] sm:$0x1]
      %v571 = vmul.f32 %v514, %v514
      %v572 = vmul.f32 %v515, %v515
      %v573 = vmul.f32 %v516, %v516
      %v574 = vmul.f32 %v517, %v517
      %v575 = vmul.f32 %v518, %v518
      %v576 = vmul.f32 %v519, %v519
      %v577 = vmul.f32 %v520, %v520
      %v578 = vmul.f32 %v521, %v521
      %v579 = vadd.f32 %v571, %v572
      %580 = vadd.xlane.f32.xlu0 %v579
      %v581 = vpop.xlane.xlu0 %580
      %v582 = vadd.f32 %v573, %v574
      %583 = vadd.xlane.f32.xlu0 %v582
      %v584 = vpop.xlane.xlu0 %583
      %v585 = vadd.f32 %v575, %v576
      %586 = vadd.xlane.f32.xlu0 %v585
      %v587 = vpop.xlane.xlu0 %586
      %v588 = vadd.f32 %v577, %v578
      %589 = vadd.xlane.f32.xlu0 %v588
      %v590 = vpop.xlane.xlu0 %589
      %v595 = vlaneseq
      %v596 = vshrl.u32 %v595, 7
      %v597 = vsub.s32 %v540, %v596
      %v598 = vrot.slane %v581, %v597
      %v599 = vlaneseq
      %v600 = vshrl.u32 %v599, 7
      %v601 = vsub.s32 %v545, %v600
      %v602 = vrot.slane %v584, %v601
      %v603 = vsel %vm550, %v602, %v598
      %v604 = vlaneseq
      %v605 = vshrl.u32 %v604, 7
      %v606 = vsub.s32 %v552, %v605
      %v607 = vrot.slane %v587, %v606
      %v608 = vsel %vm557, %v607, %v603
      %v609 = vlaneseq
      %v610 = vshrl.u32 %v609, 7
      %v611 = vsub.s32 %v559, %v610
      %v612 = vrot.slane %v590, %v611
      %v613 = vsel %vm564, %v612, %v608
      %v615 = vadd.f32 %v570, %v613
      %616 = vst.msk [vmem:[%s244 + $0x1] sm:$0x1] %vm568, %v615
      %p617 = scmp.lt.s32.totalorder %s21, 1
      %s618 = scalar_select %p617, %s21, 1
      %p619 = scmp.lt.s32.totalorder %s20, 1
      %s620 = scalar_select %p619, %s20, 1
      %s621 = smul.addr %s620, 8
      %s622 = smul.addr %s618, 16
      %s623 = sadd.s32 %s621, %s622
      %s624 = smul.addr %s623, 8
      %s625 = scalar_lea.vmem %s3, %s624
      %p626 = scmp.lt.s32.totalorder %s20, 1
      %s627 = scalar_select %p626, %s20, 1
      %s628 = smul.addr %s627, 2
      %s629 = scalar_lea.vmem %s4, %s628
      // Predicated region
      $region37: #{fatm_forward.5} parent=31 // pred_check
        %p630 = pneg %p118
      $region38: #{fatm_forward.5} parent=31 // pred_check_branch
        %632 = sbr.rel (%p630) target = $region40
      $region39: #{fatm_forward.5} parent=31 // pred_region
        _
      $region40: #{fatm_forward.5} parent=31 // pred_fallthru
        _
      // Predicated region
      $region41: #{fatm_forward.5} parent=31 // pred_check
        %p633 = pneg %p144
      $region42: #{fatm_forward.5} parent=31 // pred_check_branch
        %635 = sbr.rel (%p633) target = $region44
      $region43: #{fatm_forward.5} parent=31 // pred_region
        _
      $region44: #{fatm_forward.5} parent=31 // pred_fallthru
        _
    $region32: #{fatm_forward.5} parent=5 // pred_fallthru
      _
    %p636 = scmp.le.s32.totalorder 2, %s11
    // Predicated region
    $region45: #{fatm_forward.5} parent=5 // pred_check
      %p637 = pneg %p636
    $region46: #{fatm_forward.5} parent=5 // pred_check_branch
      %639 = sbr.rel (%p637) target = $region48
    $region47: #{fatm_forward.5} parent=5 // pred_region
      %s640 = ssub.s32 %s11, 2
      // Predicated region
      $region49: #{fatm_forward.5} parent=47 // pred_check
        %p641 = pneg %p124
      $region50: #{fatm_forward.5} parent=47 // pred_check_branch
        %643 = sbr.rel (%p641) target = $region52
      $region51: #{fatm_forward.5} parent=47 // pred_region
        %p644 = scmp.lt.s32.totalorder %s23, 1
        %s645 = scalar_select %p644, %s23, 1
        %p646 = scmp.lt.s32.totalorder %s22, 1
        %s647 = scalar_select %p646, %s22, 1
        %s648 = smul.addr %s647, 8
        %s649 = smul.addr %s645, 16
        %s650 = sadd.s32 %s648, %s649
        %s651 = smul.addr %s650, 8
        %s652 = scalar_lea.vmem %s3, %s651
      $region52: #{fatm_forward.5} parent=47 // pred_fallthru
        _
      // Predicated region
      $region53: #{fatm_forward.5} parent=47 // pred_check
        %p653 = pneg %p150
      $region54: #{fatm_forward.5} parent=47 // pred_check_branch
        %655 = sbr.rel (%p653) target = $region56
      $region55: #{fatm_forward.5} parent=47 // pred_region
        %p656 = scmp.lt.s32.totalorder %s22, 1
        %s657 = scalar_select %p656, %s22, 1
        %s658 = smul.addr %s657, 2
        %s659 = scalar_lea.vmem %s4, %s658
      $region56: #{fatm_forward.5} parent=47 // pred_fallthru
        _
    $region48: #{fatm_forward.5} parent=5 // pred_fallthru
      _
  $region6: #{fatm_forward.5} parent=0 // loop_footer
    %s15 = sadd.s32 1, %s11
  $region7: #{fatm_forward.5} parent=0 // loop_footer_branch
    %10 = sbr.rel target = $region3
  $region8: #{fatm_forward.5} parent=0 // loop_exit
    _

// kernel: fatm_forward.6
$region0: #{fatm_forward.6}
  #allocation0 [shape = 'u32[]', space=smem, size = 0x4, offset = 0x4, fixed_abs, tag = 'smem constant byte address 0x4 - core index']
  #allocation1 [shape = 'u32[144,128]{1,0:T(1,128)}', space=vmem, size = 0x12000, scoped, tag = 'internal scratch']
  #allocation2 [shape = 'f32[32,256]{1,0:T(8,128)}', space=vmem, size = 0x8000, scoped, tag = 'scratch operand']
  %s0 = inlined_call_operand.vmem [shape: f32[2,2,32,256], index: 0, kind: input, shape index: {}]
  %s1 = inlined_call_operand.vmem [shape: f32[2,32,1], index: 1, kind: input, shape index: {}]
  %s2 = inlined_call_operand.vmem [shape: f32[256,256], index: 2, kind: input, shape index: {}]
  %s3 = inlined_call_operand.vmem [shape: bf16[2,2,32,256], index: 3, kind: output, shape index: {0}]
  %s4 = inlined_call_operand.vmem [shape: f32[2,2,32], index: 4, kind: output, shape index: {1}]
  %5 = xla_tuple %s3, %s4
  %s6 = sld [smem:[#allocation0]]
  $region57: #{fatm_forward.6} parent=0
    _
  %s8 = ssub.s32 1, %s6
  %s9 = scalar_select 0, %s8, %s6
  loop: start=0, step=1, limit=6
  $region2: #{fatm_forward.6} parent=0 // loop_pre_header
    _
  $region3: #{fatm_forward.6} parent=0 // loop_header
    %s11 = sphi 0, %s15
    %p12 = scmp.ge.s32.totalorder %s11, 6
    %s18 = sphi 0, %s30
    %s19 = sphi 0, %s26
    %s20 = sphi 0, %s18
    %s21 = sphi 0, %s19
    %s22 = sphi 0, %s20
    %s23 = sphi 0, %s21
    %s35 = sphi 0, %s37
    %s38 = sphi 0, %s35
    %s39 = sphi 0, %s38
    %s55 = sphi 0, %s39
    %s59 = sphi 0, %s59
    %s61 = sphi 0, %s59
    %s62 = sphi 0, %s61
    %s76 = sphi 0, %s62
    %s80 = sphi 0, %s80
    %s82 = sphi 0, %s80
    %s83 = sphi 0, %s82
    %s97 = sphi 0, %s83
    %s105 = sphi 0, %s107
    %s108 = sphi 0, %s105
    %s109 = sphi 0, %s108
    %s125 = sphi 0, %s109
    %s131 = sphi 0, %s133
    %s134 = sphi 0, %s131
    %s135 = sphi 0, %s134
    %s151 = sphi 0, %s135
  $region4: #{fatm_forward.6} parent=0 // loop_header_branch
    %14 = sbr.rel (%p12) target = $region8
  $region5: #{fatm_forward.6} parent=0 // loop_body
    %s16 = ssub.s32 %s11, 1
    %s17 = ssub.s32 %s11, 2
    %s24 = sadd.s32 1, %s19
    %p25 = scmp.ge.s32.totalorder %s24, 2
    %s26 = scalar_select %p25, 0, %s24
    %s27 = sadd.s32 1, %s18
    %s28 = scalar_select %p25, %s27, %s18
    %p29 = scmp.ge.s32.totalorder %s28, 2
    %s30 = scalar_select %p29, 0, %s28
    %s31 = ssub.s32 %s19, %s26
    %s32 = ssub.s32 %s18, %s30
    %s33 = sor.u32 %s31, %s32
    %p34 = scmp.eq.s32.totalorder %s33, 0
    %s36 = sadd.s32 %s35, 1
    %s37 = scalar_select %p34, %s35, %s36
    %p40 = pneg %p34
    %p41 = scmp.eq.s32.totalorder %s11, 3
    %p42 = por %p40, %p41
    %p43 = scmp.ne.s32.totalorder %s35, %s38
    %p44 = scmp.eq.s32.totalorder %s11, 0
    %p45 = por %p43, %p44
    %p46 = scmp.ne.s32.totalorder %s35, %s38
    %p47 = scmp.eq.s32.totalorder %s16, 3
    %p48 = por %p46, %p47
    %p49 = scmp.ne.s32.totalorder %s38, %s39
    %p50 = scmp.eq.s32.totalorder %s16, 0
    %p51 = por %p49, %p50
    %p52 = scmp.ne.s32.totalorder %s38, %s39
    %p53 = scmp.eq.s32.totalorder %s17, 3
    %p54 = por %p52, %p53
    %p56 = scmp.ne.s32.totalorder %s39, %s55
    %p57 = scmp.eq.s32.totalorder %s17, 0
    %p58 = por %p56, %p57
    %s60 = sadd.s32 %s59, 1
    %p63 = scmp.eq.s32.totalorder %s11, 3
    %p64 = scmp.ne.s32.totalorder %s59, %s61
    %p65 = scmp.eq.s32.totalorder %s11, 0
    %p66 = por %p64, %p65
    %p67 = scmp.ne.s32.totalorder %s59, %s61
    %p68 = scmp.eq.s32.totalorder %s16, 3
    %p69 = por %p67, %p68
    %p70 = scmp.ne.s32.totalorder %s61, %s62
    %p71 = scmp.eq.s32.totalorder %s16, 0
    %p72 = por %p70, %p71
    %p73 = scmp.ne.s32.totalorder %s61, %s62
    %p74 = scmp.eq.s32.totalorder %s17, 3
    %p75 = por %p73, %p74
    %p77 = scmp.ne.s32.totalorder %s62, %s76
    %p78 = scmp.eq.s32.totalorder %s17, 0
    %p79 = por %p77, %p78
    %s81 = sadd.s32 %s80, 1
    %p84 = scmp.eq.s32.totalorder %s11, 3
    %p85 = scmp.ne.s32.totalorder %s80, %s82
    %p86 = scmp.eq.s32.totalorder %s11, 0
    %p87 = por %p85, %p86
    %p88 = scmp.ne.s32.totalorder %s80, %s82
    %p89 = scmp.eq.s32.totalorder %s16, 3
    %p90 = por %p88, %p89
    %p91 = scmp.ne.s32.totalorder %s82, %s83
    %p92 = scmp.eq.s32.totalorder %s16, 0
    %p93 = por %p91, %p92
    %p94 = scmp.ne.s32.totalorder %s82, %s83
    %p95 = scmp.eq.s32.totalorder %s17, 3
    %p96 = por %p94, %p95
    %p98 = scmp.ne.s32.totalorder %s83, %s97
    %p99 = scmp.eq.s32.totalorder %s17, 0
    %p100 = por %p98, %p99
    %s101 = ssub.s32 %s19, %s26
    %s102 = ssub.s32 %s18, %s30
    %s103 = sor.u32 %s101, %s102
    %p104 = scmp.eq.s32.totalorder %s103, 0
    %s106 = sadd.s32 %s105, 1
    %s107 = scalar_select %p104, %s105, %s106
    %p110 = pneg %p104
    %p111 = scmp.eq.s32.totalorder %s11, 3
    %p112 = por %p110, %p111
    %p113 = scmp.ne.s32.totalorder %s105, %s108
    %p114 = scmp.eq.s32.totalorder %s11, 0
    %p115 = por %p113, %p114
    %p116 = scmp.ne.s32.totalorder %s105, %s108
    %p117 = scmp.eq.s32.totalorder %s16, 3
    %p118 = por %p116, %p117
    %p119 = scmp.ne.s32.totalorder %s108, %s109
    %p120 = scmp.eq.s32.totalorder %s16, 0
    %p121 = por %p119, %p120
    %p122 = scmp.ne.s32.totalorder %s108, %s109
    %p123 = scmp.eq.s32.totalorder %s17, 3
    %p124 = por %p122, %p123
    %p126 = scmp.ne.s32.totalorder %s109, %s125
    %p127 = scmp.eq.s32.totalorder %s17, 0
    %p128 = por %p126, %p127
    %s129 = ssub.s32 %s18, %s30
    %p130 = scmp.eq.s32.totalorder %s129, 0
    %s132 = sadd.s32 %s131, 1
    %s133 = scalar_select %p130, %s131, %s132
    %p136 = pneg %p130
    %p137 = scmp.eq.s32.totalorder %s11, 3
    %p138 = por %p136, %p137
    %p139 = scmp.ne.s32.totalorder %s131, %s134
    %p140 = scmp.eq.s32.totalorder %s11, 0
    %p141 = por %p139, %p140
    %p142 = scmp.ne.s32.totalorder %s131, %s134
    %p143 = scmp.eq.s32.totalorder %s16, 3
    %p144 = por %p142, %p143
    %p145 = scmp.ne.s32.totalorder %s134, %s135
    %p146 = scmp.eq.s32.totalorder %s16, 0
    %p147 = por %p145, %p146
    %p148 = scmp.ne.s32.totalorder %s134, %s135
    %p149 = scmp.eq.s32.totalorder %s17, 3
    %p150 = por %p148, %p149
    %p152 = scmp.ne.s32.totalorder %s135, %s151
    %p153 = scmp.eq.s32.totalorder %s17, 0
    %p154 = por %p152, %p153
    %p155 = scmp.le.s32.totalorder 1, %s11
    %p156 = scmp.lt.s32.totalorder %s11, 5
    %p157 = pnand %p155, %p156
    %p158 = pneg %p157
    // Predicated region
    $region9: #{fatm_forward.6} parent=5 // pred_check
      _
    $region10: #{fatm_forward.6} parent=5 // pred_check_branch
      %160 = sbr.rel (%p157) target = $region12
    $region11: #{fatm_forward.6} parent=5 // pred_region
      %s161 = ssub.s32 %s11, 1
      // Predicated region
      $region13: #{fatm_forward.6} parent=11 // pred_check
        %p162 = pneg %p72
      $region14: #{fatm_forward.6} parent=11 // pred_check_branch
        %164 = sbr.rel (%p162) target = $region16
      $region15: #{fatm_forward.6} parent=11 // pred_region
        _
      $region16: #{fatm_forward.6} parent=11 // pred_fallthru
        _
      // Predicated region
      $region17: #{fatm_forward.6} parent=11 // pred_check
        %p165 = pneg %p93
      $region18: #{fatm_forward.6} parent=11 // pred_check_branch
        %167 = sbr.rel (%p165) target = $region20
      $region19: #{fatm_forward.6} parent=11 // pred_region
        _
      $region20: #{fatm_forward.6} parent=11 // pred_fallthru
        _
    $region12: #{fatm_forward.6} parent=5 // pred_fallthru
      _
    %p168 = scmp.lt.s32.totalorder %s11, 4
    // Predicated region
    $region21: #{fatm_forward.6} parent=5 // pred_check
      %p169 = pneg %p168
    $region22: #{fatm_forward.6} parent=5 // pred_check_branch
      %171 = sbr.rel (%p169) target = $region24
    $region23: #{fatm_forward.6} parent=5 // pred_region
      // Predicated region
      $region25: #{fatm_forward.6} parent=23 // pred_check
        %p172 = pneg %p45
      $region26: #{fatm_forward.6} parent=23 // pred_check_branch
        %174 = sbr.rel (%p172) target = $region28
      $region27: #{fatm_forward.6} parent=23 // pred_region
        %p175 = scmp.lt.s32.totalorder %s19, 1
        %s176 = scalar_select %p175, %s19, 1
        %p177 = scmp.lt.s32.totalorder %s18, 1
        %s178 = scalar_select %p177, %s18, 1
        %s179 = smul.addr %s178, 8
        %s180 = smul.addr %s176, 16
        %s181 = sadd.s32 %s179, %s180
        %s182 = smul.addr %s181, 8
        %s183 = scalar_lea.vmem %s0, %s182
      $region28: #{fatm_forward.6} parent=23 // pred_fallthru
        _
    $region24: #{fatm_forward.6} parent=5 // pred_fallthru
      _
    %p184 = scmp.le.s32.totalorder 1, %s11
    %p185 = scmp.lt.s32.totalorder %s11, 5
    %p186 = pnand %p184, %p185
    %p187 = pneg %p186
    // Predicated region
    $region29: #{fatm_forward.6} parent=5 // pred_check
      _
    $region30: #{fatm_forward.6} parent=5 // pred_check_branch
      %189 = sbr.rel (%p186) target = $region32
    $region31: #{fatm_forward.6} parent=5 // pred_region
      %s190 = ssub.s32 %s11, 1
      %p191 = scmp.lt.s32.totalorder %s21, 1
      %s192 = scalar_select %p191, %s21, 1
      %p193 = scmp.lt.s32.totalorder %s20, 1
      %s194 = scalar_select %p193, %s20, 1
      %s195 = smul.addr %s194, 8
      %s196 = smul.addr %s192, 16
      %s197 = sadd.s32 %s195, %s196
      %s198 = smul.addr %s197, 8
      %s199 = scalar_lea.vmem %s0, %s198
      %p200 = pneg %p51
      %p201 = pneg %p48
      %p202 = pneg %p72
      %p203 = pneg %p69
      %p204 = pneg %p93
      %p205 = pneg %p90
      %p206 = pneg %p121
      %p207 = pneg %p118
      %p208 = scmp.lt.s32.totalorder %s21, 1
      %s209 = scalar_select %p208, %s21, 1
      %p210 = scmp.lt.s32.totalorder %s20, 1
      %s211 = scalar_select %p210, %s20, 1
      %s212 = smul.addr %s211, 8
      %s213 = smul.addr %s209, 16
      %s214 = sadd.s32 %s212, %s213
      %s215 = smul.addr %s214, 4
      %s216 = scalar_lea.vmem %s3, %s215
      %p217 = pneg %p147
      %p218 = pneg %p144
      %p219 = scmp.lt.s32.totalorder %s20, 1
      %s220 = scalar_select %p219, %s20, 1
      %s221 = smul.addr %s220, 2
      %s222 = scalar_lea.vmem %s4, %s221
      %p223 = scmp.lt.s32.totalorder %s21, 1
      %s224 = scalar_select %p223, %s21, 1
      %p225 = scmp.lt.s32.totalorder %s20, 1
      %s226 = scalar_select %p225, %s20, 1
      %s227 = smul.addr %s226, 8
      %s228 = smul.addr %s224, 16
      %s229 = sadd.s32 %s227, %s228
      %s230 = smul.addr %s229, 8
      %s231 = scalar_lea.vmem %s0, %s230
      %p232 = scmp.lt.s32.totalorder %s21, 1
      %s233 = scalar_select %p232, %s21, 1
      %p234 = scmp.lt.s32.totalorder %s20, 1
      %s235 = scalar_select %p234, %s20, 1
      %s236 = smul.addr %s235, 8
      %s237 = smul.addr %s233, 16
      %s238 = sadd.s32 %s236, %s237
      %s239 = smul.addr %s238, 4
      %s240 = scalar_lea.vmem %s3, %s239
      %p241 = scmp.lt.s32.totalorder %s20, 1
      %s242 = scalar_select %p241, %s20, 1
      %s243 = smul.addr %s242, 2
      %s244 = scalar_lea.vmem %s4, %s243
      %p245 = scmp.eq.s32.totalorder %s21, 0
      // Predicated region
      $region33: #{fatm_forward.6} parent=31 // pred_check
        %p246 = pneg %p245
      $region34: #{fatm_forward.6} parent=31 // pred_check_branch
        %248 = sbr.rel (%p246) target = $region36
      $region35: #{fatm_forward.6} parent=31 // pred_region
        %249 = vst [vmem:[#allocation2] sm:$0xff] 0.0
        %250 = vst [vmem:[#allocation2 + $0x8] sm:$0xff] 0.0
        %251 = vst [vmem:[#allocation2 + $0x10] sm:$0xff] 0.0
        %252 = vst [vmem:[#allocation2 + $0x18] sm:$0xff] 0.0
        %253 = vst [vmem:[#allocation2 + $0x20] sm:$0xff] 0.0
        %254 = vst [vmem:[#allocation2 + $0x28] sm:$0xff] 0.0
        %255 = vst [vmem:[#allocation2 + $0x30] sm:$0xff] 0.0
        %256 = vst [vmem:[#allocation2 + $0x38] sm:$0xff] 0.0
        %vm257 = vcmask 254976
        %258 = vst.msk [vmem:[%s244] sm:$0x3] %vm257, 0.0
      $region36: #{fatm_forward.6} parent=31 // pred_fallthru
        _
      %v259 = vld [vmem:[%s231] sm:$0xff]
      %v260 = vld [vmem:[%s231 + $0x8] sm:$0xff]
      %v261 = vld [vmem:[%s231 + $0x10] sm:$0xff]
      %v262 = vld [vmem:[%s231 + $0x18] sm:$0xff]
      %v263 = vld [vmem:[%s231 + $0x20] sm:$0xff]
      %v264 = vld [vmem:[%s231 + $0x28] sm:$0xff]
      %v265 = vld [vmem:[%s231 + $0x30] sm:$0xff]
      %v266 = vld [vmem:[%s231 + $0x38] sm:$0xff]
      %v267 = vld [vmem:[%s1] sm:$0xff]
      %v268 = vld [vmem:[%s1 + $0x8] sm:$0xff]
      %v269 = vld [vmem:[%s1 + $0x10] sm:$0xff]
      %v270 = vld [vmem:[%s1 + $0x18] sm:$0xff]
      %272 = vset.pattern.permute.xlu0 0
      %273 = vperm.xlu0 %272, %v267
      %v274 = vpop.permute.xlu0 %273
      %277 = vset.pattern.permute.xlu0 0
      %278 = vperm.xlu0 %277, %v268
      %v279 = vpop.permute.xlu0 %278
      %282 = vset.pattern.permute.xlu0 0
      %283 = vperm.xlu0 %282, %v269
      %v284 = vpop.permute.xlu0 %283
      %287 = vset.pattern.permute.xlu0 0
      %288 = vperm.xlu0 %287, %v270
      %v289 = vpop.permute.xlu0 %288
      %v291 = vmul.f32 %v259, %v274
      %v292 = vmul.f32 %v260, %v274
      %v293 = vmul.f32 %v261, %v279
      %v294 = vmul.f32 %v262, %v279
      %v295 = vmul.f32 %v263, %v284
      %v296 = vmul.f32 %v264, %v284
      %v297 = vmul.f32 %v265, %v289
      %v298 = vmul.f32 %v266, %v289
      %s299 = scalar_lea.vmem %s1, 32
      %v300 = vld [vmem:[%s299] sm:$0xff]
      %v301 = vld [vmem:[%s299 + $0x8] sm:$0xff]
      %v302 = vld [vmem:[%s299 + $0x10] sm:$0xff]
      %v303 = vld [vmem:[%s299 + $0x18] sm:$0xff]
      %305 = vset.pattern.permute.xlu0 0
      %306 = vperm.xlu0 %305, %v300
      %v307 = vpop.permute.xlu0 %306
      %310 = vset.pattern.permute.xlu0 0
      %311 = vperm.xlu0 %310, %v301
      %v312 = vpop.permute.xlu0 %311
      %315 = vset.pattern.permute.xlu0 0
      %316 = vperm.xlu0 %315, %v302
      %v317 = vpop.permute.xlu0 %316
      %320 = vset.pattern.permute.xlu0 0
      %321 = vperm.xlu0 %320, %v303
      %v322 = vpop.permute.xlu0 %321
      %v324 = vadd.f32 %v291, %v307
      %v325 = vadd.f32 %v292, %v307
      %v326 = vadd.f32 %v293, %v312
      %v327 = vadd.f32 %v294, %v312
      %v328 = vadd.f32 %v295, %v317
      %v329 = vadd.f32 %v296, %v317
      %v330 = vadd.f32 %v297, %v322
      %v331 = vadd.f32 %v298, %v322
      %v332 = vld [vmem:[%s2] sm:$0xff]
      %v333 = vld [vmem:[%s2 + $0x8] sm:$0xff]
      %v334 = vld [vmem:[%s2 + $0x10] sm:$0xff]
      %v335 = vld [vmem:[%s2 + $0x18] sm:$0xff]
      %v336 = vld [vmem:[%s2 + $0x20] sm:$0xff]
      %v337 = vld [vmem:[%s2 + $0x28] sm:$0xff]
      %v338 = vld [vmem:[%s2 + $0x30] sm:$0xff]
      %v339 = vld [vmem:[%s2 + $0x38] sm:$0xff]
      %v340 = vld [vmem:[%s2 + $0x40] sm:$0xff]
      %v341 = vld [vmem:[%s2 + $0x48] sm:$0xff]
      %v342 = vld [vmem:[%s2 + $0x50] sm:$0xff]
      %v343 = vld [vmem:[%s2 + $0x58] sm:$0xff]
      %v344 = vld [vmem:[%s2 + $0x60] sm:$0xff]
      %v345 = vld [vmem:[%s2 + $0x68] sm:$0xff]
      %v346 = vld [vmem:[%s2 + $0x70] sm:$0xff]
      %v347 = vld [vmem:[%s2 + $0x78] sm:$0xff]
      %v348 = vld [vmem:[%s2 + $0x80] sm:$0xff]
      %v349 = vld [vmem:[%s2 + $0x88] sm:$0xff]
      %v350 = vld [vmem:[%s2 + $0x90] sm:$0xff]
      %v351 = vld [vmem:[%s2 + $0x98] sm:$0xff]
      %v352 = vld [vmem:[%s2 + $0xa0] sm:$0xff]
      %v353 = vld [vmem:[%s2 + $0xa8] sm:$0xff]
      %v354 = vld [vmem:[%s2 + $0xb0] sm:$0xff]
      %v355 = vld [vmem:[%s2 + $0xb8] sm:$0xff]
      %v356 = vld [vmem:[%s2 + $0xc0] sm:$0xff]
      %v357 = vld [vmem:[%s2 + $0xc8] sm:$0xff]
      %v358 = vld [vmem:[%s2 + $0xd0] sm:$0xff]
      %v359 = vld [vmem:[%s2 + $0xd8] sm:$0xff]
      %v360 = vld [vmem:[%s2 + $0xe0] sm:$0xff]
      %v361 = vld [vmem:[%s2 + $0xe8] sm:$0xff]
      %v362 = vld [vmem:[%s2 + $0xf0] sm:$0xff]
      %v363 = vld [vmem:[%s2 + $0xf8] sm:$0xff]
      %v364 = vld [vmem:[%s2 + $0x100] sm:$0xff]
      %v365 = vld [vmem:[%s2 + $0x108] sm:$0xff]
      %v366 = vld [vmem:[%s2 + $0x110] sm:$0xff]
      %v367 = vld [vmem:[%s2 + $0x118] sm:$0xff]
      %v368 = vld [vmem:[%s2 + $0x120] sm:$0xff]
      %v369 = vld [vmem:[%s2 + $0x128] sm:$0xff]
      %v370 = vld [vmem:[%s2 + $0x130] sm:$0xff]
      %v371 = vld [vmem:[%s2 + $0x138] sm:$0xff]
      %v372 = vld [vmem:[%s2 + $0x140] sm:$0xff]
      %v373 = vld [vmem:[%s2 + $0x148] sm:$0xff]
      %v374 = vld [vmem:[%s2 + $0x150] sm:$0xff]
      %v375 = vld [vmem:[%s2 + $0x158] sm:$0xff]
      %v376 = vld [vmem:[%s2 + $0x160] sm:$0xff]
      %v377 = vld [vmem:[%s2 + $0x168] sm:$0xff]
      %v378 = vld [vmem:[%s2 + $0x170] sm:$0xff]
      %v379 = vld [vmem:[%s2 + $0x178] sm:$0xff]
      %v380 = vld [vmem:[%s2 + $0x180] sm:$0xff]
      %v381 = vld [vmem:[%s2 + $0x188] sm:$0xff]
      %v382 = vld [vmem:[%s2 + $0x190] sm:$0xff]
      %v383 = vld [vmem:[%s2 + $0x198] sm:$0xff]
      %v384 = vld [vmem:[%s2 + $0x1a0] sm:$0xff]
      %v385 = vld [vmem:[%s2 + $0x1a8] sm:$0xff]
      %v386 = vld [vmem:[%s2 + $0x1b0] sm:$0xff]
      %v387 = vld [vmem:[%s2 + $0x1b8] sm:$0xff]
      %v388 = vld [vmem:[%s2 + $0x1c0] sm:$0xff]
      %v389 = vld [vmem:[%s2 + $0x1c8] sm:$0xff]
      %v390 = vld [vmem:[%s2 + $0x1d0] sm:$0xff]
      %v391 = vld [vmem:[%s2 + $0x1d8] sm:$0xff]
      %v392 = vld [vmem:[%s2 + $0x1e0] sm:$0xff]
      %v393 = vld [vmem:[%s2 + $0x1e8] sm:$0xff]
      %v394 = vld [vmem:[%s2 + $0x1f0] sm:$0xff]
      %v395 = vld [vmem:[%s2 + $0x1f8] sm:$0xff]
      %396 = vmatprep.subr.mxu0 %v333
      %397 = vmatpush1.msra.mxu0 %v332
      %398 = vmatprep.subr.mxu0 %v335
      %399 = vmatpush1.msra.mxu0 %v334
      %400 = vmatprep.subr.mxu0 %v337
      %401 = vmatpush1.msra.mxu0 %v336
      %402 = vmatprep.subr.mxu0 %v339
      %403 = vmatpush1.msra.mxu0 %v338
      %404 = vmatprep.subr.mxu0 %v341
      %405 = vmatpush1.msra.mxu0 %v340
      %406 = vmatprep.subr.mxu0 %v343
      %407 = vmatpush1.msra.mxu0 %v342
      %408 = vmatprep.subr.mxu0 %v345
      %409 = vmatpush1.msra.mxu0 %v344
      %410 = vmatprep.subr.mxu0 %v347
      %411 = vmatpush1.msra.mxu0 %v346
      %412 = vmatprep.subr.mxu0 %v349
      %413 = vmatpush1.msra.mxu0 %v348
      %414 = vmatprep.subr.mxu0 %v351
      %415 = vmatpush1.msra.mxu0 %v350
      %416 = vmatprep.subr.mxu0 %v353
      %417 = vmatpush1.msra.mxu0 %v352
      %418 = vmatprep.subr.mxu0 %v355
      %419 = vmatpush1.msra.mxu0 %v354
      %420 = vmatprep.subr.mxu0 %v357
      %421 = vmatpush1.msra.mxu0 %v356
      %422 = vmatprep.subr.mxu0 %v359
      %423 = vmatpush1.msra.mxu0 %v358
      %424 = vmatprep.subr.mxu0 %v361
      %425 = vmatpush1.msra.mxu0 %v360
      %426 = vmatprep.subr.mxu0 %v363
      %427 = vmatpush1.msra.mxu0 %v362
      %428 = vmatprep.subr.mxu0 %v365
      %429 = vmatpush1.msra.mxu0 %v364
      %430 = vmatprep.subr.mxu0 %v367
      %431 = vmatpush1.msra.mxu0 %v366
      %432 = vmatprep.subr.mxu0 %v369
      %433 = vmatpush1.msra.mxu0 %v368
      %434 = vmatprep.subr.mxu0 %v371
      %435 = vmatpush1.msra.mxu0 %v370
      %436 = vmatprep.subr.mxu0 %v373
      %437 = vmatpush1.msra.mxu0 %v372
      %438 = vmatprep.subr.mxu0 %v375
      %439 = vmatpush1.msra.mxu0 %v374
      %440 = vmatprep.subr.mxu0 %v377
      %441 = vmatpush1.msra.mxu0 %v376
      %442 = vmatprep.subr.mxu0 %v379
      %443 = vmatpush1.msra.mxu0 %v378
      %444 = vmatprep.subr.mxu0 %v381
      %445 = vmatpush1.msra.mxu0 %v380
      %446 = vmatprep.subr.mxu0 %v383
      %447 = vmatpush1.msra.mxu0 %v382
      %448 = vmatprep.subr.mxu0 %v385
      %449 = vmatpush1.msra.mxu0 %v384
      %450 = vmatprep.subr.mxu0 %v387
      %451 = vmatpush1.msra.mxu0 %v386
      %452 = vmatprep.subr.mxu0 %v389
      %453 = vmatpush1.msra.mxu0 %v388
      %454 = vmatprep.subr.mxu0 %v391
      %455 = vmatpush1.msra.mxu0 %v390
      %456 = vmatprep.subr.mxu0 %v393
      %457 = vmatpush1.msra.mxu0 %v392
      %458 = vmatprep.subr.mxu0 %v395
      %459 = vmatpush1.msra.mxu0 %v394
      %460 = vmatprep.mubr.f32.mxu0 %v325
      %461 = vmatmul.mubr.f32.gmra.mrb[0].mxu0 %v324
      %v462 = vpop.f32.mrb[0].mxu0
      %v463 = vadd.f32 0.0, %v462
      %v464 = vpop.f32.mrb[0].mxu0
      %v465 = vadd.f32 0.0, %v464
      %466 = vmatprep.mubr.f32.mxu0 %v327
      %467 = vmatmul.mubr.f32.gmra.mrb[0].mxu0 %v326
      %v468 = vpop.f32.mrb[0].mxu0
      %v469 = vadd.f32 0.0, %v468
      %v470 = vpop.f32.mrb[0].mxu0
      %v471 = vadd.f32 0.0, %v470
      %472 = vmatprep.mubr.f32.mxu0 %v329
      %473 = vmatmul.mubr.f32.gmra.mrb[0].mxu0 %v328
      %v474 = vpop.f32.mrb[0].mxu0
      %v475 = vadd.f32 0.0, %v474
      %v476 = vpop.f32.mrb[0].mxu0
      %v477 = vadd.f32 0.0, %v476
      %478 = vmatprep.mubr.f32.mxu0 %v331
      %479 = vmatmul.mubr.f32.gmra.mrb[0].mxu0 %v330
      %v480 = vpop.f32.mrb[0].mxu0
      %v481 = vadd.f32 0.0, %v480
      %v482 = vpop.f32.mrb[0].mxu0
      %v483 = vadd.f32 0.0, %v482
      %484 = vdwg.mxu0
      %v485 = vld [vmem:[#allocation2] sm:$0xff]
      %v486 = vld [vmem:[#allocation2 + $0x8] sm:$0xff]
      %v487 = vld [vmem:[#allocation2 + $0x10] sm:$0xff]
      %v488 = vld [vmem:[#allocation2 + $0x18] sm:$0xff]
      %v489 = vld [vmem:[#allocation2 + $0x20] sm:$0xff]
      %v490 = vld [vmem:[#allocation2 + $0x28] sm:$0xff]
      %v491 = vld [vmem:[#allocation2 + $0x30] sm:$0xff]
      %v492 = vld [vmem:[#allocation2 + $0x38] sm:$0xff]
      %v493 = vadd.f32 %v485, %v463
      %v494 = vadd.f32 %v486, %v465
      %v495 = vadd.f32 %v487, %v469
      %v496 = vadd.f32 %v488, %v471
      %v497 = vadd.f32 %v489, %v475
      %v498 = vadd.f32 %v490, %v477
      %v499 = vadd.f32 %v491, %v481
      %v500 = vadd.f32 %v492, %v483
      %vm501 = vcmp.ge.f32.partialorder %v493, 1.0
      %vm502 = vcmp.ge.f32.partialorder %v494, 1.0
      %vm503 = vcmp.ge.f32.partialorder %v495, 1.0
      %vm504 = vcmp.ge.f32.partialorder %v496, 1.0
      %vm505 = vcmp.ge.f32.partialorder %v497, 1.0
      %vm506 = vcmp.ge.f32.partialorder %v498, 1.0
      %vm507 = vcmp.ge.f32.partialorder %v499, 1.0
      %vm508 = vcmp.ge.f32.partialorder %v500, 1.0
      %vm509 = vcmp.le.f32.partialorder %v493, -1.0
      %vm510 = vcmp.le.f32.partialorder %v494, -1.0
      %vm511 = vcmp.le.f32.partialorder %v495, -1.0
      %vm512 = vcmp.le.f32.partialorder %v496, -1.0
      %vm513 = vcmp.le.f32.partialorder %v497, -1.0
      %vm514 = vcmp.le.f32.partialorder %v498, -1.0
      %vm515 = vcmp.le.f32.partialorder %v499, -1.0
      %vm516 = vcmp.le.f32.partialorder %v500, -1.0
      %vm517 = vmor %vm501, %vm509
      %vm518 = vmor %vm502, %vm510
      %vm519 = vmor %vm503, %vm511
      %vm520 = vmor %vm504, %vm512
      %vm521 = vmor %vm505, %vm513
      %vm522 = vmor %vm506, %vm514
      %vm523 = vmor %vm507, %vm515
      %vm524 = vmor %vm508, %vm516
      %v525 = vsel %vm517, 0.0, %v493
      %v526 = vsel %vm518, 0.0, %v494
      %v527 = vsel %vm519, 0.0, %v495
      %v528 = vsel %vm520, 0.0, %v496
      %v529 = vsel %vm521, 0.0, %v497
      %v530 = vsel %vm522, 0.0, %v498
      %v531 = vsel %vm523, 0.0, %v499
      %v532 = vsel %vm524, 0.0, %v500
      %533 = vst [vmem:[#allocation2] sm:$0xff] %v525
      %534 = vst [vmem:[#allocation2 + $0x8] sm:$0xff] %v526
      %535 = vst [vmem:[#allocation2 + $0x10] sm:$0xff] %v527
      %536 = vst [vmem:[#allocation2 + $0x18] sm:$0xff] %v528
      %537 = vst [vmem:[#allocation2 + $0x20] sm:$0xff] %v529
      %538 = vst [vmem:[#allocation2 + $0x28] sm:$0xff] %v530
      %539 = vst [vmem:[#allocation2 + $0x30] sm:$0xff] %v531
      %540 = vst [vmem:[#allocation2 + $0x38] sm:$0xff] %v532
      %v541 = vsel %vm509, -1.0, 0.0
      %v542 = vsel %vm510, -1.0, 0.0
      %v543 = vsel %vm511, -1.0, 0.0
      %v544 = vsel %vm512, -1.0, 0.0
      %v545 = vsel %vm513, -1.0, 0.0
      %v546 = vsel %vm514, -1.0, 0.0
      %v547 = vsel %vm515, -1.0, 0.0
      %v548 = vsel %vm516, -1.0, 0.0
      %v549 = vsel %vm501, 1.0, %v541
      %v550 = vsel %vm502, 1.0, %v542
      %v551 = vsel %vm503, 1.0, %v543
      %v552 = vsel %vm504, 1.0, %v544
      %v553 = vsel %vm505, 1.0, %v545
      %v554 = vsel %vm506, 1.0, %v546
      %v555 = vsel %vm507, 1.0, %v547
      %v556 = vsel %vm508, 1.0, %v548
      %v557 = vpack.c.bf16 %v551, %v549
      %v558 = vpack.c.bf16 %v552, %v550
      %v559 = vpack.c.bf16 %v555, %v553
      %v560 = vpack.c.bf16 %v556, %v554
      %v565 = vunpack.c.l.b16 %v557
      %v566 = vunpack.c.l.b16 %v558
      %v567 = vunpack.c.h.b16 %v557
      %v568 = vunpack.c.h.b16 %v558
      %v569 = vunpack.c.l.b16 %v559
      %v570 = vunpack.c.l.b16 %v560
      %v571 = vunpack.c.h.b16 %v559
      %v572 = vunpack.c.h.b16 %v560
      %v573 = vpack.c.b16 %v566, %v565
      %v574 = vpack.c.b16 %v568, %v567
      %v575 = vpack.c.b16 %v570, %v569
      %v576 = vpack.c.b16 %v572, %v571
      %581 = vst [vmem:[%s240] sm:$0xff] %v573
      %582 = vst [vmem:[%s240 + $0x8] sm:$0xff] %v574
      %583 = vst [vmem:[%s240 + $0x10] sm:$0xff] %v575
      %584 = vst [vmem:[%s240 + $0x18] sm:$0xff] %v576
      %v585 = vld [vmem:[%s244] sm:$0x1]
      %v586 = vadd.f32 %v549, %v550
      %587 = vadd.xlane.f32.xlu0 %v586
      %v588 = vpop.xlane.xlu0 %587
      %v589 = vadd.f32 %v551, %v552
      %590 = vadd.xlane.f32.xlu0 %v589
      %v591 = vpop.xlane.xlu0 %590
      %v592 = vadd.f32 %v553, %v554
      %593 = vadd.xlane.f32.xlu0 %v592
      %v594 = vpop.xlane.xlu0 %593
      %v595 = vadd.f32 %v555, %v556
      %596 = vadd.xlane.f32.xlu0 %v595
      %v597 = vpop.xlane.xlu0 %596
      %v602 = vlaneseq
      %v603 = vand.u32 %v602, 127
      %v604 = vlaneseq
      %v605 = vshrl.u32 %v604, 7
      %v606 = vsub.s32 %v603, %v605
      %v607 = vrot.slane %v588, %v606
      %v608 = vadd.s32 %v603, 4294967288
      %v609 = vlaneseq
      %v610 = vshrl.u32 %v609, 7
      %v611 = vsub.s32 %v608, %v610
      %v612 = vrot.slane %v591, %v611
      %vm613 = vcmask 130112
      %v614 = vsel %vm613, %v612, %v607
      %v615 = vadd.s32 %v603, 4294967280
      %v616 = vlaneseq
      %v617 = vshrl.u32 %v616, 7
      %v618 = vsub.s32 %v615, %v617
      %v619 = vrot.slane %v594, %v618
      %vm620 = vcmask 195712
      %v621 = vsel %vm620, %v619, %v614
      %v622 = vadd.s32 %v603, 4294967272
      %v623 = vlaneseq
      %v624 = vshrl.u32 %v623, 7
      %v625 = vsub.s32 %v622, %v624
      %v626 = vrot.slane %v597, %v625
      %vm627 = vcmask 261312
      %v628 = vsel %vm627, %v626, %v621
      %v630 = vadd.f32 %v585, %v628
      %vm631 = vcmask 253952
      %632 = vst.msk [vmem:[%s244] sm:$0x1] %vm631, %v630
      %v633 = vld [vmem:[%s244 + $0x1] sm:$0x1]
      %v634 = vmul.f32 %v549, %v549
      %v635 = vmul.f32 %v550, %v550
      %v636 = vmul.f32 %v551, %v551
      %v637 = vmul.f32 %v552, %v552
      %v638 = vmul.f32 %v553, %v553
      %v639 = vmul.f32 %v554, %v554
      %v640 = vmul.f32 %v555, %v555
      %v641 = vmul.f32 %v556, %v556
      %v642 = vadd.f32 %v634, %v635
      %643 = vadd.xlane.f32.xlu0 %v642
      %v644 = vpop.xlane.xlu0 %643
      %v645 = vadd.f32 %v636, %v637
      %646 = vadd.xlane.f32.xlu0 %v645
      %v647 = vpop.xlane.xlu0 %646
      %v648 = vadd.f32 %v638, %v639
      %649 = vadd.xlane.f32.xlu0 %v648
      %v650 = vpop.xlane.xlu0 %649
      %v651 = vadd.f32 %v640, %v641
      %652 = vadd.xlane.f32.xlu0 %v651
      %v653 = vpop.xlane.xlu0 %652
      %v658 = vlaneseq
      %v659 = vshrl.u32 %v658, 7
      %v660 = vsub.s32 %v603, %v659
      %v661 = vrot.slane %v644, %v660
      %v662 = vlaneseq
      %v663 = vshrl.u32 %v662, 7
      %v664 = vsub.s32 %v608, %v663
      %v665 = vrot.slane %v647, %v664
      %v666 = vsel %vm613, %v665, %v661
      %v667 = vlaneseq
      %v668 = vshrl.u32 %v667, 7
      %v669 = vsub.s32 %v615, %v668
      %v670 = vrot.slane %v650, %v669
      %v671 = vsel %vm620, %v670, %v666
      %v672 = vlaneseq
      %v673 = vshrl.u32 %v672, 7
      %v674 = vsub.s32 %v622, %v673
      %v675 = vrot.slane %v653, %v674
      %v676 = vsel %vm627, %v675, %v671
      %v678 = vadd.f32 %v633, %v676
      %679 = vst.msk [vmem:[%s244 + $0x1] sm:$0x1] %vm631, %v678
      %p680 = scmp.lt.s32.totalorder %s21, 1
      %s681 = scalar_select %p680, %s21, 1
      %p682 = scmp.lt.s32.totalorder %s20, 1
      %s683 = scalar_select %p682, %s20, 1
      %s684 = smul.addr %s683, 8
      %s685 = smul.addr %s681, 16
      %s686 = sadd.s32 %s684, %s685
      %s687 = smul.addr %s686, 4
      %s688 = scalar_lea.vmem %s3, %s687
      %p689 = scmp.lt.s32.totalorder %s20, 1
      %s690 = scalar_select %p689, %s20, 1
      %s691 = smul.addr %s690, 2
      %s692 = scalar_lea.vmem %s4, %s691
      // Predicated region
      $region37: #{fatm_forward.6} parent=31 // pred_check
        %p693 = pneg %p118
      $region38: #{fatm_forward.6} parent=31 // pred_check_branch
        %695 = sbr.rel (%p693) target = $region40
      $region39: #{fatm_forward.6} parent=31 // pred_region
        _
      $region40: #{fatm_forward.6} parent=31 // pred_fallthru
        _
      // Predicated region
      $region41: #{fatm_forward.6} parent=31 // pred_check
        %p696 = pneg %p144
      $region42: #{fatm_forward.6} parent=31 // pred_check_branch
        %698 = sbr.rel (%p696) target = $region44
      $region43: #{fatm_forward.6} parent=31 // pred_region
        _
      $region44: #{fatm_forward.6} parent=31 // pred_fallthru
        _
    $region32: #{fatm_forward.6} parent=5 // pred_fallthru
      _
    %p699 = scmp.le.s32.totalorder 2, %s11
    // Predicated region
    $region45: #{fatm_forward.6} parent=5 // pred_check
      %p700 = pneg %p699
    $region46: #{fatm_forward.6} parent=5 // pred_check_branch
      %702 = sbr.rel (%p700) target = $region48
    $region47: #{fatm_forward.6} parent=5 // pred_region
      %s703 = ssub.s32 %s11, 2
      // Predicated region
      $region49: #{fatm_forward.6} parent=47 // pred_check
        %p704 = pneg %p124
      $region50: #{fatm_forward.6} parent=47 // pred_check_branch
        %706 = sbr.rel (%p704) target = $region52
      $region51: #{fatm_forward.6} parent=47 // pred_region
        %p707 = scmp.lt.s32.totalorder %s23, 1
        %s708 = scalar_select %p707, %s23, 1
        %p709 = scmp.lt.s32.totalorder %s22, 1
        %s710 = scalar_select %p709, %s22, 1
        %s711 = smul.addr %s710, 8
        %s712 = smul.addr %s708, 16
        %s713 = sadd.s32 %s711, %s712
        %s714 = smul.addr %s713, 4
        %s715 = scalar_lea.vmem %s3, %s714
      $region52: #{fatm_forward.6} parent=47 // pred_fallthru
        _
      // Predicated region
      $region53: #{fatm_forward.6} parent=47 // pred_check
        %p716 = pneg %p150
      $region54: #{fatm_forward.6} parent=47 // pred_check_branch
        %718 = sbr.rel (%p716) target = $region56
      $region55: #{fatm_forward.6} parent=47 // pred_region
        %p719 = scmp.lt.s32.totalorder %s22, 1
        %s720 = scalar_select %p719, %s22, 1
        %s721 = smul.addr %s720, 2
        %s722 = scalar_lea.vmem %s4, %s721
      $region56: #{fatm_forward.6} parent=47 // pred_fallthru
        _
    $region48: #{fatm_forward.6} parent=5 // pred_fallthru
      _
  $region6: #{fatm_forward.6} parent=0 // loop_footer
    %s15 = sadd.s32 1, %s11
  $region7: #{fatm_forward.6} parent=0 // loop_footer_branch
    %10 = sbr.rel target = $region3
  $region8: #{fatm_forward.6} parent=0 // loop_exit
    _

// kernel: fatm_forward.4
$region0: #{fatm_forward.4}
  #allocation0 [shape = 'u32[]', space=smem, size = 0x4, offset = 0x4, fixed_abs, tag = 'smem constant byte address 0x4 - core index']
  #allocation1 [shape = 'u32[144,128]{1,0:T(1,128)}', space=vmem, size = 0x12000, scoped, tag = 'internal scratch']
  #allocation2 [shape = 'f32[1,32,256]{2,1,0:T(8,128)}', space=vmem, size = 0x8000, scoped, tag = 'scratch operand']
  #allocation3 [shape = 'f32[32,256]{1,0:T(8,128)}', space=vmem, size = 0x8000, scoped, tag = 'scratch operand']
  #allocation4 [shape = 'f32[288,256]{1,0:T(8,128)}', space=vmem, size = 0x48000, scoped, tag = 'scratch operand']
  %s0 = inlined_call_operand.vmem [shape: f32[2,2,32,256], index: 0, kind: input, shape index: {}]
  %s1 = inlined_call_operand.vmem [shape: f32[256,256], index: 1, kind: input, shape index: {}]
  %s2 = inlined_call_operand.vmem [shape: f32[32,32], index: 2, kind: input, shape index: {}]
  %s3 = inlined_call_operand.vmem [shape: f32[32,288], index: 3, kind: input, shape index: {}]
  %s4 = inlined_call_operand.vmem [shape: f32[9,256], index: 4, kind: input, shape index: {}]
  %s5 = inlined_call_operand.vmem [shape: bf16[2,2,32,256], index: 5, kind: output, shape index: {0}]
  %s6 = inlined_call_operand.vmem [shape: f32[2,2,32,256], index: 6, kind: output, shape index: {1}]
  %s7 = inlined_call_operand.vmem [shape: f32[2,2,32,256], index: 7, kind: output, shape index: {2}]
  %s8 = inlined_call_operand.vmem [shape: f32[2,2,32], index: 8, kind: output, shape index: {3}]
  %s9 = inlined_call_operand.vmem [shape: f32[2,2,32], index: 9, kind: output, shape index: {4}]
  %s10 = inlined_call_operand.vmem [shape: f32[2,2,32], index: 10, kind: output, shape index: {5}]
  %11 = xla_tuple %s5, %s6, %s7, %s8, %s9, %s10
  %s12 = sld [smem:[#allocation0]]
  $region97: #{fatm_forward.4} parent=0
    _
  %s14 = ssub.s32 1, %s12
  %s15 = scalar_select 0, %s14, %s12
  loop: start=0, step=1, limit=6
  $region2: #{fatm_forward.4} parent=0 // loop_pre_header
    _
  $region3: #{fatm_forward.4} parent=0 // loop_header
    %s17 = sphi 0, %s21
    %p18 = scmp.ge.s32.totalorder %s17, 6
    %s24 = sphi 0, %s36
    %s25 = sphi 0, %s32
    %s26 = sphi 0, %s24
    %s27 = sphi 0, %s25
    %s28 = sphi 0, %s26
    %s29 = sphi 0, %s27
    %s41 = sphi 0, %s43
    %s44 = sphi 0, %s41
    %s45 = sphi 0, %s44
    %s61 = sphi 0, %s45
    %s65 = sphi 0, %s65
    %s67 = sphi 0, %s65
    %s68 = sphi 0, %s67
    %s82 = sphi 0, %s68
    %s86 = sphi 0, %s86
    %s88 = sphi 0, %s86
    %s89 = sphi 0, %s88
    %s103 = sphi 0, %s89
    %s107 = sphi 0, %s107
    %s109 = sphi 0, %s107
    %s110 = sphi 0, %s109
    %s124 = sphi 0, %s110
    %s128 = sphi 0, %s128
    %s130 = sphi 0, %s128
    %s131 = sphi 0, %s130
    %s145 = sphi 0, %s131
    %s153 = sphi 0, %s155
    %s156 = sphi 0, %s153
    %s157 = sphi 0, %s156
    %s173 = sphi 0, %s157
    %s181 = sphi 0, %s183
    %s184 = sphi 0, %s181
    %s185 = sphi 0, %s184
    %s201 = sphi 0, %s185
    %s209 = sphi 0, %s211
    %s212 = sphi 0, %s209
    %s213 = sphi 0, %s212
    %s229 = sphi 0, %s213
    %s235 = sphi 0, %s237
    %s238 = sphi 0, %s235
    %s239 = sphi 0, %s238
    %s255 = sphi 0, %s239
    %s261 = sphi 0, %s263
    %s264 = sphi 0, %s261
    %s265 = sphi 0, %s264
    %s281 = sphi 0, %s265
    %s287 = sphi 0, %s289
    %s290 = sphi 0, %s287
    %s291 = sphi 0, %s290
    %s307 = sphi 0, %s291
  $region4: #{fatm_forward.4} parent=0 // loop_header_branch
    %20 = sbr.rel (%p18) target = $region8
  $region5: #{fatm_forward.4} parent=0 // loop_body
    %s22 = ssub.s32 %s17, 1
    %s23 = ssub.s32 %s17, 2
    %s30 = sadd.s32 1, %s25
    %p31 = scmp.ge.s32.totalorder %s30, 2
    %s32 = scalar_select %p31, 0, %s30
    %s33 = sadd.s32 1, %s24
    %s34 = scalar_select %p31, %s33, %s24
    %p35 = scmp.ge.s32.totalorder %s34, 2
    %s36 = scalar_select %p35, 0, %s34
    %s37 = ssub.s32 %s25, %s32
    %s38 = ssub.s32 %s24, %s36
    %s39 = sor.u32 %s37, %s38
    %p40 = scmp.eq.s32.totalorder %s39, 0
    %s42 = sadd.s32 %s41, 1
    %s43 = scalar_select %p40, %s41, %s42
    %p46 = pneg %p40
    %p47 = scmp.eq.s32.totalorder %s17, 3
    %p48 = por %p46, %p47
    %p49 = scmp.ne.s32.totalorder %s41, %s44
    %p50 = scmp.eq.s32.totalorder %s17, 0
    %p51 = por %p49, %p50
    %p52 = scmp.ne.s32.totalorder %s41, %s44
    %p53 = scmp.eq.s32.totalorder %s22, 3
    %p54 = por %p52, %p53
    %p55 = scmp.ne.s32.totalorder %s44, %s45
    %p56 = scmp.eq.s32.totalorder %s22, 0
    %p57 = por %p55, %p56
    %p58 = scmp.ne.s32.totalorder %s44, %s45
    %p59 = scmp.eq.s32.totalorder %s23, 3
    %p60 = por %p58, %p59
    %p62 = scmp.ne.s32.totalorder %s45, %s61
    %p63 = scmp.eq.s32.totalorder %s23, 0
    %p64 = por %p62, %p63
    %s66 = sadd.s32 %s65, 1
    %p69 = scmp.eq.s32.totalorder %s17, 3
    %p70 = scmp.ne.s32.totalorder %s65, %s67
    %p71 = scmp.eq.s32.totalorder %s17, 0
    %p72 = por %p70, %p71
    %p73 = scmp.ne.s32.totalorder %s65, %s67
    %p74 = scmp.eq.s32.totalorder %s22, 3
    %p75 = por %p73, %p74
    %p76 = scmp.ne.s32.totalorder %s67, %s68
    %p77 = scmp.eq.s32.totalorder %s22, 0
    %p78 = por %p76, %p77
    %p79 = scmp.ne.s32.totalorder %s67, %s68
    %p80 = scmp.eq.s32.totalorder %s23, 3
    %p81 = por %p79, %p80
    %p83 = scmp.ne.s32.totalorder %s68, %s82
    %p84 = scmp.eq.s32.totalorder %s23, 0
    %p85 = por %p83, %p84
    %s87 = sadd.s32 %s86, 1
    %p90 = scmp.eq.s32.totalorder %s17, 3
    %p91 = scmp.ne.s32.totalorder %s86, %s88
    %p92 = scmp.eq.s32.totalorder %s17, 0
    %p93 = por %p91, %p92
    %p94 = scmp.ne.s32.totalorder %s86, %s88
    %p95 = scmp.eq.s32.totalorder %s22, 3
    %p96 = por %p94, %p95
    %p97 = scmp.ne.s32.totalorder %s88, %s89
    %p98 = scmp.eq.s32.totalorder %s22, 0
    %p99 = por %p97, %p98
    %p100 = scmp.ne.s32.totalorder %s88, %s89
    %p101 = scmp.eq.s32.totalorder %s23, 3
    %p102 = por %p100, %p101
    %p104 = scmp.ne.s32.totalorder %s89, %s103
    %p105 = scmp.eq.s32.totalorder %s23, 0
    %p106 = por %p104, %p105
    %s108 = sadd.s32 %s107, 1
    %p111 = scmp.eq.s32.totalorder %s17, 3
    %p112 = scmp.ne.s32.totalorder %s107, %s109
    %p113 = scmp.eq.s32.totalorder %s17, 0
    %p114 = por %p112, %p113
    %p115 = scmp.ne.s32.totalorder %s107, %s109
    %p116 = scmp.eq.s32.totalorder %s22, 3
    %p117 = por %p115, %p116
    %p118 = scmp.ne.s32.totalorder %s109, %s110
    %p119 = scmp.eq.s32.totalorder %s22, 0
    %p120 = por %p118, %p119
    %p121 = scmp.ne.s32.totalorder %s109, %s110
    %p122 = scmp.eq.s32.totalorder %s23, 3
    %p123 = por %p121, %p122
    %p125 = scmp.ne.s32.totalorder %s110, %s124
    %p126 = scmp.eq.s32.totalorder %s23, 0
    %p127 = por %p125, %p126
    %s129 = sadd.s32 %s128, 1
    %p132 = scmp.eq.s32.totalorder %s17, 3
    %p133 = scmp.ne.s32.totalorder %s128, %s130
    %p134 = scmp.eq.s32.totalorder %s17, 0
    %p135 = por %p133, %p134
    %p136 = scmp.ne.s32.totalorder %s128, %s130
    %p137 = scmp.eq.s32.totalorder %s22, 3
    %p138 = por %p136, %p137
    %p139 = scmp.ne.s32.totalorder %s130, %s131
    %p140 = scmp.eq.s32.totalorder %s22, 0
    %p141 = por %p139, %p140
    %p142 = scmp.ne.s32.totalorder %s130, %s131
    %p143 = scmp.eq.s32.totalorder %s23, 3
    %p144 = por %p142, %p143
    %p146 = scmp.ne.s32.totalorder %s131, %s145
    %p147 = scmp.eq.s32.totalorder %s23, 0
    %p148 = por %p146, %p147
    %s149 = ssub.s32 %s25, %s32
    %s150 = ssub.s32 %s24, %s36
    %s151 = sor.u32 %s149, %s150
    %p152 = scmp.eq.s32.totalorder %s151, 0
    %s154 = sadd.s32 %s153, 1
    %s155 = scalar_select %p152, %s153, %s154
    %p158 = pneg %p152
    %p159 = scmp.eq.s32.totalorder %s17, 3
    %p160 = por %p158, %p159
    %p161 = scmp.ne.s32.totalorder %s153, %s156
    %p162 = scmp.eq.s32.totalorder %s17, 0
    %p163 = por %p161, %p162
    %p164 = scmp.ne.s32.totalorder %s153, %s156
    %p165 = scmp.eq.s32.totalorder %s22, 3
    %p166 = por %p164, %p165
    %p167 = scmp.ne.s32.totalorder %s156, %s157
    %p168 = scmp.eq.s32.totalorder %s22, 0
    %p169 = por %p167, %p168
    %p170 = scmp.ne.s32.totalorder %s156, %s157
    %p171 = scmp.eq.s32.totalorder %s23, 3
    %p172 = por %p170, %p171
    %p174 = scmp.ne.s32.totalorder %s157, %s173
    %p175 = scmp.eq.s32.totalorder %s23, 0
    %p176 = por %p174, %p175
    %s177 = ssub.s32 %s25, %s32
    %s178 = ssub.s32 %s24, %s36
    %s179 = sor.u32 %s177, %s178
    %p180 = scmp.eq.s32.totalorder %s179, 0
    %s182 = sadd.s32 %s181, 1
    %s183 = scalar_select %p180, %s181, %s182
    %p186 = pneg %p180
    %p187 = scmp.eq.s32.totalorder %s17, 3
    %p188 = por %p186, %p187
    %p189 = scmp.ne.s32.totalorder %s181, %s184
    %p190 = scmp.eq.s32.totalorder %s17, 0
    %p191 = por %p189, %p190
    %p192 = scmp.ne.s32.totalorder %s181, %s184
    %p193 = scmp.eq.s32.totalorder %s22, 3
    %p194 = por %p192, %p193
    %p195 = scmp.ne.s32.totalorder %s184, %s185
    %p196 = scmp.eq.s32.totalorder %s22, 0
    %p197 = por %p195, %p196
    %p198 = scmp.ne.s32.totalorder %s184, %s185
    %p199 = scmp.eq.s32.totalorder %s23, 3
    %p200 = por %p198, %p199
    %p202 = scmp.ne.s32.totalorder %s185, %s201
    %p203 = scmp.eq.s32.totalorder %s23, 0
    %p204 = por %p202, %p203
    %s205 = ssub.s32 %s25, %s32
    %s206 = ssub.s32 %s24, %s36
    %s207 = sor.u32 %s205, %s206
    %p208 = scmp.eq.s32.totalorder %s207, 0
    %s210 = sadd.s32 %s209, 1
    %s211 = scalar_select %p208, %s209, %s210
    %p214 = pneg %p208
    %p215 = scmp.eq.s32.totalorder %s17, 3
    %p216 = por %p214, %p215
    %p217 = scmp.ne.s32.totalorder %s209, %s212
    %p218 = scmp.eq.s32.totalorder %s17, 0
    %p219 = por %p217, %p218
    %p220 = scmp.ne.s32.totalorder %s209, %s212
    %p221 = scmp.eq.s32.totalorder %s22, 3
    %p222 = por %p220, %p221
    %p223 = scmp.ne.s32.totalorder %s212, %s213
    %p224 = scmp.eq.s32.totalorder %s22, 0
    %p225 = por %p223, %p224
    %p226 = scmp.ne.s32.totalorder %s212, %s213
    %p227 = scmp.eq.s32.totalorder %s23, 3
    %p228 = por %p226, %p227
    %p230 = scmp.ne.s32.totalorder %s213, %s229
    %p231 = scmp.eq.s32.totalorder %s23, 0
    %p232 = por %p230, %p231
    %s233 = ssub.s32 %s24, %s36
    %p234 = scmp.eq.s32.totalorder %s233, 0
    %s236 = sadd.s32 %s235, 1
    %s237 = scalar_select %p234, %s235, %s236
    %p240 = pneg %p234
    %p241 = scmp.eq.s32.totalorder %s17, 3
    %p242 = por %p240, %p241
    %p243 = scmp.ne.s32.totalorder %s235, %s238
    %p244 = scmp.eq.s32.totalorder %s17, 0
    %p245 = por %p243, %p244
    %p246 = scmp.ne.s32.totalorder %s235, %s238
    %p247 = scmp.eq.s32.totalorder %s22, 3
    %p248 = por %p246, %p247
    %p249 = scmp.ne.s32.totalorder %s238, %s239
    %p250 = scmp.eq.s32.totalorder %s22, 0
    %p251 = por %p249, %p250
    %p252 = scmp.ne.s32.totalorder %s238, %s239
    %p253 = scmp.eq.s32.totalorder %s23, 3
    %p254 = por %p252, %p253
    %p256 = scmp.ne.s32.totalorder %s239, %s255
    %p257 = scmp.eq.s32.totalorder %s23, 0
    %p258 = por %p256, %p257
    %s259 = ssub.s32 %s24, %s36
    %p260 = scmp.eq.s32.totalorder %s259, 0
    %s262 = sadd.s32 %s261, 1
    %s263 = scalar_select %p260, %s261, %s262
    %p266 = pneg %p260
    %p267 = scmp.eq.s32.totalorder %s17, 3
    %p268 = por %p266, %p267
    %p269 = scmp.ne.s32.totalorder %s261, %s264
    %p270 = scmp.eq.s32.totalorder %s17, 0
    %p271 = por %p269, %p270
    %p272 = scmp.ne.s32.totalorder %s261, %s264
    %p273 = scmp.eq.s32.totalorder %s22, 3
    %p274 = por %p272, %p273
    %p275 = scmp.ne.s32.totalorder %s264, %s265
    %p276 = scmp.eq.s32.totalorder %s22, 0
    %p277 = por %p275, %p276
    %p278 = scmp.ne.s32.totalorder %s264, %s265
    %p279 = scmp.eq.s32.totalorder %s23, 3
    %p280 = por %p278, %p279
    %p282 = scmp.ne.s32.totalorder %s265, %s281
    %p283 = scmp.eq.s32.totalorder %s23, 0
    %p284 = por %p282, %p283
    %s285 = ssub.s32 %s24, %s36
    %p286 = scmp.eq.s32.totalorder %s285, 0
    %s288 = sadd.s32 %s287, 1
    %s289 = scalar_select %p286, %s287, %s288
    %p292 = pneg %p286
    %p293 = scmp.eq.s32.totalorder %s17, 3
    %p294 = por %p292, %p293
    %p295 = scmp.ne.s32.totalorder %s287, %s290
    %p296 = scmp.eq.s32.totalorder %s17, 0
    %p297 = por %p295, %p296
    %p298 = scmp.ne.s32.totalorder %s287, %s290
    %p299 = scmp.eq.s32.totalorder %s22, 3
    %p300 = por %p298, %p299
    %p301 = scmp.ne.s32.totalorder %s290, %s291
    %p302 = scmp.eq.s32.totalorder %s22, 0
    %p303 = por %p301, %p302
    %p304 = scmp.ne.s32.totalorder %s290, %s291
    %p305 = scmp.eq.s32.totalorder %s23, 3
    %p306 = por %p304, %p305
    %p308 = scmp.ne.s32.totalorder %s291, %s307
    %p309 = scmp.eq.s32.totalorder %s23, 0
    %p310 = por %p308, %p309
    %p311 = scmp.le.s32.totalorder 1, %s17
    %p312 = scmp.lt.s32.totalorder %s17, 5
    %p313 = pnand %p311, %p312
    %p314 = pneg %p313
    // Predicated region
    $region9: #{fatm_forward.4} parent=5 // pred_check
      _
    $region10: #{fatm_forward.4} parent=5 // pred_check_branch
      %316 = sbr.rel (%p313) target = $region12
    $region11: #{fatm_forward.4} parent=5 // pred_region
      %s317 = ssub.s32 %s17, 1
      // Predicated region
      $region13: #{fatm_forward.4} parent=11 // pred_check
        %p318 = pneg %p78
      $region14: #{fatm_forward.4} parent=11 // pred_check_branch
        %320 = sbr.rel (%p318) target = $region16
      $region15: #{fatm_forward.4} parent=11 // pred_region
        _
      $region16: #{fatm_forward.4} parent=11 // pred_fallthru
        _
      // Predicated region
      $region17: #{fatm_forward.4} parent=11 // pred_check
        %p321 = pneg %p99
      $region18: #{fatm_forward.4} parent=11 // pred_check_branch
        %323 = sbr.rel (%p321) target = $region20
      $region19: #{fatm_forward.4} parent=11 // pred_region
        _
      $region20: #{fatm_forward.4} parent=11 // pred_fallthru
        _
      // Predicated region
      $region21: #{fatm_forward.4} parent=11 // pred_check
        %p324 = pneg %p120
      $region22: #{fatm_forward.4} parent=11 // pred_check_branch
        %326 = sbr.rel (%p324) target = $region24
      $region23: #{fatm_forward.4} parent=11 // pred_region
        _
      $region24: #{fatm_forward.4} parent=11 // pred_fallthru
        _
      // Predicated region
      $region25: #{fatm_forward.4} parent=11 // pred_check
        %p327 = pneg %p141
      $region26: #{fatm_forward.4} parent=11 // pred_check_branch
        %329 = sbr.rel (%p327) target = $region28
      $region27: #{fatm_forward.4} parent=11 // pred_region
        _
      $region28: #{fatm_forward.4} parent=11 // pred_fallthru
        _
    $region12: #{fatm_forward.4} parent=5 // pred_fallthru
      _
    %p330 = scmp.lt.s32.totalorder %s17, 4
    // Predicated region
    $region29: #{fatm_forward.4} parent=5 // pred_check
      %p331 = pneg %p330
    $region30: #{fatm_forward.4} parent=5 // pred_check_branch
      %333 = sbr.rel (%p331) target = $region32
    $region31: #{fatm_forward.4} parent=5 // pred_region
      // Predicated region
      $region33: #{fatm_forward.4} parent=31 // pred_check
        %p334 = pneg %p51
      $region34: #{fatm_forward.4} parent=31 // pred_check_branch
        %336 = sbr.rel (%p334) target = $region36
      $region35: #{fatm_forward.4} parent=31 // pred_region
        %p337 = scmp.lt.s32.totalorder %s25, 1
        %s338 = scalar_select %p337, %s25, 1
        %p339 = scmp.lt.s32.totalorder %s24, 1
        %s340 = scalar_select %p339, %s24, 1
        %s341 = smul.addr %s340, 8
        %s342 = smul.addr %s338, 16
        %s343 = sadd.s32 %s341, %s342
        %s344 = smul.addr %s343, 8
        %s345 = scalar_lea.vmem %s0, %s344
      $region36: #{fatm_forward.4} parent=31 // pred_fallthru
        _
    $region32: #{fatm_forward.4} parent=5 // pred_fallthru
      _
    %p346 = scmp.le.s32.totalorder 1, %s17
    %p347 = scmp.lt.s32.totalorder %s17, 5
    %p348 = pnand %p346, %p347
    %p349 = pneg %p348
    // Predicated region
    $region37: #{fatm_forward.4} parent=5 // pred_check
      _
    $region38: #{fatm_forward.4} parent=5 // pred_check_branch
      %351 = sbr.rel (%p348) target = $region40
    $region39: #{fatm_forward.4} parent=5 // pred_region
      %s352 = ssub.s32 %s17, 1
      %p353 = scmp.lt.s32.totalorder %s27, 1
      %s354 = scalar_select %p353, %s27, 1
      %p355 = scmp.lt.s32.totalorder %s26, 1
      %s356 = scalar_select %p355, %s26, 1
      %s357 = smul.addr %s356, 8
      %s358 = smul.addr %s354, 16
      %s359 = sadd.s32 %s357, %s358
      %s360 = smul.addr %s359, 8
      %s361 = scalar_lea.vmem %s0, %s360
      %p362 = pneg %p57
      %p363 = pneg %p54
      %p364 = pneg %p78
      %p365 = pneg %p75
      %p366 = pneg %p99
      %p367 = pneg %p96
      %p368 = pneg %p120
      %p369 = pneg %p117
      %p370 = pneg %p141
      %p371 = pneg %p138
      %p372 = pneg %p169
      %p373 = pneg %p166
      %p374 = scmp.lt.s32.totalorder %s27, 1
      %s375 = scalar_select %p374, %s27, 1
      %p376 = scmp.lt.s32.totalorder %s26, 1
      %s377 = scalar_select %p376, %s26, 1
      %s378 = smul.addr %s377, 8
      %s379 = smul.addr %s375, 16
      %s380 = sadd.s32 %s378, %s379
      %s381 = smul.addr %s380, 4
      %s382 = scalar_lea.vmem %s5, %s381
      %p383 = pneg %p197
      %p384 = pneg %p194
      %p385 = scmp.lt.s32.totalorder %s27, 1
      %s386 = scalar_select %p385, %s27, 1
      %p387 = scmp.lt.s32.totalorder %s26, 1
      %s388 = scalar_select %p387, %s26, 1
      %s389 = smul.addr %s388, 8
      %s390 = smul.addr %s386, 16
      %s391 = sadd.s32 %s389, %s390
      %s392 = smul.addr %s391, 8
      %s393 = scalar_lea.vmem %s6, %s392
      %p394 = pneg %p225
      %p395 = pneg %p222
      %p396 = scmp.lt.s32.totalorder %s27, 1
      %s397 = scalar_select %p396, %s27, 1
      %p398 = scmp.lt.s32.totalorder %s26, 1
      %s399 = scalar_select %p398, %s26, 1
      %s400 = smul.addr %s399, 8
      %s401 = smul.addr %s397, 16
      %s402 = sadd.s32 %s400, %s401
      %s403 = smul.addr %s402, 8
      %s404 = scalar_lea.vmem %s7, %s403
      %p405 = pneg %p251
      %p406 = pneg %p248
      %p407 = scmp.lt.s32.totalorder %s26, 1
      %s408 = scalar_select %p407, %s26, 1
      %s409 = smul.addr %s408, 2
      %s410 = scalar_lea.vmem %s8, %s409
      %p411 = pneg %p277
      %p412 = pneg %p274
      %p413 = scmp.lt.s32.totalorder %s26, 1
      %s414 = scalar_select %p413, %s26, 1
      %s415 = smul.addr %s414, 2
      %s416 = scalar_lea.vmem %s9, %s415
      %p417 = pneg %p303
      %p418 = pneg %p300
      %p419 = scmp.lt.s32.totalorder %s26, 1
      %s420 = scalar_select %p419, %s26, 1
      %s421 = smul.addr %s420, 2
      %s422 = scalar_lea.vmem %s10, %s421
      %p423 = scmp.lt.s32.totalorder %s27, 1
      %s424 = scalar_select %p423, %s27, 1
      %p425 = scmp.lt.s32.totalorder %s26, 1
      %s426 = scalar_select %p425, %s26, 1
      %s427 = smul.addr %s426, 8
      %s428 = smul.addr %s424, 16
      %s429 = sadd.s32 %s427, %s428
      %s430 = smul.addr %s429, 8
      %s431 = scalar_lea.vmem %s0, %s430
      %p432 = scmp.lt.s32.totalorder %s27, 1
      %s433 = scalar_select %p432, %s27, 1
      %p434 = scmp.lt.s32.totalorder %s26, 1
      %s435 = scalar_select %p434, %s26, 1
      %s436 = smul.addr %s435, 8
      %s437 = smul.addr %s433, 16
      %s438 = sadd.s32 %s436, %s437
      %s439 = smul.addr %s438, 4
      %s440 = scalar_lea.vmem %s5, %s439
      %p441 = scmp.lt.s32.totalorder %s27, 1
      %s442 = scalar_select %p441, %s27, 1
      %p443 = scmp.lt.s32.totalorder %s26, 1
      %s444 = scalar_select %p443, %s26, 1
      %s445 = smul.addr %s444, 8
      %s446 = smul.addr %s442, 16
      %s447 = sadd.s32 %s445, %s446
      %s448 = smul.addr %s447, 8
      %s449 = scalar_lea.vmem %s6, %s448
      %p450 = scmp.lt.s32.totalorder %s27, 1
      %s451 = scalar_select %p450, %s27, 1
      %p452 = scmp.lt.s32.totalorder %s26, 1
      %s453 = scalar_select %p452, %s26, 1
      %s454 = smul.addr %s453, 8
      %s455 = smul.addr %s451, 16
      %s456 = sadd.s32 %s454, %s455
      %s457 = smul.addr %s456, 8
      %s458 = scalar_lea.vmem %s7, %s457
      %p459 = scmp.lt.s32.totalorder %s26, 1
      %s460 = scalar_select %p459, %s26, 1
      %s461 = smul.addr %s460, 2
      %s462 = scalar_lea.vmem %s8, %s461
      %p463 = scmp.lt.s32.totalorder %s26, 1
      %s464 = scalar_select %p463, %s26, 1
      %s465 = smul.addr %s464, 2
      %s466 = scalar_lea.vmem %s9, %s465
      %p467 = scmp.lt.s32.totalorder %s26, 1
      %s468 = scalar_select %p467, %s26, 1
      %s469 = smul.addr %s468, 2
      %s470 = scalar_lea.vmem %s10, %s469
      %p471 = scmp.eq.s32.totalorder %s27, 0
      // Predicated region
      $region41: #{fatm_forward.4} parent=39 // pred_check
        %p472 = pneg %p471
      $region42: #{fatm_forward.4} parent=39 // pred_check_branch
        %474 = sbr.rel (%p472) target = $region44
      $region43: #{fatm_forward.4} parent=39 // pred_region
        %475 = vst [vmem:[#allocation2] sm:$0xff] 0.0
        %476 = vst [vmem:[#allocation2 + $0x8] sm:$0xff] 0.0
        %477 = vst [vmem:[#allocation2 + $0x10] sm:$0xff] 0.0
        %478 = vst [vmem:[#allocation2 + $0x18] sm:$0xff] 0.0
        %479 = vst [vmem:[#allocation2 + $0x20] sm:$0xff] 0.0
        %480 = vst [vmem:[#allocation2 + $0x28] sm:$0xff] 0.0
        %481 = vst [vmem:[#allocation2 + $0x30] sm:$0xff] 0.0
        %482 = vst [vmem:[#allocation2 + $0x38] sm:$0xff] 0.0
        %483 = vst [vmem:[#allocation3] sm:$0xff] 0.0
        %484 = vst [vmem:[#allocation3 + $0x8] sm:$0xff] 0.0
        %485 = vst [vmem:[#allocation3 + $0x10] sm:$0xff] 0.0
        %486 = vst [vmem:[#allocation3 + $0x18] sm:$0xff] 0.0
        %487 = vst [vmem:[#allocation3 + $0x20] sm:$0xff] 0.0
        %488 = vst [vmem:[#allocation3 + $0x28] sm:$0xff] 0.0
        %489 = vst [vmem:[#allocation3 + $0x30] sm:$0xff] 0.0
        %490 = vst [vmem:[#allocation3 + $0x38] sm:$0xff] 0.0
        %vm491 = vcmask 254976
        %492 = vst.msk [vmem:[%s462] sm:$0x3] %vm491, 0.0
        %493 = vst.msk [vmem:[%s466] sm:$0x3] %vm491, 0.0
        %494 = vst.msk [vmem:[%s470] sm:$0x3] %vm491, 0.0
      $region44: #{fatm_forward.4} parent=39 // pred_fallthru
        _
      %v495 = vld [vmem:[%s431] sm:$0xff]
      %v496 = vld [vmem:[%s431 + $0x8] sm:$0xff]
      %v497 = vld [vmem:[%s431 + $0x10] sm:$0xff]
      %v498 = vld [vmem:[%s431 + $0x18] sm:$0xff]
      %v499 = vld [vmem:[%s431 + $0x20] sm:$0xff]
      %v500 = vld [vmem:[%s431 + $0x28] sm:$0xff]
      %v501 = vld [vmem:[%s431 + $0x30] sm:$0xff]
      %v502 = vld [vmem:[%s431 + $0x38] sm:$0xff]
      %v503 = vld [vmem:[#allocation2] sm:$0xff]
      %v504 = vld [vmem:[#allocation2 + $0x8] sm:$0xff]
      %v505 = vld [vmem:[#allocation2 + $0x10] sm:$0xff]
      %v506 = vld [vmem:[#allocation2 + $0x18] sm:$0xff]
      %v507 = vld [vmem:[#allocation2 + $0x20] sm:$0xff]
      %v508 = vld [vmem:[#allocation2 + $0x28] sm:$0xff]
      %v509 = vld [vmem:[#allocation2 + $0x30] sm:$0xff]
      %v510 = vld [vmem:[#allocation2 + $0x38] sm:$0xff]
      %v511 = vsub.f32 %v495, %v503
      %v512 = vsub.f32 %v496, %v504
      %v513 = vsub.f32 %v497, %v505
      %v514 = vsub.f32 %v498, %v506
      %v515 = vsub.f32 %v499, %v507
      %v516 = vsub.f32 %v500, %v508
      %v517 = vsub.f32 %v501, %v509
      %v518 = vsub.f32 %v502, %v510
      %v519 = vmul.f32 %v511, 0.5
      %v520 = vmul.f32 %v512, 0.5
      %v521 = vmul.f32 %v513, 0.5
      %v522 = vmul.f32 %v514, 0.5
      %v523 = vmul.f32 %v515, 0.5
      %v524 = vmul.f32 %v516, 0.5
      %v525 = vmul.f32 %v517, 0.5
      %v526 = vmul.f32 %v518, 0.5
      %v527 = vadd.f32 %v503, %v519
      %v528 = vadd.f32 %v504, %v520
      %v529 = vadd.f32 %v505, %v521
      %v530 = vadd.f32 %v506, %v522
      %v531 = vadd.f32 %v507, %v523
      %v532 = vadd.f32 %v508, %v524
      %v533 = vadd.f32 %v509, %v525
      %v534 = vadd.f32 %v510, %v526
      %vm535 = vcmp.ge.f32.partialorder %v527, 1.0
      %vm536 = vcmp.ge.f32.partialorder %v528, 1.0
      %vm537 = vcmp.ge.f32.partialorder %v529, 1.0
      %vm538 = vcmp.ge.f32.partialorder %v530, 1.0
      %vm539 = vcmp.ge.f32.partialorder %v531, 1.0
      %vm540 = vcmp.ge.f32.partialorder %v532, 1.0
      %vm541 = vcmp.ge.f32.partialorder %v533, 1.0
      %vm542 = vcmp.ge.f32.partialorder %v534, 1.0
      %v543 = vsel %vm535, 0.0, %v527
      %v544 = vsel %vm536, 0.0, %v528
      %v545 = vsel %vm537, 0.0, %v529
      %v546 = vsel %vm538, 0.0, %v530
      %v547 = vsel %vm539, 0.0, %v531
      %v548 = vsel %vm540, 0.0, %v532
      %v549 = vsel %vm541, 0.0, %v533
      %v550 = vsel %vm542, 0.0, %v534
      %551 = vst [vmem:[#allocation2] sm:$0xff] %v543
      %552 = vst [vmem:[#allocation2 + $0x8] sm:$0xff] %v544
      %553 = vst [vmem:[#allocation2 + $0x10] sm:$0xff] %v545
      %554 = vst [vmem:[#allocation2 + $0x18] sm:$0xff] %v546
      %555 = vst [vmem:[#allocation2 + $0x20] sm:$0xff] %v547
      %556 = vst [vmem:[#allocation2 + $0x28] sm:$0xff] %v548
      %557 = vst [vmem:[#allocation2 + $0x30] sm:$0xff] %v549
      %558 = vst [vmem:[#allocation2 + $0x38] sm:$0xff] %v550
      %v559 = vsel %vm535, 1.0, 0.0
      %v560 = vsel %vm536, 1.0, 0.0
      %v561 = vsel %vm537, 1.0, 0.0
      %v562 = vsel %vm538, 1.0, 0.0
      %v563 = vsel %vm539, 1.0, 0.0
      %v564 = vsel %vm540, 1.0, 0.0
      %v565 = vsel %vm541, 1.0, 0.0
      %v566 = vsel %vm542, 1.0, 0.0
      %v567 = vld [vmem:[%s1] sm:$0xff]
      %v568 = vld [vmem:[%s1 + $0x8] sm:$0xff]
      %v569 = vld [vmem:[%s1 + $0x10] sm:$0xff]
      %v570 = vld [vmem:[%s1 + $0x18] sm:$0xff]
      %v571 = vld [vmem:[%s1 + $0x20] sm:$0xff]
      %v572 = vld [vmem:[%s1 + $0x28] sm:$0xff]
      %v573 = vld [vmem:[%s1 + $0x30] sm:$0xff]
      %v574 = vld [vmem:[%s1 + $0x38] sm:$0xff]
      %v575 = vld [vmem:[%s1 + $0x40] sm:$0xff]
      %v576 = vld [vmem:[%s1 + $0x48] sm:$0xff]
      %v577 = vld [vmem:[%s1 + $0x50] sm:$0xff]
      %v578 = vld [vmem:[%s1 + $0x58] sm:$0xff]
      %v579 = vld [vmem:[%s1 + $0x60] sm:$0xff]
      %v580 = vld [vmem:[%s1 + $0x68] sm:$0xff]
      %v581 = vld [vmem:[%s1 + $0x70] sm:$0xff]
      %v582 = vld [vmem:[%s1 + $0x78] sm:$0xff]
      %v583 = vld [vmem:[%s1 + $0x80] sm:$0xff]
      %v584 = vld [vmem:[%s1 + $0x88] sm:$0xff]
      %v585 = vld [vmem:[%s1 + $0x90] sm:$0xff]
      %v586 = vld [vmem:[%s1 + $0x98] sm:$0xff]
      %v587 = vld [vmem:[%s1 + $0xa0] sm:$0xff]
      %v588 = vld [vmem:[%s1 + $0xa8] sm:$0xff]
      %v589 = vld [vmem:[%s1 + $0xb0] sm:$0xff]
      %v590 = vld [vmem:[%s1 + $0xb8] sm:$0xff]
      %v591 = vld [vmem:[%s1 + $0xc0] sm:$0xff]
      %v592 = vld [vmem:[%s1 + $0xc8] sm:$0xff]
      %v593 = vld [vmem:[%s1 + $0xd0] sm:$0xff]
      %v594 = vld [vmem:[%s1 + $0xd8] sm:$0xff]
      %v595 = vld [vmem:[%s1 + $0xe0] sm:$0xff]
      %v596 = vld [vmem:[%s1 + $0xe8] sm:$0xff]
      %v597 = vld [vmem:[%s1 + $0xf0] sm:$0xff]
      %v598 = vld [vmem:[%s1 + $0xf8] sm:$0xff]
      %v599 = vld [vmem:[%s1 + $0x100] sm:$0xff]
      %v600 = vld [vmem:[%s1 + $0x108] sm:$0xff]
      %v601 = vld [vmem:[%s1 + $0x110] sm:$0xff]
      %v602 = vld [vmem:[%s1 + $0x118] sm:$0xff]
      %v603 = vld [vmem:[%s1 + $0x120] sm:$0xff]
      %v604 = vld [vmem:[%s1 + $0x128] sm:$0xff]
      %v605 = vld [vmem:[%s1 + $0x130] sm:$0xff]
      %v606 = vld [vmem:[%s1 + $0x138] sm:$0xff]
      %v607 = vld [vmem:[%s1 + $0x140] sm:$0xff]
      %v608 = vld [vmem:[%s1 + $0x148] sm:$0xff]
      %v609 = vld [vmem:[%s1 + $0x150] sm:$0xff]
      %v610 = vld [vmem:[%s1 + $0x158] sm:$0xff]
      %v611 = vld [vmem:[%s1 + $0x160] sm:$0xff]
      %v612 = vld [vmem:[%s1 + $0x168] sm:$0xff]
      %v613 = vld [vmem:[%s1 + $0x170] sm:$0xff]
      %v614 = vld [vmem:[%s1 + $0x178] sm:$0xff]
      %v615 = vld [vmem:[%s1 + $0x180] sm:$0xff]
      %v616 = vld [vmem:[%s1 + $0x188] sm:$0xff]
      %v617 = vld [vmem:[%s1 + $0x190] sm:$0xff]
      %v618 = vld [vmem:[%s1 + $0x198] sm:$0xff]
      %v619 = vld [vmem:[%s1 + $0x1a0] sm:$0xff]
      %v620 = vld [vmem:[%s1 + $0x1a8] sm:$0xff]
      %v621 = vld [vmem:[%s1 + $0x1b0] sm:$0xff]
      %v622 = vld [vmem:[%s1 + $0x1b8] sm:$0xff]
      %v623 = vld [vmem:[%s1 + $0x1c0] sm:$0xff]
      %v624 = vld [vmem:[%s1 + $0x1c8] sm:$0xff]
      %v625 = vld [vmem:[%s1 + $0x1d0] sm:$0xff]
      %v626 = vld [vmem:[%s1 + $0x1d8] sm:$0xff]
      %v627 = vld [vmem:[%s1 + $0x1e0] sm:$0xff]
      %v628 = vld [vmem:[%s1 + $0x1e8] sm:$0xff]
      %v629 = vld [vmem:[%s1 + $0x1f0] sm:$0xff]
      %v630 = vld [vmem:[%s1 + $0x1f8] sm:$0xff]
      %631 = vmatprep.subr.mxu0 %v568
      %632 = vmatpush1.msra.mxu0 %v567
      %633 = vmatprep.subr.mxu0 %v570
      %634 = vmatpush1.msra.mxu0 %v569
      %635 = vmatprep.subr.mxu0 %v572
      %636 = vmatpush1.msra.mxu0 %v571
      %637 = vmatprep.subr.mxu0 %v574
      %638 = vmatpush1.msra.mxu0 %v573
      %639 = vmatprep.subr.mxu0 %v576
      %640 = vmatpush1.msra.mxu0 %v575
      %641 = vmatprep.subr.mxu0 %v578
      %642 = vmatpush1.msra.mxu0 %v577
      %643 = vmatprep.subr.mxu0 %v580
      %644 = vmatpush1.msra.mxu0 %v579
      %645 = vmatprep.subr.mxu0 %v582
      %646 = vmatpush1.msra.mxu0 %v581
      %647 = vmatprep.subr.mxu0 %v584
      %648 = vmatpush1.msra.mxu0 %v583
      %649 = vmatprep.subr.mxu0 %v586
      %650 = vmatpush1.msra.mxu0 %v585
      %651 = vmatprep.subr.mxu0 %v588
      %652 = vmatpush1.msra.mxu0 %v587
      %653 = vmatprep.subr.mxu0 %v590
      %654 = vmatpush1.msra.mxu0 %v589
      %655 = vmatprep.subr.mxu0 %v592
      %656 = vmatpush1.msra.mxu0 %v591
      %657 = vmatprep.subr.mxu0 %v594
      %658 = vmatpush1.msra.mxu0 %v593
      %659 = vmatprep.subr.mxu0 %v596
      %660 = vmatpush1.msra.mxu0 %v595
      %661 = vmatprep.subr.mxu0 %v598
      %662 = vmatpush1.msra.mxu0 %v597
      %663 = vmatprep.subr.mxu0 %v600
      %664 = vmatpush1.msra.mxu0 %v599
      %665 = vmatprep.subr.mxu0 %v602
      %666 = vmatpush1.msra.mxu0 %v601
      %667 = vmatprep.subr.mxu0 %v604
      %668 = vmatpush1.msra.mxu0 %v603
      %669 = vmatprep.subr.mxu0 %v606
      %670 = vmatpush1.msra.mxu0 %v605
      %671 = vmatprep.subr.mxu0 %v608
      %672 = vmatpush1.msra.mxu0 %v607
      %673 = vmatprep.subr.mxu0 %v610
      %674 = vmatpush1.msra.mxu0 %v609
      %675 = vmatprep.subr.mxu0 %v612
      %676 = vmatpush1.msra.mxu0 %v611
      %677 = vmatprep.subr.mxu0 %v614
      %678 = vmatpush1.msra.mxu0 %v613
      %679 = vmatprep.subr.mxu0 %v616
      %680 = vmatpush1.msra.mxu0 %v615
      %681 = vmatprep.subr.mxu0 %v618
      %682 = vmatpush1.msra.mxu0 %v617
      %683 = vmatprep.subr.mxu0 %v620
      %684 = vmatpush1.msra.mxu0 %v619
      %685 = vmatprep.subr.mxu0 %v622
      %686 = vmatpush1.msra.mxu0 %v621
      %687 = vmatprep.subr.mxu0 %v624
      %688 = vmatpush1.msra.mxu0 %v623
      %689 = vmatprep.subr.mxu0 %v626
      %690 = vmatpush1.msra.mxu0 %v625
      %691 = vmatprep.subr.mxu0 %v628
      %692 = vmatpush1.msra.mxu0 %v627
      %693 = vmatprep.subr.mxu0 %v630
      %694 = vmatpush1.msra.mxu0 %v629
      %695 = vmatprep.mubr.f32.mxu0 %v560
      %696 = vmatmul.mubr.f32.gmra.mrb[0].mxu0 %v559
      %v697 = vpop.f32.mrb[0].mxu0
      %v698 = vadd.f32 0.0, %v697
      %v699 = vpop.f32.mrb[0].mxu0
      %v700 = vadd.f32 0.0, %v699
      %701 = vmatprep.mubr.f32.mxu0 %v562
      %702 = vmatmul.mubr.f32.gmra.mrb[0].mxu0 %v561
      %v703 = vpop.f32.mrb[0].mxu0
      %v704 = vadd.f32 0.0, %v703
      %v705 = vpop.f32.mrb[0].mxu0
      %v706 = vadd.f32 0.0, %v705
      %707 = vmatprep.mubr.f32.mxu0 %v564
      %708 = vmatmul.mubr.f32.gmra.mrb[0].mxu0 %v563
      %v709 = vpop.f32.mrb[0].mxu0
      %v710 = vadd.f32 0.0, %v709
      %v711 = vpop.f32.mrb[0].mxu0
      %v712 = vadd.f32 0.0, %v711
      %713 = vmatprep.mubr.f32.mxu0 %v566
      %714 = vmatmul.mubr.f32.gmra.mrb[0].mxu0 %v565
      %v715 = vpop.f32.mrb[0].mxu0
      %v716 = vadd.f32 0.0, %v715
      %v717 = vpop.f32.mrb[0].mxu0
      %v718 = vadd.f32 0.0, %v717
      %719 = vdwg.mxu0
      %v720 = vld [vmem:[#allocation3] sm:$0xff]
      %v721 = vld [vmem:[#allocation3 + $0x8] sm:$0xff]
      %v722 = vld [vmem:[#allocation3 + $0x10] sm:$0xff]
      %v723 = vld [vmem:[#allocation3 + $0x18] sm:$0xff]
      %v724 = vld [vmem:[#allocation3 + $0x20] sm:$0xff]
      %v725 = vld [vmem:[#allocation3 + $0x28] sm:$0xff]
      %v726 = vld [vmem:[#allocation3 + $0x30] sm:$0xff]
      %v727 = vld [vmem:[#allocation3 + $0x38] sm:$0xff]
      %v728 = vadd.f32 %v720, %v698
      %v729 = vadd.f32 %v721, %v700
      %v730 = vadd.f32 %v722, %v704
      %v731 = vadd.f32 %v723, %v706
      %v732 = vadd.f32 %v724, %v710
      %v733 = vadd.f32 %v725, %v712
      %v734 = vadd.f32 %v726, %v716
      %v735 = vadd.f32 %v727, %v718
      %vm736 = vcmp.ge.f32.partialorder %v728, 1.0
      %vm737 = vcmp.ge.f32.partialorder %v729, 1.0
      %vm738 = vcmp.ge.f32.partialorder %v730, 1.0
      %vm739 = vcmp.ge.f32.partialorder %v731, 1.0
      %vm740 = vcmp.ge.f32.partialorder %v732, 1.0
      %vm741 = vcmp.ge.f32.partialorder %v733, 1.0
      %vm742 = vcmp.ge.f32.partialorder %v734, 1.0
      %vm743 = vcmp.ge.f32.partialorder %v735, 1.0
      %vm744 = vcmp.le.f32.partialorder %v728, -1.0
      %vm745 = vcmp.le.f32.partialorder %v729, -1.0
      %vm746 = vcmp.le.f32.partialorder %v730, -1.0
      %vm747 = vcmp.le.f32.partialorder %v731, -1.0
      %vm748 = vcmp.le.f32.partialorder %v732, -1.0
      %vm749 = vcmp.le.f32.partialorder %v733, -1.0
      %vm750 = vcmp.le.f32.partialorder %v734, -1.0
      %vm751 = vcmp.le.f32.partialorder %v735, -1.0
      %vm752 = vmor %vm736, %vm744
      %vm753 = vmor %vm737, %vm745
      %vm754 = vmor %vm738, %vm746
      %vm755 = vmor %vm739, %vm747
      %vm756 = vmor %vm740, %vm748
      %vm757 = vmor %vm741, %vm749
      %vm758 = vmor %vm742, %vm750
      %vm759 = vmor %vm743, %vm751
      %v760 = vsel %vm752, 0.0, %v728
      %v761 = vsel %vm753, 0.0, %v729
      %v762 = vsel %vm754, 0.0, %v730
      %v763 = vsel %vm755, 0.0, %v731
      %v764 = vsel %vm756, 0.0, %v732
      %v765 = vsel %vm757, 0.0, %v733
      %v766 = vsel %vm758, 0.0, %v734
      %v767 = vsel %vm759, 0.0, %v735
      %768 = vst [vmem:[#allocation3] sm:$0xff] %v760
      %769 = vst [vmem:[#allocation3 + $0x8] sm:$0xff] %v761
      %770 = vst [vmem:[#allocation3 + $0x10] sm:$0xff] %v762
      %771 = vst [vmem:[#allocation3 + $0x18] sm:$0xff] %v763
      %772 = vst [vmem:[#allocation3 + $0x20] sm:$0xff] %v764
      %773 = vst [vmem:[#allocation3 + $0x28] sm:$0xff] %v765
      %774 = vst [vmem:[#allocation3 + $0x30] sm:$0xff] %v766
      %775 = vst [vmem:[#allocation3 + $0x38] sm:$0xff] %v767
      %v776 = vsel %vm744, -1.0, 0.0
      %v777 = vsel %vm745, -1.0, 0.0
      %v778 = vsel %vm746, -1.0, 0.0
      %v779 = vsel %vm747, -1.0, 0.0
      %v780 = vsel %vm748, -1.0, 0.0
      %v781 = vsel %vm749, -1.0, 0.0
      %v782 = vsel %vm750, -1.0, 0.0
      %v783 = vsel %vm751, -1.0, 0.0
      %v784 = vsel %vm736, 1.0, %v776
      %v785 = vsel %vm737, 1.0, %v777
      %v786 = vsel %vm738, 1.0, %v778
      %v787 = vsel %vm739, 1.0, %v779
      %v788 = vsel %vm740, 1.0, %v780
      %v789 = vsel %vm741, 1.0, %v781
      %v790 = vsel %vm742, 1.0, %v782
      %v791 = vsel %vm743, 1.0, %v783
      %v792 = vpack.c.bf16 %v786, %v784
      %v793 = vpack.c.bf16 %v787, %v785
      %v794 = vpack.c.bf16 %v790, %v788
      %v795 = vpack.c.bf16 %v791, %v789
      %v800 = vunpack.c.l.b16 %v792
      %v801 = vunpack.c.l.b16 %v793
      %v802 = vunpack.c.h.b16 %v792
      %v803 = vunpack.c.h.b16 %v793
      %v804 = vunpack.c.l.b16 %v794
      %v805 = vunpack.c.l.b16 %v795
      %v806 = vunpack.c.h.b16 %v794
      %v807 = vunpack.c.h.b16 %v795
      %v808 = vpack.c.b16 %v801, %v800
      %v809 = vpack.c.b16 %v803, %v802
      %v810 = vpack.c.b16 %v805, %v804
      %v811 = vpack.c.b16 %v807, %v806
      %816 = vst [vmem:[%s440] sm:$0xff] %v808
      %817 = vst [vmem:[%s440 + $0x8] sm:$0xff] %v809
      %818 = vst [vmem:[%s440 + $0x10] sm:$0xff] %v810
      %819 = vst [vmem:[%s440 + $0x18] sm:$0xff] %v811
      %v820 = vld [vmem:[%s462] sm:$0x1]
      %v821 = vadd.f32 %v784, %v785
      %822 = vadd.xlane.f32.xlu0 %v821
      %v823 = vpop.xlane.xlu0 %822
      %v824 = vadd.f32 %v786, %v787
      %825 = vadd.xlane.f32.xlu0 %v824
      %v826 = vpop.xlane.xlu0 %825
      %v827 = vadd.f32 %v788, %v789
      %828 = vadd.xlane.f32.xlu0 %v827
      %v829 = vpop.xlane.xlu0 %828
      %v830 = vadd.f32 %v790, %v791
      %831 = vadd.xlane.f32.xlu0 %v830
      %v832 = vpop.xlane.xlu0 %831
      %v837 = vlaneseq
      %v838 = vand.u32 %v837, 127
      %v839 = vlaneseq
      %v840 = vshrl.u32 %v839, 7
      %v841 = vsub.s32 %v838, %v840
      %v842 = vrot.slane %v823, %v841
      %v843 = vadd.s32 %v838, 4294967288
      %v844 = vlaneseq
      %v845 = vshrl.u32 %v844, 7
      %v846 = vsub.s32 %v843, %v845
      %v847 = vrot.slane %v826, %v846
      %vm848 = vcmask 130112
      %v849 = vsel %vm848, %v847, %v842
      %v850 = vadd.s32 %v838, 4294967280
      %v851 = vlaneseq
      %v852 = vshrl.u32 %v851, 7
      %v853 = vsub.s32 %v850, %v852
      %v854 = vrot.slane %v829, %v853
      %vm855 = vcmask 195712
      %v856 = vsel %vm855, %v854, %v849
      %v857 = vadd.s32 %v838, 4294967272
      %v858 = vlaneseq
      %v859 = vshrl.u32 %v858, 7
      %v860 = vsub.s32 %v857, %v859
      %v861 = vrot.slane %v832, %v860
      %vm862 = vcmask 261312
      %v863 = vsel %vm862, %v861, %v856
      %v865 = vadd.f32 %v820, %v863
      %vm866 = vcmask 253952
      %867 = vst.msk [vmem:[%s462] sm:$0x1] %vm866, %v865
      %v868 = vld [vmem:[%s462 + $0x1] sm:$0x1]
      %v869 = vmul.f32 %v784, %v784
      %v870 = vmul.f32 %v785, %v785
      %v871 = vmul.f32 %v786, %v786
      %v872 = vmul.f32 %v787, %v787
      %v873 = vmul.f32 %v788, %v788
      %v874 = vmul.f32 %v789, %v789
      %v875 = vmul.f32 %v790, %v790
      %v876 = vmul.f32 %v791, %v791
      %v877 = vadd.f32 %v869, %v870
      %878 = vadd.xlane.f32.xlu0 %v877
      %v879 = vpop.xlane.xlu0 %878
      %v880 = vadd.f32 %v871, %v872
      %881 = vadd.xlane.f32.xlu0 %v880
      %v882 = vpop.xlane.xlu0 %881
      %v883 = vadd.f32 %v873, %v874
      %884 = vadd.xlane.f32.xlu0 %v883
      %v885 = vpop.xlane.xlu0 %884
      %v886 = vadd.f32 %v875, %v876
      %887 = vadd.xlane.f32.xlu0 %v886
      %v888 = vpop.xlane.xlu0 %887
      %v893 = vlaneseq
      %v894 = vshrl.u32 %v893, 7
      %v895 = vsub.s32 %v838, %v894
      %v896 = vrot.slane %v879, %v895
      %v897 = vlaneseq
      %v898 = vshrl.u32 %v897, 7
      %v899 = vsub.s32 %v843, %v898
      %v900 = vrot.slane %v882, %v899
      %v901 = vsel %vm848, %v900, %v896
      %v902 = vlaneseq
      %v903 = vshrl.u32 %v902, 7
      %v904 = vsub.s32 %v850, %v903
      %v905 = vrot.slane %v885, %v904
      %v906 = vsel %vm855, %v905, %v901
      %v907 = vlaneseq
      %v908 = vshrl.u32 %v907, 7
      %v909 = vsub.s32 %v857, %v908
      %v910 = vrot.slane %v888, %v909
      %v911 = vsel %vm862, %v910, %v906
      %v913 = vadd.f32 %v868, %v911
      %914 = vst.msk [vmem:[%s462 + $0x1] sm:$0x1] %vm866, %v913
      %v915 = vld [vmem:[%s2] sm:$0xff]
      %v916 = vld [vmem:[%s2 + $0x8] sm:$0xff]
      %v917 = vld [vmem:[%s2 + $0x10] sm:$0xff]
      %v918 = vld [vmem:[%s2 + $0x18] sm:$0xff]
      %vm919 = vcmask 261120
      %v921 = vsel %vm919, %v915, 0
      %v924 = vsel %vm919, %v916, 0
      %v927 = vsel %vm919, %v917, 0
      %v930 = vsel %vm919, %v918, 0
      %932 = vmatprep.subr.mxu0 %v560
      %933 = vmatpush1.msra.mxu0 %v559
      %934 = vmatprep.subr.mxu0 %v562
      %935 = vmatpush1.msra.mxu0 %v561
      %936 = vmatprep.subr.mxu0 %v564
      %937 = vmatpush1.msra.mxu0 %v563
      %938 = vmatprep.subr.mxu0 %v566
      %939 = vmatpush1.msra.mxu0 %v565
      %940 = vmatprep.subr.mxu0 0.0
      %941 = vmatpush1.msra.mxu0 0.0
      %942 = vmatprep.subr.mxu0 0.0
      %943 = vmatpush1.msra.mxu0 0.0
      %944 = vmatprep.subr.mxu0 0.0
      %945 = vmatpush1.msra.mxu0 0.0
      %946 = vmatprep.subr.mxu0 0.0
      %947 = vmatpush1.msra.mxu0 0.0
      %948 = vmatprep.subr.mxu0 0.0
      %949 = vmatpush1.msra.mxu0 0.0
      %950 = vmatprep.subr.mxu0 0.0
      %951 = vmatpush1.msra.mxu0 0.0
      %952 = vmatprep.subr.mxu0 0.0
      %953 = vmatpush1.msra.mxu0 0.0
      %954 = vmatprep.subr.mxu0 0.0
      %955 = vmatpush1.msra.mxu0 0.0
      %956 = vmatprep.subr.mxu0 0.0
      %957 = vmatpush1.msra.mxu0 0.0
      %958 = vmatprep.subr.mxu0 0.0
      %959 = vmatpush1.msra.mxu0 0.0
      %960 = vmatprep.subr.mxu0 0.0
      %961 = vmatpush1.msra.mxu0 0.0
      %962 = vmatprep.subr.mxu0 0.0
      %963 = vmatpush1.msra.mxu0 0.0
      %964 = vmatprep.subr.mxu0 0.0
      %965 = vmatpush1.msra.mxu0 0.0
      %966 = vmatprep.subr.mxu0 0.0
      %967 = vmatpush1.msra.mxu0 0.0
      %968 = vmatprep.subr.mxu0 0.0
      %969 = vmatpush1.msra.mxu0 0.0
      %970 = vmatprep.subr.mxu0 0.0
      %971 = vmatpush1.msra.mxu0 0.0
      %972 = vmatprep.subr.mxu0 0.0
      %973 = vmatpush1.msra.mxu0 0.0
      %974 = vmatprep.subr.mxu0 0.0
      %975 = vmatpush1.msra.mxu0 0.0
      %976 = vmatprep.subr.mxu0 0.0
      %977 = vmatpush1.msra.mxu0 0.0
      %978 = vmatprep.subr.mxu0 0.0
      %979 = vmatpush1.msra.mxu0 0.0
      %980 = vmatprep.subr.mxu0 0.0
      %981 = vmatpush1.msra.mxu0 0.0
      %982 = vmatprep.subr.mxu0 0.0
      %983 = vmatpush1.msra.mxu0 0.0
      %984 = vmatprep.subr.mxu0 0.0
      %985 = vmatpush1.msra.mxu0 0.0
      %986 = vmatprep.subr.mxu0 0.0
      %987 = vmatpush1.msra.mxu0 0.0
      %988 = vmatprep.subr.mxu0 0.0
      %989 = vmatpush1.msra.mxu0 0.0
      %990 = vmatprep.subr.mxu0 0.0
      %991 = vmatpush1.msra.mxu0 0.0
      %992 = vmatprep.subr.mxu0 0.0
      %993 = vmatpush1.msra.mxu0 0.0
      %994 = vmatprep.subr.mxu0 0.0
      %995 = vmatpush1.msra.mxu0 0.0
      %996 = vmatprep.mubr.f32.mxu0 0.0
      %997 = vmatmul.mubr.f32.gmra.mrb[0].mxu0 %v921
      %v998 = vpop.f32.mrb[0].mxu0
      %v999 = vadd.f32 0.0, %v998
      %v1000 = vpop.f32.mrb[0].mxu0
      %v1001 = vadd.f32 0.0, %v1000
      %1002 = vmatprep.mubr.f32.mxu0 0.0
      %1003 = vmatmul.mubr.f32.gmra.mrb[0].mxu0 %v924
      %v1004 = vpop.f32.mrb[0].mxu0
      %v1005 = vadd.f32 0.0, %v1004
      %v1006 = vpop.f32.mrb[0].mxu0
      %v1007 = vadd.f32 0.0, %v1006
      %1008 = vmatprep.mubr.f32.mxu0 0.0
      %1009 = vmatmul.mubr.f32.gmra.mrb[0].mxu0 %v927
      %v1010 = vpop.f32.mrb[0].mxu0
      %v1011 = vadd.f32 0.0, %v1010
      %v1012 = vpop.f32.mrb[0].mxu0
      %v1013 = vadd.f32 0.0, %v1012
      %1014 = vmatprep.mubr.f32.mxu0 0.0
      %1015 = vmatmul.mubr.f32.gmra.mrb[0].mxu0 %v930
      %v1016 = vpop.f32.mrb[0].mxu0
      %v1017 = vadd.f32 0.0, %v1016
      %v1018 = vpop.f32.mrb[0].mxu0
      %v1019 = vadd.f32 0.0, %v1018
      %1020 = vdwg.mxu0
      %1021 = vst [vmem:[%s449] sm:$0xff] %v999
      %1022 = vst [vmem:[%s449 + $0x8] sm:$0xff] %v1001
      %1023 = vst [vmem:[%s449 + $0x10] sm:$0xff] %v1005
      %1024 = vst [vmem:[%s449 + $0x18] sm:$0xff] %v1007
      %1025 = vst [vmem:[%s449 + $0x20] sm:$0xff] %v1011
      %1026 = vst [vmem:[%s449 + $0x28] sm:$0xff] %v1013
      %1027 = vst [vmem:[%s449 + $0x30] sm:$0xff] %v1017
      %1028 = vst [vmem:[%s449 + $0x38] sm:$0xff] %v1019
      %1029 = vrot.lane.b32.xlu0 %v559, 17
      %v1030 = vpop.permute.xlu0 %1029
      %1031 = vrot.lane.b32.xlu0 %v561, 17
      %v1032 = vpop.permute.xlu0 %1031
      %1033 = vrot.lane.b32.xlu0 %v563, 17
      %v1034 = vpop.permute.xlu0 %1033
      %1035 = vrot.lane.b32.xlu0 %v565, 17
      %v1036 = vpop.permute.xlu0 %1035
      %1037 = vrot.lane.b32.xlu0 %v560, 17
      %v1038 = vpop.permute.xlu0 %1037
      %1039 = vrot.lane.b32.xlu0 %v562, 17
      %v1040 = vpop.permute.xlu0 %1039
      %1041 = vrot.lane.b32.xlu0 %v564, 17
      %v1042 = vpop.permute.xlu0 %1041
      %1043 = vrot.lane.b32.xlu0 %v566, 17
      %v1044 = vpop.permute.xlu0 %1043
      %vm1045 = vcmp.lt.s32.totalorder %v838, 17
      %v1046 = vsel %vm1045, %v1030, %v1038
      %v1047 = vsel %vm1045, %v1032, %v1040
      %v1048 = vsel %vm1045, %v1034, %v1042
      %v1049 = vsel %vm1045, %v1036, %v1044
      %v1050 = vsel %vm1045, %v1038, %v1030
      %v1051 = vsel %vm1045, %v1040, %v1032
      %v1052 = vsel %vm1045, %v1042, %v1034
      %v1053 = vsel %vm1045, %v1044, %v1036
      %v1054 = vld [vmem:[%s4] ss:$8 sm:$0x3]
      %v1056 = vlaneseq
      %v1057 = vshrl.u32 %v1056, 7
      %v1058 = vsub.s32 0, %v1057
      %v1059 = vrot.slane %v1054, %v1058
      %v1060 = vlaneseq
      %v1061 = vshrl.u32 %v1060, 7
      %v1062 = vsub.s32 1, %v1061
      %v1063 = vrot.slane %v1054, %v1062
      %v1066 = vmul.f32 %v1050, %v1059
      %v1067 = vmul.f32 %v1046, %v1063
      %v1068 = vmul.f32 %v1051, %v1059
      %v1069 = vmul.f32 %v1047, %v1063
      %v1070 = vmul.f32 %v1052, %v1059
      %v1071 = vmul.f32 %v1048, %v1063
      %v1072 = vmul.f32 %v1053, %v1059
      %v1073 = vmul.f32 %v1049, %v1063
      %1074 = vst [vmem:[#allocation4] sm:$0xff] %v1066
      %1075 = vst [vmem:[#allocation4 + $0x8] sm:$0xff] %v1067
      %1076 = vst [vmem:[#allocation4 + $0x10] sm:$0xff] %v1068
      %1077 = vst [vmem:[#allocation4 + $0x18] sm:$0xff] %v1069
      %1078 = vst [vmem:[#allocation4 + $0x20] sm:$0xff] %v1070
      %1079 = vst [vmem:[#allocation4 + $0x28] sm:$0xff] %v1071
      %1080 = vst [vmem:[#allocation4 + $0x30] sm:$0xff] %v1072
      %1081 = vst [vmem:[#allocation4 + $0x38] sm:$0xff] %v1073
      %1082 = vrot.lane.b32.xlu0 %v559, 16
      %v1083 = vpop.permute.xlu0 %1082
      %1084 = vrot.lane.b32.xlu0 %v561, 16
      %v1085 = vpop.permute.xlu0 %1084
      %1086 = vrot.lane.b32.xlu0 %v563, 16
      %v1087 = vpop.permute.xlu0 %1086
      %1088 = vrot.lane.b32.xlu0 %v565, 16
      %v1089 = vpop.permute.xlu0 %1088
      %1090 = vrot.lane.b32.xlu0 %v560, 16
      %v1091 = vpop.permute.xlu0 %1090
      %1092 = vrot.lane.b32.xlu0 %v562, 16
      %v1093 = vpop.permute.xlu0 %1092
      %1094 = vrot.lane.b32.xlu0 %v564, 16
      %v1095 = vpop.permute.xlu0 %1094
      %1096 = vrot.lane.b32.xlu0 %v566, 16
      %v1097 = vpop.permute.xlu0 %1096
      %vm1098 = vcmp.lt.s32.totalorder %v838, 16
      %v1099 = vsel %vm1098, %v1083, %v1091
      %v1100 = vsel %vm1098, %v1085, %v1093
      %v1101 = vsel %vm1098, %v1087, %v1095
      %v1102 = vsel %vm1098, %v1089, %v1097
      %v1103 = vsel %vm1098, %v1091, %v1083
      %v1104 = vsel %vm1098, %v1093, %v1085
      %v1105 = vsel %vm1098, %v1095, %v1087
      %v1106 = vsel %vm1098, %v1097, %v1089
      %s1107 = scalar_lea.vmem %s4, 1
      %v1108 = vld [vmem:[%s1107] ss:$8 sm:$0x3]
      %v1110 = vlaneseq
      %v1111 = vshrl.u32 %v1110, 7
      %v1112 = vsub.s32 0, %v1111
      %v1113 = vrot.slane %v1108, %v1112
      %v1114 = vlaneseq
      %v1115 = vshrl.u32 %v1114, 7
      %v1116 = vsub.s32 1, %v1115
      %v1117 = vrot.slane %v1108, %v1116
      %v1120 = vmul.f32 %v1103, %v1113
      %v1121 = vmul.f32 %v1099, %v1117
      %v1122 = vmul.f32 %v1104, %v1113
      %v1123 = vmul.f32 %v1100, %v1117
      %v1124 = vmul.f32 %v1105, %v1113
      %v1125 = vmul.f32 %v1101, %v1117
      %v1126 = vmul.f32 %v1106, %v1113
      %v1127 = vmul.f32 %v1102, %v1117
      %1128 = vst [vmem:[#allocation4 + $0x40] sm:$0xff] %v1120
      %1129 = vst [vmem:[#allocation4 + $0x48] sm:$0xff] %v1121
      %1130 = vst [vmem:[#allocation4 + $0x50] sm:$0xff] %v1122
      %1131 = vst [vmem:[#allocation4 + $0x58] sm:$0xff] %v1123
      %1132 = vst [vmem:[#allocation4 + $0x60] sm:$0xff] %v1124
      %1133 = vst [vmem:[#allocation4 + $0x68] sm:$0xff] %v1125
      %1134 = vst [vmem:[#allocation4 + $0x70] sm:$0xff] %v1126
      %1135 = vst [vmem:[#allocation4 + $0x78] sm:$0xff] %v1127
      %1136 = vrot.lane.b32.xlu0 %v559, 15
      %v1137 = vpop.permute.xlu0 %1136
      %1138 = vrot.lane.b32.xlu0 %v561, 15
      %v1139 = vpop.permute.xlu0 %1138
      %1140 = vrot.lane.b32.xlu0 %v563, 15
      %v1141 = vpop.permute.xlu0 %1140
      %1142 = vrot.lane.b32.xlu0 %v565, 15
      %v1143 = vpop.permute.xlu0 %1142
      %1144 = vrot.lane.b32.xlu0 %v560, 15
      %v1145 = vpop.permute.xlu0 %1144
      %1146 = vrot.lane.b32.xlu0 %v562, 15
      %v1147 = vpop.permute.xlu0 %1146
      %1148 = vrot.lane.b32.xlu0 %v564, 15
      %v1149 = vpop.permute.xlu0 %1148
      %1150 = vrot.lane.b32.xlu0 %v566, 15
      %v1151 = vpop.permute.xlu0 %1150
      %vm1152 = vcmp.lt.s32.totalorder %v838, 15
      %v1153 = vsel %vm1152, %v1137, %v1145
      %v1154 = vsel %vm1152, %v1139, %v1147
      %v1155 = vsel %vm1152, %v1141, %v1149
      %v1156 = vsel %vm1152, %v1143, %v1151
      %v1157 = vsel %vm1152, %v1145, %v1137
      %v1158 = vsel %vm1152, %v1147, %v1139
      %v1159 = vsel %vm1152, %v1149, %v1141
      %v1160 = vsel %vm1152, %v1151, %v1143
      %s1161 = scalar_lea.vmem %s4, 2
      %v1162 = vld [vmem:[%s1161] ss:$8 sm:$0x3]
      %v1164 = vlaneseq
      %v1165 = vshrl.u32 %v1164, 7
      %v1166 = vsub.s32 0, %v1165
      %v1167 = vrot.slane %v1162, %v1166
      %v1168 = vlaneseq
      %v1169 = vshrl.u32 %v1168, 7
      %v1170 = vsub.s32 1, %v1169
      %v1171 = vrot.slane %v1162, %v1170
      %v1174 = vmul.f32 %v1157, %v1167
      %v1175 = vmul.f32 %v1153, %v1171
      %v1176 = vmul.f32 %v1158, %v1167
      %v1177 = vmul.f32 %v1154, %v1171
      %v1178 = vmul.f32 %v1159, %v1167
      %v1179 = vmul.f32 %v1155, %v1171
      %v1180 = vmul.f32 %v1160, %v1167
      %v1181 = vmul.f32 %v1156, %v1171
      %1182 = vst [vmem:[#allocation4 + $0x80] sm:$0xff] %v1174
      %1183 = vst [vmem:[#allocation4 + $0x88] sm:$0xff] %v1175
      %1184 = vst [vmem:[#allocation4 + $0x90] sm:$0xff] %v1176
      %1185 = vst [vmem:[#allocation4 + $0x98] sm:$0xff] %v1177
      %1186 = vst [vmem:[#allocation4 + $0xa0] sm:$0xff] %v1178
      %1187 = vst [vmem:[#allocation4 + $0xa8] sm:$0xff] %v1179
      %1188 = vst [vmem:[#allocation4 + $0xb0] sm:$0xff] %v1180
      %1189 = vst [vmem:[#allocation4 + $0xb8] sm:$0xff] %v1181
      %1190 = vrot.lane.b32.xlu0 %v559, 1
      %v1191 = vpop.permute.xlu0 %1190
      %1192 = vrot.lane.b32.xlu0 %v561, 1
      %v1193 = vpop.permute.xlu0 %1192
      %1194 = vrot.lane.b32.xlu0 %v563, 1
      %v1195 = vpop.permute.xlu0 %1194
      %1196 = vrot.lane.b32.xlu0 %v565, 1
      %v1197 = vpop.permute.xlu0 %1196
      %1198 = vrot.lane.b32.xlu0 %v560, 1
      %v1199 = vpop.permute.xlu0 %1198
      %1200 = vrot.lane.b32.xlu0 %v562, 1
      %v1201 = vpop.permute.xlu0 %1200
      %1202 = vrot.lane.b32.xlu0 %v564, 1
      %v1203 = vpop.permute.xlu0 %1202
      %1204 = vrot.lane.b32.xlu0 %v566, 1
      %v1205 = vpop.permute.xlu0 %1204
      %vm1206 = vcmp.lt.s32.totalorder %v838, 1
      %v1207 = vsel %vm1206, %v1191, %v1199
      %v1208 = vsel %vm1206, %v1193, %v1201
      %v1209 = vsel %vm1206, %v1195, %v1203
      %v1210 = vsel %vm1206, %v1197, %v1205
      %v1211 = vsel %vm1206, %v1199, %v1191
      %v1212 = vsel %vm1206, %v1201, %v1193
      %v1213 = vsel %vm1206, %v1203, %v1195
      %v1214 = vsel %vm1206, %v1205, %v1197
      %s1215 = scalar_lea.vmem %s4, 3
      %v1216 = vld [vmem:[%s1215] ss:$8 sm:$0x3]
      %v1218 = vlaneseq
      %v1219 = vshrl.u32 %v1218, 7
      %v1220 = vsub.s32 0, %v1219
      %v1221 = vrot.slane %v1216, %v1220
      %v1222 = vlaneseq
      %v1223 = vshrl.u32 %v1222, 7
      %v1224 = vsub.s32 1, %v1223
      %v1225 = vrot.slane %v1216, %v1224
      %v1228 = vmul.f32 %v1211, %v1221
      %v1229 = vmul.f32 %v1207, %v1225
      %v1230 = vmul.f32 %v1212, %v1221
      %v1231 = vmul.f32 %v1208, %v1225
      %v1232 = vmul.f32 %v1213, %v1221
      %v1233 = vmul.f32 %v1209, %v1225
      %v1234 = vmul.f32 %v1214, %v1221
      %v1235 = vmul.f32 %v1210, %v1225
      %1236 = vst [vmem:[#allocation4 + $0xc0] sm:$0xff] %v1228
      %1237 = vst [vmem:[#allocation4 + $0xc8] sm:$0xff] %v1229
      %1238 = vst [vmem:[#allocation4 + $0xd0] sm:$0xff] %v1230
      %1239 = vst [vmem:[#allocation4 + $0xd8] sm:$0xff] %v1231
      %1240 = vst [vmem:[#allocation4 + $0xe0] sm:$0xff] %v1232
      %1241 = vst [vmem:[#allocation4 + $0xe8] sm:$0xff] %v1233
      %1242 = vst [vmem:[#allocation4 + $0xf0] sm:$0xff] %v1234
      %1243 = vst [vmem:[#allocation4 + $0xf8] sm:$0xff] %v1235
      %s1244 = scalar_lea.vmem %s4, 4
      %v1245 = vld [vmem:[%s1244] ss:$8 sm:$0x3]
      %v1247 = vlaneseq
      %v1248 = vshrl.u32 %v1247, 7
      %v1249 = vsub.s32 0, %v1248
      %v1250 = vrot.slane %v1245, %v1249
      %v1251 = vlaneseq
      %v1252 = vshrl.u32 %v1251, 7
      %v1253 = vsub.s32 1, %v1252
      %v1254 = vrot.slane %v1245, %v1253
      %v1257 = vmul.f32 %v559, %v1250
      %v1258 = vmul.f32 %v560, %v1254
      %v1259 = vmul.f32 %v561, %v1250
      %v1260 = vmul.f32 %v562, %v1254
      %v1261 = vmul.f32 %v563, %v1250
      %v1262 = vmul.f32 %v564, %v1254
      %v1263 = vmul.f32 %v565, %v1250
      %v1264 = vmul.f32 %v566, %v1254
      %1265 = vst [vmem:[#allocation4 + $0x100] sm:$0xff] %v1257
      %1266 = vst [vmem:[#allocation4 + $0x108] sm:$0xff] %v1258
      %1267 = vst [vmem:[#allocation4 + $0x110] sm:$0xff] %v1259
      %1268 = vst [vmem:[#allocation4 + $0x118] sm:$0xff] %v1260
      %1269 = vst [vmem:[#allocation4 + $0x120] sm:$0xff] %v1261
      %1270 = vst [vmem:[#allocation4 + $0x128] sm:$0xff] %v1262
      %1271 = vst [vmem:[#allocation4 + $0x130] sm:$0xff] %v1263
      %1272 = vst [vmem:[#allocation4 + $0x138] sm:$0xff] %v1264
      %1273 = vrot.lane.b32.xlu0 %v559, 127
      %v1274 = vpop.permute.xlu0 %1273
      %1275 = vrot.lane.b32.xlu0 %v561, 127
      %v1276 = vpop.permute.xlu0 %1275
      %1277 = vrot.lane.b32.xlu0 %v563, 127
      %v1278 = vpop.permute.xlu0 %1277
      %1279 = vrot.lane.b32.xlu0 %v565, 127
      %v1280 = vpop.permute.xlu0 %1279
      %1281 = vrot.lane.b32.xlu0 %v560, 127
      %v1282 = vpop.permute.xlu0 %1281
      %1283 = vrot.lane.b32.xlu0 %v562, 127
      %v1284 = vpop.permute.xlu0 %1283
      %1285 = vrot.lane.b32.xlu0 %v564, 127
      %v1286 = vpop.permute.xlu0 %1285
      %1287 = vrot.lane.b32.xlu0 %v566, 127
      %v1288 = vpop.permute.xlu0 %1287
      %vm1289 = vcmp.lt.s32.totalorder %v838, 127
      %v1290 = vsel %vm1289, %v1274, %v1282
      %v1291 = vsel %vm1289, %v1276, %v1284
      %v1292 = vsel %vm1289, %v1278, %v1286
      %v1293 = vsel %vm1289, %v1280, %v1288
      %v1294 = vsel %vm1289, %v1282, %v1274
      %v1295 = vsel %vm1289, %v1284, %v1276
      %v1296 = vsel %vm1289, %v1286, %v1278
      %v1297 = vsel %vm1289, %v1288, %v1280
      %s1298 = scalar_lea.vmem %s4, 5
      %v1299 = vld [vmem:[%s1298] ss:$8 sm:$0x3]
      %v1301 = vlaneseq
      %v1302 = vshrl.u32 %v1301, 7
      %v1303 = vsub.s32 0, %v1302
      %v1304 = vrot.slane %v1299, %v1303
      %v1305 = vlaneseq
      %v1306 = vshrl.u32 %v1305, 7
      %v1307 = vsub.s32 1, %v1306
      %v1308 = vrot.slane %v1299, %v1307
      %v1311 = vmul.f32 %v1290, %v1304
      %v1312 = vmul.f32 %v1294, %v1308
      %v1313 = vmul.f32 %v1291, %v1304
      %v1314 = vmul.f32 %v1295, %v1308
      %v1315 = vmul.f32 %v1292, %v1304
      %v1316 = vmul.f32 %v1296, %v1308
      %v1317 = vmul.f32 %v1293, %v1304
      %v1318 = vmul.f32 %v1297, %v1308
      %1319 = vst [vmem:[#allocation4 + $0x140] sm:$0xff] %v1311
      %1320 = vst [vmem:[#allocation4 + $0x148] sm:$0xff] %v1312
      %1321 = vst [vmem:[#allocation4 + $0x150] sm:$0xff] %v1313
      %1322 = vst [vmem:[#allocation4 + $0x158] sm:$0xff] %v1314
      %1323 = vst [vmem:[#allocation4 + $0x160] sm:$0xff] %v1315
      %1324 = vst [vmem:[#allocation4 + $0x168] sm:$0xff] %v1316
      %1325 = vst [vmem:[#allocation4 + $0x170] sm:$0xff] %v1317
      %1326 = vst [vmem:[#allocation4 + $0x178] sm:$0xff] %v1318
      %1327 = vrot.lane.b32.xlu0 %v559, 113
      %v1328 = vpop.permute.xlu0 %1327
      %1329 = vrot.lane.b32.xlu0 %v561, 113
      %v1330 = vpop.permute.xlu0 %1329
      %1331 = vrot.lane.b32.xlu0 %v563, 113
      %v1332 = vpop.permute.xlu0 %1331
      %1333 = vrot.lane.b32.xlu0 %v565, 113
      %v1334 = vpop.permute.xlu0 %1333
      %1335 = vrot.lane.b32.xlu0 %v560, 113
      %v1336 = vpop.permute.xlu0 %1335
      %1337 = vrot.lane.b32.xlu0 %v562, 113
      %v1338 = vpop.permute.xlu0 %1337
      %1339 = vrot.lane.b32.xlu0 %v564, 113
      %v1340 = vpop.permute.xlu0 %1339
      %1341 = vrot.lane.b32.xlu0 %v566, 113
      %v1342 = vpop.permute.xlu0 %1341
      %vm1343 = vcmp.lt.s32.totalorder %v838, 113
      %v1344 = vsel %vm1343, %v1328, %v1336
      %v1345 = vsel %vm1343, %v1330, %v1338
      %v1346 = vsel %vm1343, %v1332, %v1340
      %v1347 = vsel %vm1343, %v1334, %v1342
      %v1348 = vsel %vm1343, %v1336, %v1328
      %v1349 = vsel %vm1343, %v1338, %v1330
      %v1350 = vsel %vm1343, %v1340, %v1332
      %v1351 = vsel %vm1343, %v1342, %v1334
      %s1352 = scalar_lea.vmem %s4, 6
      %v1353 = vld [vmem:[%s1352] ss:$8 sm:$0x3]
      %v1355 = vlaneseq
      %v1356 = vshrl.u32 %v1355, 7
      %v1357 = vsub.s32 0, %v1356
      %v1358 = vrot.slane %v1353, %v1357
      %v1359 = vlaneseq
      %v1360 = vshrl.u32 %v1359, 7
      %v1361 = vsub.s32 1, %v1360
      %v1362 = vrot.slane %v1353, %v1361
      %v1365 = vmul.f32 %v1344, %v1358
      %v1366 = vmul.f32 %v1348, %v1362
      %v1367 = vmul.f32 %v1345, %v1358
      %v1368 = vmul.f32 %v1349, %v1362
      %v1369 = vmul.f32 %v1346, %v1358
      %v1370 = vmul.f32 %v1350, %v1362
      %v1371 = vmul.f32 %v1347, %v1358
      %v1372 = vmul.f32 %v1351, %v1362
      %1373 = vst [vmem:[#allocation4 + $0x180] sm:$0xff] %v1365
      %1374 = vst [vmem:[#allocation4 + $0x188] sm:$0xff] %v1366
      %1375 = vst [vmem:[#allocation4 + $0x190] sm:$0xff] %v1367
      %1376 = vst [vmem:[#allocation4 + $0x198] sm:$0xff] %v1368
      %1377 = vst [vmem:[#allocation4 + $0x1a0] sm:$0xff] %v1369
      %1378 = vst [vmem:[#allocation4 + $0x1a8] sm:$0xff] %v1370
      %1379 = vst [vmem:[#allocation4 + $0x1b0] sm:$0xff] %v1371
      %1380 = vst [vmem:[#allocation4 + $0x1b8] sm:$0xff] %v1372
      %1381 = vrot.lane.b32.xlu0 %v559, 112
      %v1382 = vpop.permute.xlu0 %1381
      %1383 = vrot.lane.b32.xlu0 %v561, 112
      %v1384 = vpop.permute.xlu0 %1383
      %1385 = vrot.lane.b32.xlu0 %v563, 112
      %v1386 = vpop.permute.xlu0 %1385
      %1387 = vrot.lane.b32.xlu0 %v565, 112
      %v1388 = vpop.permute.xlu0 %1387
      %1389 = vrot.lane.b32.xlu0 %v560, 112
      %v1390 = vpop.permute.xlu0 %1389
      %1391 = vrot.lane.b32.xlu0 %v562, 112
      %v1392 = vpop.permute.xlu0 %1391
      %1393 = vrot.lane.b32.xlu0 %v564, 112
      %v1394 = vpop.permute.xlu0 %1393
      %1395 = vrot.lane.b32.xlu0 %v566, 112
      %v1396 = vpop.permute.xlu0 %1395
      %vm1397 = vcmp.lt.s32.totalorder %v838, 112
      %v1398 = vsel %vm1397, %v1382, %v1390
      %v1399 = vsel %vm1397, %v1384, %v1392
      %v1400 = vsel %vm1397, %v1386, %v1394
      %v1401 = vsel %vm1397, %v1388, %v1396
      %v1402 = vsel %vm1397, %v1390, %v1382
      %v1403 = vsel %vm1397, %v1392, %v1384
      %v1404 = vsel %vm1397, %v1394, %v1386
      %v1405 = vsel %vm1397, %v1396, %v1388
      %s1406 = scalar_lea.vmem %s4, 7
      %v1407 = vld [vmem:[%s1406] ss:$8 sm:$0x3]
      %v1409 = vlaneseq
      %v1410 = vshrl.u32 %v1409, 7
      %v1411 = vsub.s32 0, %v1410
      %v1412 = vrot.slane %v1407, %v1411
      %v1413 = vlaneseq
      %v1414 = vshrl.u32 %v1413, 7
      %v1415 = vsub.s32 1, %v1414
      %v1416 = vrot.slane %v1407, %v1415
      %v1419 = vmul.f32 %v1398, %v1412
      %v1420 = vmul.f32 %v1402, %v1416
      %v1421 = vmul.f32 %v1399, %v1412
      %v1422 = vmul.f32 %v1403, %v1416
      %v1423 = vmul.f32 %v1400, %v1412
      %v1424 = vmul.f32 %v1404, %v1416
      %v1425 = vmul.f32 %v1401, %v1412
      %v1426 = vmul.f32 %v1405, %v1416
      %1427 = vst [vmem:[#allocation4 + $0x1c0] sm:$0xff] %v1419
      %1428 = vst [vmem:[#allocation4 + $0x1c8] sm:$0xff] %v1420
      %1429 = vst [vmem:[#allocation4 + $0x1d0] sm:$0xff] %v1421
      %1430 = vst [vmem:[#allocation4 + $0x1d8] sm:$0xff] %v1422
      %1431 = vst [vmem:[#allocation4 + $0x1e0] sm:$0xff] %v1423
      %1432 = vst [vmem:[#allocation4 + $0x1e8] sm:$0xff] %v1424
      %1433 = vst [vmem:[#allocation4 + $0x1f0] sm:$0xff] %v1425
      %1434 = vst [vmem:[#allocation4 + $0x1f8] sm:$0xff] %v1426
      %1435 = vrot.lane.b32.xlu0 %v559, 111
      %v1436 = vpop.permute.xlu0 %1435
      %1437 = vrot.lane.b32.xlu0 %v561, 111
      %v1438 = vpop.permute.xlu0 %1437
      %1439 = vrot.lane.b32.xlu0 %v563, 111
      %v1440 = vpop.permute.xlu0 %1439
      %1441 = vrot.lane.b32.xlu0 %v565, 111
      %v1442 = vpop.permute.xlu0 %1441
      %1443 = vrot.lane.b32.xlu0 %v560, 111
      %v1444 = vpop.permute.xlu0 %1443
      %1445 = vrot.lane.b32.xlu0 %v562, 111
      %v1446 = vpop.permute.xlu0 %1445
      %1447 = vrot.lane.b32.xlu0 %v564, 111
      %v1448 = vpop.permute.xlu0 %1447
      %1449 = vrot.lane.b32.xlu0 %v566, 111
      %v1450 = vpop.permute.xlu0 %1449
      %vm1451 = vcmp.lt.s32.totalorder %v838, 111
      %v1452 = vsel %vm1451, %v1436, %v1444
      %v1453 = vsel %vm1451, %v1438, %v1446
      %v1454 = vsel %vm1451, %v1440, %v1448
      %v1455 = vsel %vm1451, %v1442, %v1450
      %v1456 = vsel %vm1451, %v1444, %v1436
      %v1457 = vsel %vm1451, %v1446, %v1438
      %v1458 = vsel %vm1451, %v1448, %v1440
      %v1459 = vsel %vm1451, %v1450, %v1442
      %s1460 = scalar_lea.vmem %s4, 16
      %v1461 = vld [vmem:[%s1460] ss:$8 sm:$0x3]
      %v1463 = vlaneseq
      %v1464 = vshrl.u32 %v1463, 7
      %v1465 = vsub.s32 0, %v1464
      %v1466 = vrot.slane %v1461, %v1465
      %v1467 = vlaneseq
      %v1468 = vshrl.u32 %v1467, 7
      %v1469 = vsub.s32 1, %v1468
      %v1470 = vrot.slane %v1461, %v1469
      %v1473 = vmul.f32 %v1452, %v1466
      %v1474 = vmul.f32 %v1456, %v1470
      %v1475 = vmul.f32 %v1453, %v1466
      %v1476 = vmul.f32 %v1457, %v1470
      %v1477 = vmul.f32 %v1454, %v1466
      %v1478 = vmul.f32 %v1458, %v1470
      %v1479 = vmul.f32 %v1455, %v1466
      %v1480 = vmul.f32 %v1459, %v1470
      %1481 = vst [vmem:[#allocation4 + $0x200] sm:$0xff] %v1473
      %1482 = vst [vmem:[#allocation4 + $0x208] sm:$0xff] %v1474
      %1483 = vst [vmem:[#allocation4 + $0x210] sm:$0xff] %v1475
      %1484 = vst [vmem:[#allocation4 + $0x218] sm:$0xff] %v1476
      %1485 = vst [vmem:[#allocation4 + $0x220] sm:$0xff] %v1477
      %1486 = vst [vmem:[#allocation4 + $0x228] sm:$0xff] %v1478
      %1487 = vst [vmem:[#allocation4 + $0x230] sm:$0xff] %v1479
      %1488 = vst [vmem:[#allocation4 + $0x238] sm:$0xff] %v1480
      %v1489 = vld [vmem:[%s3] sm:$0xff]
      %v1490 = vld [vmem:[%s3 + $0x8] sm:$0xff]
      %v1491 = vld [vmem:[%s3 + $0x10] sm:$0xff]
      %v1492 = vld [vmem:[%s3 + $0x18] sm:$0xff]
      %v1493 = vld [vmem:[%s3 + $0x20] sm:$0xff]
      %v1494 = vld [vmem:[%s3 + $0x28] sm:$0xff]
      %v1495 = vld [vmem:[%s3 + $0x30] sm:$0xff]
      %v1496 = vld [vmem:[%s3 + $0x38] sm:$0xff]
      %v1497 = vld [vmem:[%s3 + $0x40] sm:$0xff]
      %v1498 = vld [vmem:[%s3 + $0x48] sm:$0xff]
      %v1499 = vld [vmem:[%s3 + $0x50] sm:$0xff]
      %v1500 = vld [vmem:[%s3 + $0x58] sm:$0xff]
      %v1501 = vld [vmem:[#allocation4] sm:$0xff]
      %v1502 = vld [vmem:[#allocation4 + $0x8] sm:$0xff]
      %v1503 = vld [vmem:[#allocation4 + $0x10] sm:$0xff]
      %v1504 = vld [vmem:[#allocation4 + $0x18] sm:$0xff]
      %v1505 = vld [vmem:[#allocation4 + $0x20] sm:$0xff]
      %v1506 = vld [vmem:[#allocation4 + $0x28] sm:$0xff]
      %v1507 = vld [vmem:[#allocation4 + $0x30] sm:$0xff]
      %v1508 = vld [vmem:[#allocation4 + $0x38] sm:$0xff]
      %v1509 = vld [vmem:[#allocation4 + $0x40] sm:$0xff]
      %v1510 = vld [vmem:[#allocation4 + $0x48] sm:$0xff]
      %v1511 = vld [vmem:[#allocation4 + $0x50] sm:$0xff]
      %v1512 = vld [vmem:[#allocation4 + $0x58] sm:$0xff]
      %v1513 = vld [vmem:[#allocation4 + $0x60] sm:$0xff]
      %v1514 = vld [vmem:[#allocation4 + $0x68] sm:$0xff]
      %v1515 = vld [vmem:[#allocation4 + $0x70] sm:$0xff]
      %v1516 = vld [vmem:[#allocation4 + $0x78] sm:$0xff]
      %v1517 = vld [vmem:[#allocation4 + $0x80] sm:$0xff]
      %v1518 = vld [vmem:[#allocation4 + $0x88] sm:$0xff]
      %v1519 = vld [vmem:[#allocation4 + $0x90] sm:$0xff]
      %v1520 = vld [vmem:[#allocation4 + $0x98] sm:$0xff]
      %v1521 = vld [vmem:[#allocation4 + $0xa0] sm:$0xff]
      %v1522 = vld [vmem:[#allocation4 + $0xa8] sm:$0xff]
      %v1523 = vld [vmem:[#allocation4 + $0xb0] sm:$0xff]
      %v1524 = vld [vmem:[#allocation4 + $0xb8] sm:$0xff]
      %v1525 = vld [vmem:[#allocation4 + $0xc0] sm:$0xff]
      %v1526 = vld [vmem:[#allocation4 + $0xc8] sm:$0xff]
      %v1527 = vld [vmem:[#allocation4 + $0xd0] sm:$0xff]
      %v1528 = vld [vmem:[#allocation4 + $0xd8] sm:$0xff]
      %v1529 = vld [vmem:[#allocation4 + $0xe0] sm:$0xff]
      %v1530 = vld [vmem:[#allocation4 + $0xe8] sm:$0xff]
      %v1531 = vld [vmem:[#allocation4 + $0xf0] sm:$0xff]
      %v1532 = vld [vmem:[#allocation4 + $0xf8] sm:$0xff]
      %v1533 = vld [vmem:[#allocation4 + $0x100] sm:$0xff]
      %v1534 = vld [vmem:[#allocation4 + $0x108] sm:$0xff]
      %v1535 = vld [vmem:[#allocation4 + $0x110] sm:$0xff]
      %v1536 = vld [vmem:[#allocation4 + $0x118] sm:$0xff]
      %v1537 = vld [vmem:[#allocation4 + $0x120] sm:$0xff]
      %v1538 = vld [vmem:[#allocation4 + $0x128] sm:$0xff]
      %v1539 = vld [vmem:[#allocation4 + $0x130] sm:$0xff]
      %v1540 = vld [vmem:[#allocation4 + $0x138] sm:$0xff]
      %v1541 = vld [vmem:[#allocation4 + $0x140] sm:$0xff]
      %v1542 = vld [vmem:[#allocation4 + $0x148] sm:$0xff]
      %v1543 = vld [vmem:[#allocation4 + $0x150] sm:$0xff]
      %v1544 = vld [vmem:[#allocation4 + $0x158] sm:$0xff]
      %v1545 = vld [vmem:[#allocation4 + $0x160] sm:$0xff]
      %v1546 = vld [vmem:[#allocation4 + $0x168] sm:$0xff]
      %v1547 = vld [vmem:[#allocation4 + $0x170] sm:$0xff]
      %v1548 = vld [vmem:[#allocation4 + $0x178] sm:$0xff]
      %v1549 = vld [vmem:[#allocation4 + $0x180] sm:$0xff]
      %v1550 = vld [vmem:[#allocation4 + $0x188] sm:$0xff]
      %v1551 = vld [vmem:[#allocation4 + $0x190] sm:$0xff]
      %v1552 = vld [vmem:[#allocation4 + $0x198] sm:$0xff]
      %v1553 = vld [vmem:[#allocation4 + $0x1a0] sm:$0xff]
      %v1554 = vld [vmem:[#allocation4 + $0x1a8] sm:$0xff]
      %v1555 = vld [vmem:[#allocation4 + $0x1b0] sm:$0xff]
      %v1556 = vld [vmem:[#allocation4 + $0x1b8] sm:$0xff]
      %v1557 = vld [vmem:[#allocation4 + $0x1c0] sm:$0xff]
      %v1558 = vld [vmem:[#allocation4 + $0x1c8] sm:$0xff]
      %v1559 = vld [vmem:[#allocation4 + $0x1d0] sm:$0xff]
      %v1560 = vld [vmem:[#allocation4 + $0x1d8] sm:$0xff]
      %v1561 = vld [vmem:[#allocation4 + $0x1e0] sm:$0xff]
      %v1562 = vld [vmem:[#allocation4 + $0x1e8] sm:$0xff]
      %v1563 = vld [vmem:[#allocation4 + $0x1f0] sm:$0xff]
      %v1564 = vld [vmem:[#allocation4 + $0x1f8] sm:$0xff]
      %v1565 = vld [vmem:[#allocation4 + $0x200] sm:$0xff]
      %v1566 = vld [vmem:[#allocation4 + $0x208] sm:$0xff]
      %v1567 = vld [vmem:[#allocation4 + $0x210] sm:$0xff]
      %v1568 = vld [vmem:[#allocation4 + $0x218] sm:$0xff]
      %v1569 = vld [vmem:[#allocation4 + $0x220] sm:$0xff]
      %v1570 = vld [vmem:[#allocation4 + $0x228] sm:$0xff]
      %v1571 = vld [vmem:[#allocation4 + $0x230] sm:$0xff]
      %v1572 = vld [vmem:[#allocation4 + $0x238] sm:$0xff]
      %v1574 = vsel %vm919, %v1491, 0
      %v1577 = vsel %vm919, %v1494, 0
      %v1580 = vsel %vm919, %v1497, 0
      %v1583 = vsel %vm919, %v1500, 0
      %1585 = vmatprep.subr.mxu0 %v1502
      %1586 = vmatpush1.msra.mxu0 %v1501
      %1587 = vmatprep.subr.mxu0 %v1504
      %1588 = vmatpush1.msra.mxu0 %v1503
      %1589 = vmatprep.subr.mxu0 %v1506
      %1590 = vmatpush1.msra.mxu0 %v1505
      %1591 = vmatprep.subr.mxu0 %v1508
      %1592 = vmatpush1.msra.mxu0 %v1507
      %1593 = vmatprep.subr.mxu0 %v1510
      %1594 = vmatpush1.msra.mxu0 %v1509
      %1595 = vmatprep.subr.mxu0 %v1512
      %1596 = vmatpush1.msra.mxu0 %v1511
      %1597 = vmatprep.subr.mxu0 %v1514
      %1598 = vmatpush1.msra.mxu0 %v1513
      %1599 = vmatprep.subr.mxu0 %v1516
      %1600 = vmatpush1.msra.mxu0 %v1515
      %1601 = vmatprep.subr.mxu0 %v1518
      %1602 = vmatpush1.msra.mxu0 %v1517
      %1603 = vmatprep.subr.mxu0 %v1520
      %1604 = vmatpush1.msra.mxu0 %v1519
      %1605 = vmatprep.subr.mxu0 %v1522
      %1606 = vmatpush1.msra.mxu0 %v1521
      %1607 = vmatprep.subr.mxu0 %v1524
      %1608 = vmatpush1.msra.mxu0 %v1523
      %1609 = vmatprep.subr.mxu0 %v1526
      %1610 = vmatpush1.msra.mxu0 %v1525
      %1611 = vmatprep.subr.mxu0 %v1528
      %1612 = vmatpush1.msra.mxu0 %v1527
      %1613 = vmatprep.subr.mxu0 %v1530
      %1614 = vmatpush1.msra.mxu0 %v1529
      %1615 = vmatprep.subr.mxu0 %v1532
      %1616 = vmatpush1.msra.mxu0 %v1531
      %1617 = vmatprep.subr.mxu0 %v1534
      %1618 = vmatpush1.msra.mxu0 %v1533
      %1619 = vmatprep.subr.mxu0 %v1536
      %1620 = vmatpush1.msra.mxu0 %v1535
      %1621 = vmatprep.subr.mxu0 %v1538
      %1622 = vmatpush1.msra.mxu0 %v1537
      %1623 = vmatprep.subr.mxu0 %v1540
      %1624 = vmatpush1.msra.mxu0 %v1539
      %1625 = vmatprep.subr.mxu0 %v1542
      %1626 = vmatpush1.msra.mxu0 %v1541
      %1627 = vmatprep.subr.mxu0 %v1544
      %1628 = vmatpush1.msra.mxu0 %v1543
      %1629 = vmatprep.subr.mxu0 %v1546
      %1630 = vmatpush1.msra.mxu0 %v1545
      %1631 = vmatprep.subr.mxu0 %v1548
      %1632 = vmatpush1.msra.mxu0 %v1547
      %1633 = vmatprep.subr.mxu0 %v1550
      %1634 = vmatpush1.msra.mxu0 %v1549
      %1635 = vmatprep.subr.mxu0 %v1552
      %1636 = vmatpush1.msra.mxu0 %v1551
      %1637 = vmatprep.subr.mxu0 %v1554
      %1638 = vmatpush1.msra.mxu0 %v1553
      %1639 = vmatprep.subr.mxu0 %v1556
      %1640 = vmatpush1.msra.mxu0 %v1555
      %1641 = vmatprep.subr.mxu0 %v1558
      %1642 = vmatpush1.msra.mxu0 %v1557
      %1643 = vmatprep.subr.mxu0 %v1560
      %1644 = vmatpush1.msra.mxu0 %v1559
      %1645 = vmatprep.subr.mxu0 %v1562
      %1646 = vmatpush1.msra.mxu0 %v1561
      %1647 = vmatprep.subr.mxu0 %v1564
      %1648 = vmatpush1.msra.mxu0 %v1563
      %1649 = vmatprep.mubr.f32.mxu0 %v1490
      %1650 = vmatmul.mubr.f32.gmra.mrb[0].mxu0 %v1489
      %v1651 = vpop.f32.mrb[0].mxu0
      %v1652 = vadd.f32 0.0, %v1651
      %v1653 = vpop.f32.mrb[0].mxu0
      %v1654 = vadd.f32 0.0, %v1653
      %1655 = vmatprep.mubr.f32.mxu0 %v1493
      %1656 = vmatmul.mubr.f32.gmra.mrb[0].mxu0 %v1492
      %v1657 = vpop.f32.mrb[0].mxu0
      %v1658 = vadd.f32 0.0, %v1657
      %v1659 = vpop.f32.mrb[0].mxu0
      %v1660 = vadd.f32 0.0, %v1659
      %1661 = vmatprep.mubr.f32.mxu0 %v1496
      %1662 = vmatmul.mubr.f32.gmra.mrb[0].mxu0 %v1495
      %v1663 = vpop.f32.mrb[0].mxu0
      %v1664 = vadd.f32 0.0, %v1663
      %v1665 = vpop.f32.mrb[0].mxu0
      %v1666 = vadd.f32 0.0, %v1665
      %1667 = vmatprep.mubr.f32.mxu0 %v1499
      %1668 = vmatmul.mubr.f32.gmra.mrb[0].mxu0 %v1498
      %v1669 = vpop.f32.mrb[0].mxu0
      %v1670 = vadd.f32 0.0, %v1669
      %v1671 = vpop.f32.mrb[0].mxu0
      %v1672 = vadd.f32 0.0, %v1671
      %1673 = vdwg.mxu0
      %1674 = vmatprep.subr.mxu0 %v1566
      %1675 = vmatpush1.msra.mxu0 %v1565
      %1676 = vmatprep.subr.mxu0 %v1568
      %1677 = vmatpush1.msra.mxu0 %v1567
      %1678 = vmatprep.subr.mxu0 %v1570
      %1679 = vmatpush1.msra.mxu0 %v1569
      %1680 = vmatprep.subr.mxu0 %v1572
      %1681 = vmatpush1.msra.mxu0 %v1571
      %1682 = vmatprep.subr.mxu0 0.0
      %1683 = vmatpush1.msra.mxu0 0.0
      %1684 = vmatprep.subr.mxu0 0.0
      %1685 = vmatpush1.msra.mxu0 0.0
      %1686 = vmatprep.subr.mxu0 0.0
      %1687 = vmatpush1.msra.mxu0 0.0
      %1688 = vmatprep.subr.mxu0 0.0
      %1689 = vmatpush1.msra.mxu0 0.0
      %1690 = vmatprep.subr.mxu0 0.0
      %1691 = vmatpush1.msra.mxu0 0.0
      %1692 = vmatprep.subr.mxu0 0.0
      %1693 = vmatpush1.msra.mxu0 0.0
      %1694 = vmatprep.subr.mxu0 0.0
      %1695 = vmatpush1.msra.mxu0 0.0
      %1696 = vmatprep.subr.mxu0 0.0
      %1697 = vmatpush1.msra.mxu0 0.0
      %1698 = vmatprep.subr.mxu0 0.0
      %1699 = vmatpush1.msra.mxu0 0.0
      %1700 = vmatprep.subr.mxu0 0.0
      %1701 = vmatpush1.msra.mxu0 0.0
      %1702 = vmatprep.subr.mxu0 0.0
      %1703 = vmatpush1.msra.mxu0 0.0
      %1704 = vmatprep.subr.mxu0 0.0
      %1705 = vmatpush1.msra.mxu0 0.0
      %1706 = vmatprep.subr.mxu0 0.0
      %1707 = vmatpush1.msra.mxu0 0.0
      %1708 = vmatprep.subr.mxu0 0.0
      %1709 = vmatpush1.msra.mxu0 0.0
      %1710 = vmatprep.subr.mxu0 0.0
      %1711 = vmatpush1.msra.mxu0 0.0
      %1712 = vmatprep.subr.mxu0 0.0
      %1713 = vmatpush1.msra.mxu0 0.0
      %1714 = vmatprep.subr.mxu0 0.0
      %1715 = vmatpush1.msra.mxu0 0.0
      %1716 = vmatprep.subr.mxu0 0.0
      %1717 = vmatpush1.msra.mxu0 0.0
      %1718 = vmatprep.subr.mxu0 0.0
      %1719 = vmatpush1.msra.mxu0 0.0
      %1720 = vmatprep.subr.mxu0 0.0
      %1721 = vmatpush1.msra.mxu0 0.0
      %1722 = vmatprep.subr.mxu0 0.0
      %1723 = vmatpush1.msra.mxu0 0.0
      %1724 = vmatprep.subr.mxu0 0.0
      %1725 = vmatpush1.msra.mxu0 0.0
      %1726 = vmatprep.subr.mxu0 0.0
      %1727 = vmatpush1.msra.mxu0 0.0
      %1728 = vmatprep.subr.mxu0 0.0
      %1729 = vmatpush1.msra.mxu0 0.0
      %1730 = vmatprep.subr.mxu0 0.0
      %1731 = vmatpush1.msra.mxu0 0.0
      %1732 = vmatprep.subr.mxu0 0.0
      %1733 = vmatpush1.msra.mxu0 0.0
      %1734 = vmatprep.subr.mxu0 0.0
      %1735 = vmatpush1.msra.mxu0 0.0
      %1736 = vmatprep.subr.mxu0 0.0
      %1737 = vmatpush1.msra.mxu0 0.0
      %1738 = vmatprep.mubr.f32.mxu0 0.0
      %1739 = vmatmul.mubr.f32.gmra.mrb[0].mxu0 %v1574
      %v1740 = vpop.f32.mrb[0].mxu0
      %v1741 = vadd.f32 %v1652, %v1740
      %v1742 = vpop.f32.mrb[0].mxu0
      %v1743 = vadd.f32 %v1654, %v1742
      %1744 = vmatprep.mubr.f32.mxu0 0.0
      %1745 = vmatmul.mubr.f32.gmra.mrb[0].mxu0 %v1577
      %v1746 = vpop.f32.mrb[0].mxu0
      %v1747 = vadd.f32 %v1658, %v1746
      %v1748 = vpop.f32.mrb[0].mxu0
      %v1749 = vadd.f32 %v1660, %v1748
      %1750 = vmatprep.mubr.f32.mxu0 0.0
      %1751 = vmatmul.mubr.f32.gmra.mrb[0].mxu0 %v1580
      %v1752 = vpop.f32.mrb[0].mxu0
      %v1753 = vadd.f32 %v1664, %v1752
      %v1754 = vpop.f32.mrb[0].mxu0
      %v1755 = vadd.f32 %v1666, %v1754
      %1756 = vmatprep.mubr.f32.mxu0 0.0
      %1757 = vmatmul.mubr.f32.gmra.mrb[0].mxu0 %v1583
      %v1758 = vpop.f32.mrb[0].mxu0
      %v1759 = vadd.f32 %v1670, %v1758
      %v1760 = vpop.f32.mrb[0].mxu0
      %v1761 = vadd.f32 %v1672, %v1760
      %1762 = vdwg.mxu0
      %1763 = vst [vmem:[%s458] sm:$0xff] %v1741
      %1764 = vst [vmem:[%s458 + $0x8] sm:$0xff] %v1743
      %1765 = vst [vmem:[%s458 + $0x10] sm:$0xff] %v1747
      %1766 = vst [vmem:[%s458 + $0x18] sm:$0xff] %v1749
      %1767 = vst [vmem:[%s458 + $0x20] sm:$0xff] %v1753
      %1768 = vst [vmem:[%s458 + $0x28] sm:$0xff] %v1755
      %1769 = vst [vmem:[%s458 + $0x30] sm:$0xff] %v1759
      %1770 = vst [vmem:[%s458 + $0x38] sm:$0xff] %v1761
      %v1771 = vld [vmem:[%s449] sm:$0xff]
      %v1772 = vld [vmem:[%s449 + $0x8] sm:$0xff]
      %v1773 = vld [vmem:[%s449 + $0x10] sm:$0xff]
      %v1774 = vld [vmem:[%s449 + $0x18] sm:$0xff]
      %v1775 = vld [vmem:[%s449 + $0x20] sm:$0xff]
      %v1776 = vld [vmem:[%s449 + $0x28] sm:$0xff]
      %v1777 = vld [vmem:[%s449 + $0x30] sm:$0xff]
      %v1778 = vld [vmem:[%s449 + $0x38] sm:$0xff]
      %v1779 = vld [vmem:[%s458] sm:$0xff]
      %v1780 = vld [vmem:[%s458 + $0x8] sm:$0xff]
      %v1781 = vld [vmem:[%s458 + $0x10] sm:$0xff]
      %v1782 = vld [vmem:[%s458 + $0x18] sm:$0xff]
      %v1783 = vld [vmem:[%s458 + $0x20] sm:$0xff]
      %v1784 = vld [vmem:[%s458 + $0x28] sm:$0xff]
      %v1785 = vld [vmem:[%s458 + $0x30] sm:$0xff]
      %v1786 = vld [vmem:[%s458 + $0x38] sm:$0xff]
      %v1787 = vld [vmem:[%s466] sm:$0x1]
      %v1788 = vadd.f32 %v1771, %v1772
      %1789 = vadd.xlane.f32.xlu0 %v1788
      %v1790 = vpop.xlane.xlu0 %1789
      %v1791 = vadd.f32 %v1773, %v1774
      %1792 = vadd.xlane.f32.xlu0 %v1791
      %v1793 = vpop.xlane.xlu0 %1792
      %v1794 = vadd.f32 %v1775, %v1776
      %1795 = vadd.xlane.f32.xlu0 %v1794
      %v1796 = vpop.xlane.xlu0 %1795
      %v1797 = vadd.f32 %v1777, %v1778
      %1798 = vadd.xlane.f32.xlu0 %v1797
      %v1799 = vpop.xlane.xlu0 %1798
      %v1804 = vlaneseq
      %v1805 = vshrl.u32 %v1804, 7
      %v1806 = vsub.s32 %v838, %v1805
      %v1807 = vrot.slane %v1790, %v1806
      %v1808 = vlaneseq
      %v1809 = vshrl.u32 %v1808, 7
      %v1810 = vsub.s32 %v843, %v1809
      %v1811 = vrot.slane %v1793, %v1810
      %v1812 = vsel %vm848, %v1811, %v1807
      %v1813 = vlaneseq
      %v1814 = vshrl.u32 %v1813, 7
      %v1815 = vsub.s32 %v850, %v1814
      %v1816 = vrot.slane %v1796, %v1815
      %v1817 = vsel %vm855, %v1816, %v1812
      %v1818 = vlaneseq
      %v1819 = vshrl.u32 %v1818, 7
      %v1820 = vsub.s32 %v857, %v1819
      %v1821 = vrot.slane %v1799, %v1820
      %v1822 = vsel %vm862, %v1821, %v1817
      %v1824 = vadd.f32 %v1787, %v1822
      %1825 = vst.msk [vmem:[%s466] sm:$0x1] %vm866, %v1824
      %v1826 = vld [vmem:[%s466 + $0x1] sm:$0x1]
      %v1827 = vmul.f32 %v1771, %v1771
      %v1828 = vmul.f32 %v1772, %v1772
      %v1829 = vmul.f32 %v1773, %v1773
      %v1830 = vmul.f32 %v1774, %v1774
      %v1831 = vmul.f32 %v1775, %v1775
      %v1832 = vmul.f32 %v1776, %v1776
      %v1833 = vmul.f32 %v1777, %v1777
      %v1834 = vmul.f32 %v1778, %v1778
      %v1835 = vadd.f32 %v1827, %v1828
      %1836 = vadd.xlane.f32.xlu0 %v1835
      %v1837 = vpop.xlane.xlu0 %1836
      %v1838 = vadd.f32 %v1829, %v1830
      %1839 = vadd.xlane.f32.xlu0 %v1838
      %v1840 = vpop.xlane.xlu0 %1839
      %v1841 = vadd.f32 %v1831, %v1832
      %1842 = vadd.xlane.f32.xlu0 %v1841
      %v1843 = vpop.xlane.xlu0 %1842
      %v1844 = vadd.f32 %v1833, %v1834
      %1845 = vadd.xlane.f32.xlu0 %v1844
      %v1846 = vpop.xlane.xlu0 %1845
      %v1851 = vlaneseq
      %v1852 = vshrl.u32 %v1851, 7
      %v1853 = vsub.s32 %v838, %v1852
      %v1854 = vrot.slane %v1837, %v1853
      %v1855 = vlaneseq
      %v1856 = vshrl.u32 %v1855, 7
      %v1857 = vsub.s32 %v843, %v1856
      %v1858 = vrot.slane %v1840, %v1857
      %v1859 = vsel %vm848, %v1858, %v1854
      %v1860 = vlaneseq
      %v1861 = vshrl.u32 %v1860, 7
      %v1862 = vsub.s32 %v850, %v1861
      %v1863 = vrot.slane %v1843, %v1862
      %v1864 = vsel %vm855, %v1863, %v1859
      %v1865 = vlaneseq
      %v1866 = vshrl.u32 %v1865, 7
      %v1867 = vsub.s32 %v857, %v1866
      %v1868 = vrot.slane %v1846, %v1867
      %v1869 = vsel %vm862, %v1868, %v1864
      %v1871 = vadd.f32 %v1826, %v1869
      %1872 = vst.msk [vmem:[%s466 + $0x1] sm:$0x1] %vm866, %v1871
      %v1873 = vld [vmem:[%s470] sm:$0x1]
      %v1874 = vadd.f32 %v1779, %v1780
      %1875 = vadd.xlane.f32.xlu0 %v1874
      %v1876 = vpop.xlane.xlu0 %1875
      %v1877 = vadd.f32 %v1781, %v1782
      %1878 = vadd.xlane.f32.xlu0 %v1877
      %v1879 = vpop.xlane.xlu0 %1878
      %v1880 = vadd.f32 %v1783, %v1784
      %1881 = vadd.xlane.f32.xlu0 %v1880
      %v1882 = vpop.xlane.xlu0 %1881
      %v1883 = vadd.f32 %v1785, %v1786
      %1884 = vadd.xlane.f32.xlu0 %v1883
      %v1885 = vpop.xlane.xlu0 %1884
      %v1890 = vlaneseq
      %v1891 = vshrl.u32 %v1890, 7
      %v1892 = vsub.s32 %v838, %v1891
      %v1893 = vrot.slane %v1876, %v1892
      %v1894 = vlaneseq
      %v1895 = vshrl.u32 %v1894, 7
      %v1896 = vsub.s32 %v843, %v1895
      %v1897 = vrot.slane %v1879, %v1896
      %v1898 = vsel %vm848, %v1897, %v1893
      %v1899 = vlaneseq
      %v1900 = vshrl.u32 %v1899, 7
      %v1901 = vsub.s32 %v850, %v1900
      %v1902 = vrot.slane %v1882, %v1901
      %v1903 = vsel %vm855, %v1902, %v1898
      %v1904 = vlaneseq
      %v1905 = vshrl.u32 %v1904, 7
      %v1906 = vsub.s32 %v857, %v1905
      %v1907 = vrot.slane %v1885, %v1906
      %v1908 = vsel %vm862, %v1907, %v1903
      %v1910 = vadd.f32 %v1873, %v1908
      %1911 = vst.msk [vmem:[%s470] sm:$0x1] %vm866, %v1910
      %v1912 = vld [vmem:[%s470 + $0x1] sm:$0x1]
      %v1913 = vmul.f32 %v1779, %v1779
      %v1914 = vmul.f32 %v1780, %v1780
      %v1915 = vmul.f32 %v1781, %v1781
      %v1916 = vmul.f32 %v1782, %v1782
      %v1917 = vmul.f32 %v1783, %v1783
      %v1918 = vmul.f32 %v1784, %v1784
      %v1919 = vmul.f32 %v1785, %v1785
      %v1920 = vmul.f32 %v1786, %v1786
      %v1921 = vadd.f32 %v1913, %v1914
      %1922 = vadd.xlane.f32.xlu0 %v1921
      %v1923 = vpop.xlane.xlu0 %1922
      %v1924 = vadd.f32 %v1915, %v1916
      %1925 = vadd.xlane.f32.xlu0 %v1924
      %v1926 = vpop.xlane.xlu0 %1925
      %v1927 = vadd.f32 %v1917, %v1918
      %1928 = vadd.xlane.f32.xlu0 %v1927
      %v1929 = vpop.xlane.xlu0 %1928
      %v1930 = vadd.f32 %v1919, %v1920
      %1931 = vadd.xlane.f32.xlu0 %v1930
      %v1932 = vpop.xlane.xlu0 %1931
      %v1937 = vlaneseq
      %v1938 = vshrl.u32 %v1937, 7
      %v1939 = vsub.s32 %v838, %v1938
      %v1940 = vrot.slane %v1923, %v1939
      %v1941 = vlaneseq
      %v1942 = vshrl.u32 %v1941, 7
      %v1943 = vsub.s32 %v843, %v1942
      %v1944 = vrot.slane %v1926, %v1943
      %v1945 = vsel %vm848, %v1944, %v1940
      %v1946 = vlaneseq
      %v1947 = vshrl.u32 %v1946, 7
      %v1948 = vsub.s32 %v850, %v1947
      %v1949 = vrot.slane %v1929, %v1948
      %v1950 = vsel %vm855, %v1949, %v1945
      %v1951 = vlaneseq
      %v1952 = vshrl.u32 %v1951, 7
      %v1953 = vsub.s32 %v857, %v1952
      %v1954 = vrot.slane %v1932, %v1953
      %v1955 = vsel %vm862, %v1954, %v1950
      %v1957 = vadd.f32 %v1912, %v1955
      %1958 = vst.msk [vmem:[%s470 + $0x1] sm:$0x1] %vm866, %v1957
      %p1959 = scmp.lt.s32.totalorder %s27, 1
      %s1960 = scalar_select %p1959, %s27, 1
      %p1961 = scmp.lt.s32.totalorder %s26, 1
      %s1962 = scalar_select %p1961, %s26, 1
      %s1963 = smul.addr %s1962, 8
      %s1964 = smul.addr %s1960, 16
      %s1965 = sadd.s32 %s1963, %s1964
      %s1966 = smul.addr %s1965, 4
      %s1967 = scalar_lea.vmem %s5, %s1966
      %p1968 = scmp.lt.s32.totalorder %s27, 1
      %s1969 = scalar_select %p1968, %s27, 1
      %p1970 = scmp.lt.s32.totalorder %s26, 1
      %s1971 = scalar_select %p1970, %s26, 1
      %s1972 = smul.addr %s1971, 8
      %s1973 = smul.addr %s1969, 16
      %s1974 = sadd.s32 %s1972, %s1973
      %s1975 = smul.addr %s1974, 8
      %s1976 = scalar_lea.vmem %s6, %s1975
      %p1977 = scmp.lt.s32.totalorder %s27, 1
      %s1978 = scalar_select %p1977, %s27, 1
      %p1979 = scmp.lt.s32.totalorder %s26, 1
      %s1980 = scalar_select %p1979, %s26, 1
      %s1981 = smul.addr %s1980, 8
      %s1982 = smul.addr %s1978, 16
      %s1983 = sadd.s32 %s1981, %s1982
      %s1984 = smul.addr %s1983, 8
      %s1985 = scalar_lea.vmem %s7, %s1984
      %p1986 = scmp.lt.s32.totalorder %s26, 1
      %s1987 = scalar_select %p1986, %s26, 1
      %s1988 = smul.addr %s1987, 2
      %s1989 = scalar_lea.vmem %s8, %s1988
      %p1990 = scmp.lt.s32.totalorder %s26, 1
      %s1991 = scalar_select %p1990, %s26, 1
      %s1992 = smul.addr %s1991, 2
      %s1993 = scalar_lea.vmem %s9, %s1992
      %p1994 = scmp.lt.s32.totalorder %s26, 1
      %s1995 = scalar_select %p1994, %s26, 1
      %s1996 = smul.addr %s1995, 2
      %s1997 = scalar_lea.vmem %s10, %s1996
      // Predicated region
      $region45: #{fatm_forward.4} parent=39 // pred_check
        %p1998 = pneg %p166
      $region46: #{fatm_forward.4} parent=39 // pred_check_branch
        %2000 = sbr.rel (%p1998) target = $region48
      $region47: #{fatm_forward.4} parent=39 // pred_region
        _
      $region48: #{fatm_forward.4} parent=39 // pred_fallthru
        _
      // Predicated region
      $region49: #{fatm_forward.4} parent=39 // pred_check
        %p2001 = pneg %p194
      $region50: #{fatm_forward.4} parent=39 // pred_check_branch
        %2003 = sbr.rel (%p2001) target = $region52
      $region51: #{fatm_forward.4} parent=39 // pred_region
        _
      $region52: #{fatm_forward.4} parent=39 // pred_fallthru
        _
      // Predicated region
      $region53: #{fatm_forward.4} parent=39 // pred_check
        %p2004 = pneg %p222
      $region54: #{fatm_forward.4} parent=39 // pred_check_branch
        %2006 = sbr.rel (%p2004) target = $region56
      $region55: #{fatm_forward.4} parent=39 // pred_region
        _
      $region56: #{fatm_forward.4} parent=39 // pred_fallthru
        _
      // Predicated region
      $region57: #{fatm_forward.4} parent=39 // pred_check
        %p2007 = pneg %p248
      $region58: #{fatm_forward.4} parent=39 // pred_check_branch
        %2009 = sbr.rel (%p2007) target = $region60
      $region59: #{fatm_forward.4} parent=39 // pred_region
        _
      $region60: #{fatm_forward.4} parent=39 // pred_fallthru
        _
      // Predicated region
      $region61: #{fatm_forward.4} parent=39 // pred_check
        %p2010 = pneg %p274
      $region62: #{fatm_forward.4} parent=39 // pred_check_branch
        %2012 = sbr.rel (%p2010) target = $region64
      $region63: #{fatm_forward.4} parent=39 // pred_region
        _
      $region64: #{fatm_forward.4} parent=39 // pred_fallthru
        _
      // Predicated region
      $region65: #{fatm_forward.4} parent=39 // pred_check
        %p2013 = pneg %p300
      $region66: #{fatm_forward.4} parent=39 // pred_check_branch
        %2015 = sbr.rel (%p2013) target = $region68
      $region67: #{fatm_forward.4} parent=39 // pred_region
        _
      $region68: #{fatm_forward.4} parent=39 // pred_fallthru
        _
    $region40: #{fatm_forward.4} parent=5 // pred_fallthru
      _
    %p2016 = scmp.le.s32.totalorder 2, %s17
    // Predicated region
    $region69: #{fatm_forward.4} parent=5 // pred_check
      %p2017 = pneg %p2016
    $region70: #{fatm_forward.4} parent=5 // pred_check_branch
      %2019 = sbr.rel (%p2017) target = $region72
    $region71: #{fatm_forward.4} parent=5 // pred_region
      %s2020 = ssub.s32 %s17, 2
      // Predicated region
      $region73: #{fatm_forward.4} parent=71 // pred_check
        %p2021 = pneg %p172
      $region74: #{fatm_forward.4} parent=71 // pred_check_branch
        %2023 = sbr.rel (%p2021) target = $region76
      $region75: #{fatm_forward.4} parent=71 // pred_region
        %p2024 = scmp.lt.s32.totalorder %s29, 1
        %s2025 = scalar_select %p2024, %s29, 1
        %p2026 = scmp.lt.s32.totalorder %s28, 1
        %s2027 = scalar_select %p2026, %s28, 1
        %s2028 = smul.addr %s2027, 8
        %s2029 = smul.addr %s2025, 16
        %s2030 = sadd.s32 %s2028, %s2029
        %s2031 = smul.addr %s2030, 4
        %s2032 = scalar_lea.vmem %s5, %s2031
      $region76: #{fatm_forward.4} parent=71 // pred_fallthru
        _
      // Predicated region
      $region77: #{fatm_forward.4} parent=71 // pred_check
        %p2033 = pneg %p200
      $region78: #{fatm_forward.4} parent=71 // pred_check_branch
        %2035 = sbr.rel (%p2033) target = $region80
      $region79: #{fatm_forward.4} parent=71 // pred_region
        %p2036 = scmp.lt.s32.totalorder %s29, 1
        %s2037 = scalar_select %p2036, %s29, 1
        %p2038 = scmp.lt.s32.totalorder %s28, 1
        %s2039 = scalar_select %p2038, %s28, 1
        %s2040 = smul.addr %s2039, 8
        %s2041 = smul.addr %s2037, 16
        %s2042 = sadd.s32 %s2040, %s2041
        %s2043 = smul.addr %s2042, 8
        %s2044 = scalar_lea.vmem %s6, %s2043
      $region80: #{fatm_forward.4} parent=71 // pred_fallthru
        _
      // Predicated region
      $region81: #{fatm_forward.4} parent=71 // pred_check
        %p2045 = pneg %p228
      $region82: #{fatm_forward.4} parent=71 // pred_check_branch
        %2047 = sbr.rel (%p2045) target = $region84
      $region83: #{fatm_forward.4} parent=71 // pred_region
        %p2048 = scmp.lt.s32.totalorder %s29, 1
        %s2049 = scalar_select %p2048, %s29, 1
        %p2050 = scmp.lt.s32.totalorder %s28, 1
        %s2051 = scalar_select %p2050, %s28, 1
        %s2052 = smul.addr %s2051, 8
        %s2053 = smul.addr %s2049, 16
        %s2054 = sadd.s32 %s2052, %s2053
        %s2055 = smul.addr %s2054, 8
        %s2056 = scalar_lea.vmem %s7, %s2055
      $region84: #{fatm_forward.4} parent=71 // pred_fallthru
        _
      // Predicated region
      $region85: #{fatm_forward.4} parent=71 // pred_check
        %p2057 = pneg %p254
      $region86: #{fatm_forward.4} parent=71 // pred_check_branch
        %2059 = sbr.rel (%p2057) target = $region88
      $region87: #{fatm_forward.4} parent=71 // pred_region
        %p2060 = scmp.lt.s32.totalorder %s28, 1
        %s2061 = scalar_select %p2060, %s28, 1
        %s2062 = smul.addr %s2061, 2
        %s2063 = scalar_lea.vmem %s8, %s2062
      $region88: #{fatm_forward.4} parent=71 // pred_fallthru
        _
      // Predicated region
      $region89: #{fatm_forward.4} parent=71 // pred_check
        %p2064 = pneg %p280
      $region90: #{fatm_forward.4} parent=71 // pred_check_branch
        %2066 = sbr.rel (%p2064) target = $region92
      $region91: #{fatm_forward.4} parent=71 // pred_region
        %p2067 = scmp.lt.s32.totalorder %s28, 1
        %s2068 = scalar_select %p2067, %s28, 1
        %s2069 = smul.addr %s2068, 2
        %s2070 = scalar_lea.vmem %s9, %s2069
      $region92: #{fatm_forward.4} parent=71 // pred_fallthru
        _
      // Predicated region
      $region93: #{fatm_forward.4} parent=71 // pred_check
        %p2071 = pneg %p306
      $region94: #{fatm_forward.4} parent=71 // pred_check_branch
        %2073 = sbr.rel (%p2071) target = $region96
      $region95: #{fatm_forward.4} parent=71 // pred_region
        %p2074 = scmp.lt.s32.totalorder %s28, 1
        %s2075 = scalar_select %p2074, %s28, 1
        %s2076 = smul.addr %s2075, 2
        %s2077 = scalar_lea.vmem %s10, %s2076
      $region96: #{fatm_forward.4} parent=71 // pred_fallthru
        _
    $region72: #{fatm_forward.4} parent=5 // pred_fallthru
      _
  $region6: #{fatm_forward.4} parent=0 // loop_footer
    %s21 = sadd.s32 1, %s17
  $region7: #{fatm_forward.4} parent=0 // loop_footer_branch
    %16 = sbr.rel target = $region3
  $region8: #{fatm_forward.4} parent=0 // loop_exit
    _

</llo_original>
